<compile_context>
chip_gen: v7x
topology: tpu7x:2x2x1
jax: 0.10.0
libtpu: 0.0.40
codegen_flags: <defaults>
</compile_context>

<pallas_src>
import functools

import jax
import jax.numpy as jnp
from jax.experimental import pallas as pl
from jax.experimental.pallas import tpu as pltpu

NUM_ROWS = 6
NUM_COLS = 7
HW = NUM_ROWS * NUM_COLS          # 42 board cells
PIX_PAD = 48                      # cells padded to a sublane multiple of 8
C_IN = 128                        # input feature planes
CV = 3                            # value-head conv channels
CP = 32                           # policy-head conv channels
CP_OFF = 32                       # lane offset of policy channels in fused conv out
C_OUT = 64                        # fused conv output lanes: [0:3]=value, [32:64]=policy
FC1_OUT = 32
JP_PAD = 8                        # policy fc outputs padded 7 -> 8 (power of two)
KV = PIX_PAD * FC1_OUT            # 1536: value-head  k = pixel*32 + j
KP = PIX_PAD * JP_PAD             # 384 : policy-head k = pixel*8  + j
BN_EPS = 1e-5


def _iota(shape, dim):
    return jax.lax.broadcasted_iota(jnp.int32, shape, dim)


def _conv_stats_kernel(x_ref, wc_ref, conv_ref, stats_ref):
    """Per-sample fused 1x1 conv (both heads) + per-channel sum / sum-of-squares.

    x_ref    : (48, 128)  rows = pixels (42 real, 6 zero), lanes = c_in
    wc_ref   : (128, 64)  fused conv weight (no bias: it cancels under train BN)
    conv_ref : (48, 64)   f32 conv output written back for pass 2
    stats_ref: (1, 2, 64) row0 = per-channel sum, row1 = per-channel sum of squares
    """
    conv = jnp.dot(x_ref[...], wc_ref[...], preferred_element_type=jnp.float32)
    conv_ref[...] = conv
    s = jnp.sum(conv, axis=0, keepdims=True)
    q = jnp.sum(conv * conv, axis=0, keepdims=True)
    stats_ref[0] = jnp.concatenate([s, q], axis=0)


def _heads_kernel(conv_ref, par_ref, wtv_ref, wtp_ref, out_ref):
    """Per-sample BN affine + ReLU + value/policy heads -> one packed (1, 8) row.

    conv_ref: (48, 64)   f32 conv output of this sample
    par_ref : (8, 64)    row0 scale, row1 shift, row2 fc1_b, row3 fc2_w,
                         row4[0] fc2_b, row5[:7] fc_b
    wtv_ref : (64, 1536) fc1 weight as [c_lane, pixel*32 + j] (zero outside value lanes)
    wtp_ref : (64, 384)  fc  weight as [c_lane, pixel*8  + j] (zero outside policy lanes)
    out_ref : (1, 1, 8)  lanes 0..6 = softmax policy, lane 7 = tanh value
    """
    conv = conv_ref[...]
    scale = par_ref[0:1, :]
    shift = par_ref[1:2, :]
    h = jnp.maximum(conv * scale + shift, 0.0)                         # (48, 64)
    hm = h.astype(wtv_ref.dtype)

    def head(wt_ref, kdim, j_shift, j_mask, j_out):
        # Linear over the per-sample (c,h,w) flatten with NO data relayout:
        #   y[p, k]  = sum_c h[p, c] * wt[c, k]          k = p'*2^j_shift + j
        #   r[k]     = sum_p y[p, k] * [p == p'(k)]       (pixel-match mask)
        #   out[j]   = sum_k r[k] * [j(k) == j]           (one-hot regroup)
        y = jnp.dot(hm, wt_ref[...], preferred_element_type=jnp.float32)
        m = jnp.where(_iota((PIX_PAD, kdim), 0) ==
                      (_iota((PIX_PAD, kdim), 1) >> j_shift), 1.0, 0.0)
        r = jnp.sum(y * m, axis=0, keepdims=True)                      # (1, kdim)
        b = jnp.where((_iota((kdim, j_out), 0) & j_mask) ==
                      _iota((kdim, j_out), 1), 1.0, 0.0)
        return jnp.dot(r, b, preferred_element_type=jnp.float32)       # (1, j_out)

    # ---- value head: fc1 -> ReLU -> fc2 -> tanh ----
    v1 = head(wtv_ref, KV, 5, 31, FC1_OUT)                             # (1, 32)
    v1 = jnp.maximum(v1 + par_ref[2:3, 0:FC1_OUT], 0.0)
    v2 = jnp.sum(v1 * par_ref[3:4, 0:FC1_OUT], axis=1, keepdims=True)  # (1, 1)
    v = jnp.tanh(v2 + par_ref[4:5, 0:1])

    # ---- policy head: fc -> exp(log_softmax) == softmax ----
    logits = head(wtp_ref, KP, 3, 7, JP_PAD)[:, 0:NUM_COLS]            # (1, 7)
    logits = logits + par_ref[5:6, 0:NUM_COLS]
    mx = jnp.max(logits, axis=-1, keepdims=True)
    e = jnp.exp(logits - mx)
    p = e / jnp.sum(e, axis=-1, keepdims=True)

    out_ref[0] = jnp.concatenate([p, v], axis=1)                       # (1, 8)


@functools.partial(jax.jit, static_argnames=("mxu_dtype",))
def outblock_forward(s, conv_w, bn_g, bn_b, conv1_w, bn1_g, bn1_b,
                     fc1_w, fc1_b, fc2_w, fc2_b, fc_w, fc_b,
                     mxu_dtype=jnp.bfloat16):
    """Equivalent of OutBlock.forward (training-mode BatchNorm).

    Conv biases are intentionally not taken: they cancel exactly under
    training-mode BatchNorm.  Returns (p, v): (N,7) softmax policy, (N,1) value.
    """
    x = jnp.reshape(s, (-1, C_IN, NUM_ROWS, NUM_COLS)).astype(jnp.float32)
    n = x.shape[0]

    # Activation relayout: rows = (sample, pixel 42->48), lanes = c_in (128).
    x2d = jnp.pad(x.transpose(0, 2, 3, 1).reshape(n, HW, C_IN),
                  ((0, 0), (0, PIX_PAD - HW), (0, 0)))
    x2d = x2d.reshape(n * PIX_PAD, C_IN).astype(mxu_dtype)

    # Fused 1x1-conv weight (128, 64): value at lanes [0:3], policy at [32:64].
    wc = jnp.zeros((C_IN, C_OUT), jnp.float32)
    wc = wc.at[:, 0:CV].set(conv_w.reshape(CV, C_IN).astype(jnp.float32).T)
    wc = wc.at[:, CP_OFF:CP_OFF + CP].set(
        conv1_w.reshape(CP, C_IN).astype(jnp.float32).T)
    wc = wc.astype(mxu_dtype)

    # fc weights re-indexed to [c_out_lane, pixel*J + j], zero for pad pixels/lanes.
    w1r = fc1_w.reshape(FC1_OUT, CV, HW).astype(jnp.float32).transpose(2, 1, 0)
    w1r = jnp.pad(w1r, ((0, PIX_PAD - HW), (0, 0), (0, 0)))            # (48, 3, 32)
    wt_v = jnp.zeros((C_OUT, KV), jnp.float32)
    wt_v = wt_v.at[0:CV, :].set(
        w1r.transpose(1, 0, 2).reshape(CV, KV)).astype(mxu_dtype)

    wfr = fc_w.reshape(NUM_COLS, CP, HW).astype(jnp.float32).transpose(2, 1, 0)
    wfr = jnp.pad(wfr, ((0, PIX_PAD - HW), (0, 0), (0, JP_PAD - NUM_COLS)))
    wt_p = jnp.zeros((C_OUT, KP), jnp.float32)
    wt_p = wt_p.at[CP_OFF:CP_OFF + CP, :].set(
        wfr.transpose(1, 0, 2).reshape(CP, KP)).astype(mxu_dtype)

    itemsize = jnp.dtype(mxu_dtype).itemsize
    cparams = pltpu.CompilerParams(dimension_semantics=("parallel",),
                                   vmem_limit_bytes=32 * 1024 * 1024)

    # ---- pass 1: per-sample conv + per-channel partial BN statistics ----
    grid1 = pltpu.PrefetchScalarGridSpec(
        num_scalar_prefetch=0, grid=(n,),
        in_specs=[pl.BlockSpec((PIX_PAD, C_IN), lambda i: (i, 0)),
                  pl.BlockSpec((C_IN, C_OUT), lambda i: (0, 0))],
        out_specs=(pl.BlockSpec((PIX_PAD, C_OUT), lambda i: (i, 0)),
                   pl.BlockSpec((1, 2, C_OUT), lambda i: (i, 0, 0))))
    cost1 = pl.CostEstimate(
        flops=2 * n * PIX_PAD * C_IN * C_OUT, transcendentals=0,
        bytes_accessed=(n * PIX_PAD * C_IN + C_IN * C_OUT) * itemsize
                       + (n * PIX_PAD * C_OUT + n * 2 * C_OUT) * 4)
    conv_out, partials = pl.pallas_call(
        _conv_stats_kernel,
        out_shape=(jax.ShapeDtypeStruct((n * PIX_PAD, C_OUT), jnp.float32),
                   jax.ShapeDtypeStruct((n, 2, C_OUT), jnp.float32)),
        grid_spec=grid1, compiler_params=cparams, cost_estimate=cost1,
    )(x2d, wc)

    # ---- tiny glue on (2, 64): global BN batch stats -> per-channel affine ----
    stats = jnp.sum(partials, axis=0)
    count = float(n * HW)             # padded pixels / channels contribute exact zeros
    mean = stats[0] / count
    var = jnp.maximum(stats[1] / count - mean * mean, 0.0)
    g64 = jnp.zeros((C_OUT,), jnp.float32).at[0:CV].set(bn_g.astype(jnp.float32))
    g64 = g64.at[CP_OFF:CP_OFF + CP].set(bn1_g.astype(jnp.float32))
    b64 = jnp.zeros((C_OUT,), jnp.float32).at[0:CV].set(bn_b.astype(jnp.float32))
    b64 = b64.at[CP_OFF:CP_OFF + CP].set(bn1_b.astype(jnp.float32))
    scale = g64 * jax.lax.rsqrt(var + BN_EPS)
    shift = b64 - mean * scale

    par = jnp.zeros((8, C_OUT), jnp.float32)
    par = par.at[0].set(scale)
    par = par.at[1].set(shift)
    par = par.at[2, 0:FC1_OUT].set(fc1_b.astype(jnp.float32))
    par = par.at[3, 0:FC1_OUT].set(fc2_w.reshape(FC1_OUT).astype(jnp.float32))
    par = par.at[4, 0].set(fc2_b.astype(jnp.float32)[0])
    par = par.at[5, 0:NUM_COLS].set(fc_b.astype(jnp.float32))

    # ---- pass 2: per-sample BN affine + ReLU + both heads ----
    grid2 = pltpu.PrefetchScalarGridSpec(
        num_scalar_prefetch=0, grid=(n,),
        in_specs=[pl.BlockSpec((PIX_PAD, C_OUT), lambda i: (i, 0)),
                  pl.BlockSpec((8, C_OUT), lambda i: (0, 0)),
                  pl.BlockSpec((C_OUT, KV), lambda i: (0, 0)),
                  pl.BlockSpec((C_OUT, KP), lambda i: (0, 0))],
        out_specs=pl.BlockSpec((1, 1, JP_PAD), lambda i: (i, 0, 0)))
    cost2 = pl.CostEstimate(
        flops=2 * n * (PIX_PAD * C_OUT * (KV + KP) + KV * FC1_OUT + KP * JP_PAD),
        transcendentals=n * (NUM_COLS + 2),
        bytes_accessed=n * PIX_PAD * C_OUT * 4 + 8 * C_OUT * 4
                       + C_OUT * (KV + KP) * itemsize + n * JP_PAD * 4)
    packed = pl.pallas_call(
        _heads_kernel,
        out_shape=jax.ShapeDtypeStruct((n, 1, JP_PAD), jnp.float32),
        grid_spec=grid2, compiler_params=cparams, cost_estimate=cost2,
    )(conv_out, par, wt_v, wt_p)

    packed = packed.reshape(n, JP_PAD)
    return packed[:, 0:NUM_COLS], packed[:, NUM_COLS:NUM_COLS + 1]


def _reference(s, conv_w, conv_b, bn_g, bn_b, conv1_w, conv1_b, bn1_g, bn1_b,
               fc1_w, fc1_b, fc2_w, fc2_b, fc_w, fc_b):
    """Pure-JAX OutBlock.forward (with conv biases, training-mode BN)."""
    x = jnp.reshape(s, (-1, C_IN, NUM_ROWS, NUM_COLS)).astype(jnp.float32)

    def conv_bn_relu(xx, w, b, g, beta):
        y = jax.lax.conv_general_dilated(
            xx, w, (1, 1), "VALID", dimension_numbers=("NCHW", "OIHW", "NCHW"))
        y = y + b.reshape(1, -1, 1, 1)
        mean = jnp.mean(y, axis=(0, 2, 3), keepdims=True)
        var = jnp.mean((y - mean) ** 2, axis=(0, 2, 3), keepdims=True)
        y = (y - mean) * jax.lax.rsqrt(var + BN_EPS)
        y = y * g.reshape(1, -1, 1, 1) + beta.reshape(1, -1, 1, 1)
        return jnp.maximum(y, 0.0)

    v = conv_bn_relu(x, conv_w, conv_b, bn_g, bn_b)
    v = v.reshape(v.shape[0], -1)
    v = jnp.maximum(v @ fc1_w.T + fc1_b, 0.0)
    v = jnp.tanh(v @ fc2_w.T + fc2_b)

    p = conv_bn_relu(x, conv1_w, conv1_b, bn1_g, bn1_b)
    p = p.reshape(p.shape[0], -1)
    p = p @ fc_w.T + fc_b
    p = jax.nn.softmax(p, axis=1)
    return p, v


if __name__ == "__main__":
    key = jax.random.PRNGKey(0)
    ks = jax.random.split(key, 16)
    batch = 2

    s = jax.random.normal(ks[0], (batch, C_IN, NUM_ROWS, NUM_COLS), jnp.float32)

    conv_w = jax.random.normal(ks[1], (CV, C_IN, 1, 1), jnp.float32) * 0.1
    conv_b = jax.random.normal(ks[2], (CV,), jnp.float32) * 0.1
    bn_g = 1.0 + 0.1 * jax.random.normal(ks[3], (CV,), jnp.float32)
    bn_b = 0.1 * jax.random.normal(ks[4], (CV,), jnp.float32)
    conv1_w = jax.random.normal(ks[5], (CP, C_IN, 1, 1), jnp.float32) * 0.1
    conv1_b = jax.random.normal(ks[6], (CP,), jnp.float32) * 0.1
    bn1_g = 1.0 + 0.1 * jax.random.normal(ks[7], (CP,), jnp.float32)
    bn1_b = 0.1 * jax.random.normal(ks[8], (CP,), jnp.float32)
    fc1_w = jax.random.normal(ks[9], (FC1_OUT, CV * HW), jnp.float32) * 0.1
    fc1_b = jax.random.normal(ks[10], (FC1_OUT,), jnp.float32) * 0.1
    fc2_w = jax.random.normal(ks[11], (1, FC1_OUT), jnp.float32) * 0.1
    fc2_b = jax.random.normal(ks[12], (1,), jnp.float32) * 0.1
    fc_w = jax.random.normal(ks[13], (NUM_COLS, CP * HW), jnp.float32) * 0.05
    fc_b = jax.random.normal(ks[14], (NUM_COLS,), jnp.float32) * 0.1

    args = (s, conv_w, bn_g, bn_b, conv1_w, bn1_g, bn1_b,
            fc1_w, fc1_b, fc2_w, fc2_b, fc_w, fc_b)

    p_exp, v_exp = _reference(
        s, conv_w, conv_b, bn_g, bn_b, conv1_w, conv1_b, bn1_g, bn1_b,
        fc1_w, fc1_b, fc2_w, fc2_b, fc_w, fc_b)
    p_exp = jax.block_until_ready(p_exp)
    v_exp = jax.block_until_ready(v_exp)

    # Exactness path: f32 MXU operands agree with the f32 reference tightly.
    p32, v32 = outblock_forward(*args, mxu_dtype=jnp.float32)
    p32 = jax.block_until_ready(p32)
    v32 = jax.block_until_ready(v32)
    assert p32.shape == (batch, NUM_COLS), p32.shape
    assert v32.shape == (batch, 1), v32.shape
    assert jnp.allclose(p32, p_exp, atol=1e-3, rtol=1e-3), float(
        jnp.max(jnp.abs(p32 - p_exp)))
    assert jnp.allclose(v32, v_exp, atol=1e-3, rtol=1e-3), float(
        jnp.max(jnp.abs(v32 - v_exp)))

    # Default fast path: bf16 MXU operands, f32 accumulation / BN / softmax / tanh.
    # Tolerance reflects bf16 operand rounding only (exact path checked above).
    p_bf, v_bf = outblock_forward(*args)
    p_bf = jax.block_until_ready(p_bf)
    v_bf = jax.block_until_ready(v_bf)
    assert p_bf.shape == (batch, NUM_COLS), p_bf.shape
    assert v_bf.shape == (batch, 1), v_bf.shape
    assert jnp.allclose(p_bf, p_exp, atol=2e-2, rtol=2e-2), float(
        jnp.max(jnp.abs(p_bf - p_exp)))
    assert jnp.allclose(v_bf, v_exp, atol=2e-2, rtol=2e-2), float(
        jnp.max(jnp.abs(v_bf - v_exp)))

    print("KERNEL_OK")
</pallas_src>

<mosaic_0001>
module attributes {stable_mosaic.version = 11 : i64} {
  func.func @_conv_stats_kernel(%arg0: i32, %arg1: memref<48x128xf32, #tpu.memory_space<vmem>>, %arg2: memref<128x64xf32, #tpu.memory_space<vmem>>, %arg3: memref<48x64xf32, #tpu.memory_space<vmem>>, %arg4: memref<1x2x64xf32, #tpu.memory_space<vmem>>) attributes {dimension_semantics = [#tpu.dimension_semantics<parallel>], iteration_bounds = array<i64: 2>, scalar_prefetch = 0 : i64, scratch_operands = 0 : i64, tpu.core_type = #tpu.core_type<tc>, window_params = [{transform_indices = @transform_0, window_bounds = array<i64: 48, 128>}, {pipeline_mode = #tpu.pipeline_mode<synchronous>, transform_indices = @transform_1, window_bounds = array<i64: 128, 64>}, {transform_indices = @transform_2, window_bounds = array<i64: 48, 64>}, {transform_indices = @transform_3, window_bounds = array<i64: 1, 2, 64>}]} {
    %c0 = arith.constant 0 : index
    %c0_0 = arith.constant 0 : index
    %0 = vector.load %arg1[%c0, %c0_0] : memref<48x128xf32, #tpu.memory_space<vmem>>, vector<48x128xf32>
    %c0_1 = arith.constant 0 : index
    %c0_2 = arith.constant 0 : index
    %1 = vector.load %arg2[%c0_1, %c0_2] : memref<128x64xf32, #tpu.memory_space<vmem>>, vector<128x64xf32>
    %cst = arith.constant dense<0.000000e+00> : vector<48x64xf32>
    %2 = tpu.matmul %0, %1, %cst {dimension_numbers = #tpu.dot_dimension_numbers<[1], [0], [0], [1], [0, 0, 1, 1], [], []>} : vector<48x128xf32>, vector<128x64xf32>, vector<48x64xf32> -> vector<48x64xf32>
    %c0_3 = arith.constant 0 : index
    %c0_4 = arith.constant 0 : index
    %3 = vector.load %arg3[%c0_3, %c0_4] : memref<48x64xf32, #tpu.memory_space<vmem>>, vector<48x64xf32>
    tpu.vector_store %arg3[%c0_3, %c0_4], %2 {strides = array<i32>} : memref<48x64xf32, #tpu.memory_space<vmem>>, vector<48x64xf32>,
    %cst_5 = arith.constant dense<0.000000e+00> : vector<64xf32>
    %4 = vector.multi_reduction <add>, %2, %cst_5 [0] : vector<48x64xf32> to vector<64xf32>
    %5 = vector.shape_cast %4 : vector<64xf32> to vector<1x64xf32>
    %6 = arith.mulf %2, %2 : vector<48x64xf32>
    %cst_6 = arith.constant dense<0.000000e+00> : vector<64xf32>
    %7 = vector.multi_reduction <add>, %6, %cst_6 [0] : vector<48x64xf32> to vector<64xf32>
    %8 = vector.shape_cast %7 : vector<64xf32> to vector<1x64xf32>
    %9 = tpu.concatenate %5, %8 in 0 : vector<1x64xf32>, vector<1x64xf32> -> vector<2x64xf32>
    %c0_7 = arith.constant 0 : index
    %c0_8 = arith.constant 0 : index
    %c0_9 = arith.constant 0 : index
    %10 = vector.load %arg4[%c0_7, %c0_8, %c0_9] : memref<1x2x64xf32, #tpu.memory_space<vmem>>, vector<1x2x64xf32>
    %11 = vector.shape_cast %10 : vector<1x2x64xf32> to vector<2x64xf32>
    %12 = vector.shape_cast %9 : vector<2x64xf32> to vector<1x2x64xf32>
    tpu.vector_store %arg4[%c0_7, %c0_8, %c0_9], %12 {strides = array<i32>} : memref<1x2x64xf32, #tpu.memory_space<vmem>>, vector<1x2x64xf32>,
    return
  }
  func.func @transform_0(%arg0: i32) -> (i32, i32) {
    %c0_i32 = arith.constant 0 : i32
    %c0_i32_0 = arith.constant 0 : i32
    return %arg0, %c0_i32 : i32, i32
  }
  func.func @transform_1(%arg0: i32) -> (i32, i32) {
    %c0_i32 = arith.constant 0 : i32
    %c0_i32_0 = arith.constant 0 : i32
    %c0_i32_1 = arith.constant 0 : i32
    return %c0_i32, %c0_i32_0 : i32, i32
  }
  func.func @transform_2(%arg0: i32) -> (i32, i32) {
    %c0_i32 = arith.constant 0 : i32
    %c0_i32_0 = arith.constant 0 : i32
    return %arg0, %c0_i32 : i32, i32
  }
  func.func @transform_3(%arg0: i32) -> (i32, i32, i32) {
    %c0_i32 = arith.constant 0 : i32
    %c0_i32_0 = arith.constant 0 : i32
    %c0_i32_1 = arith.constant 0 : i32
    return %arg0, %c0_i32, %c0_i32_0 : i32, i32, i32
  }
}

module attributes {stable_mosaic.version = 11 : i64} {
  func.func @_heads_kernel(%arg0: i32, %arg1: memref<48x64xf32, #tpu.memory_space<vmem>>, %arg2: memref<8x64xf32, #tpu.memory_space<vmem>>, %arg3: memref<64x1536xf32, #tpu.memory_space<vmem>>, %arg4: memref<64x384xf32, #tpu.memory_space<vmem>>, %arg5: memref<1x1x8xf32, #tpu.memory_space<vmem>>) attributes {dimension_semantics = [#tpu.dimension_semantics<parallel>], iteration_bounds = array<i64: 2>, scalar_prefetch = 0 : i64, scratch_operands = 0 : i64, tpu.core_type = #tpu.core_type<tc>, window_params = [{transform_indices = @transform_0, window_bounds = array<i64: 48, 64>}, {pipeline_mode = #tpu.pipeline_mode<synchronous>, transform_indices = @transform_1, window_bounds = array<i64: 8, 64>}, {pipeline_mode = #tpu.pipeline_mode<synchronous>, transform_indices = @transform_2, window_bounds = array<i64: 64, 1536>}, {pipeline_mode = #tpu.pipeline_mode<synchronous>, transform_indices = @transform_3, window_bounds = array<i64: 64, 384>}, {transform_indices = @transform_4, window_bounds = array<i64: 1, 1, 8>}]} {
    %c0 = arith.constant 0 : index
    %c0_0 = arith.constant 0 : index
    %0 = vector.load %arg1[%c0, %c0_0] : memref<48x64xf32, #tpu.memory_space<vmem>>, vector<48x64xf32>
    %c0_1 = arith.constant 0 : index
    %c0_2 = arith.constant 0 : index
    %1 = vector.load %arg2[%c0_1, %c0_2] : memref<8x64xf32, #tpu.memory_space<vmem>>, vector<1x64xf32>
    %c1 = arith.constant 1 : index
    %c0_3 = arith.constant 0 : index
    %2 = vector.load %arg2[%c1, %c0_3] : memref<8x64xf32, #tpu.memory_space<vmem>>, vector<1x64xf32>
    %3 = vector.broadcast %1 : vector<1x64xf32> to vector<48x64xf32>
    %4 = arith.mulf %0, %3 : vector<48x64xf32>
    %5 = vector.broadcast %2 : vector<1x64xf32> to vector<48x64xf32>
    %6 = arith.addf %4, %5 : vector<48x64xf32>
    %cst = arith.constant 0.000000e+00 : f32
    %7 = vector.broadcast %cst : f32 to vector<48x64xf32>
    %8 = arith.maximumf %6, %7 : vector<48x64xf32>
    %c0_4 = arith.constant 0 : index
    %c0_5 = arith.constant 0 : index
    %9 = vector.load %arg3[%c0_4, %c0_5] : memref<64x1536xf32, #tpu.memory_space<vmem>>, vector<64x1536xf32>
    %cst_6 = arith.constant dense<0.000000e+00> : vector<48x1536xf32>
    %10 = tpu.matmul %8, %9, %cst_6 {dimension_numbers = #tpu.dot_dimension_numbers<[1], [0], [0], [1], [0, 0, 1, 1], [], []>} : vector<48x64xf32>, vector<64x1536xf32>, vector<48x1536xf32> -> vector<48x1536xf32>
    %11 = tpu.iota {dimensions = array<i32: 0>} : vector<48x1536xi32>
    %12 = tpu.iota {dimensions = array<i32: 1>} : vector<48x1536xi32>
    %c5_i32 = arith.constant 5 : i32
    %13 = vector.broadcast %c5_i32 : i32 to vector<48x1536xi32>
    %14 = arith.shrsi %12, %13 : vector<48x1536xi32>
    %15 = arith.cmpi eq, %11, %14 : vector<48x1536xi32>
    %cst_7 = arith.constant 1.000000e+00 : f32
    %cst_8 = arith.constant 0.000000e+00 : f32
    %16 = vector.broadcast %cst_7 : f32 to vector<48x1536xf32>
    %17 = vector.broadcast %cst_8 : f32 to vector<48x1536xf32>
    %18 = arith.select %15, %16, %17 : vector<48x1536xi1>, vector<48x1536xf32>
    %19 = arith.mulf %10, %18 : vector<48x1536xf32>
    %cst_9 = arith.constant dense<0.000000e+00> : vector<1536xf32>
    %20 = vector.multi_reduction <add>, %19, %cst_9 [0] : vector<48x1536xf32> to vector<1536xf32>
    %21 = vector.shape_cast %20 : vector<1536xf32> to vector<1x1536xf32>
    %22 = tpu.iota {dimensions = array<i32: 0>} : vector<1536x32xi32>
    %c31_i32 = arith.constant 31 : i32
    %23 = vector.broadcast %c31_i32 : i32 to vector<1536x32xi32>
    %24 = arith.andi %22, %23 : vector<1536x32xi32>
    %25 = tpu.iota {dimensions = array<i32: 1>} : vector<1536x32xi32>
    %26 = arith.cmpi eq, %24, %25 : vector<1536x32xi32>
    %cst_10 = arith.constant 1.000000e+00 : f32
    %cst_11 = arith.constant 0.000000e+00 : f32
    %27 = vector.broadcast %cst_10 : f32 to vector<1536x32xf32>
    %28 = vector.broadcast %cst_11 : f32 to vector<1536x32xf32>
    %29 = arith.select %26, %27, %28 : vector<1536x32xi1>, vector<1536x32xf32>
    %cst_12 = arith.constant dense<0.000000e+00> : vector<1x32xf32>
    %30 = tpu.matmul %21, %29, %cst_12 {dimension_numbers = #tpu.dot_dimension_numbers<[1], [0], [0], [1], [0, 0, 1, 1], [], []>} : vector<1x1536xf32>, vector<1536x32xf32>, vector<1x32xf32> -> vector<1x32xf32>
    %c2 = arith.constant 2 : index
    %c0_13 = arith.constant 0 : index
    %31 = vector.load %arg2[%c2, %c0_13] : memref<8x64xf32, #tpu.memory_space<vmem>>, vector<1x32xf32>
    %32 = arith.addf %30, %31 : vector<1x32xf32>
    %cst_14 = arith.constant 0.000000e+00 : f32
    %33 = vector.broadcast %cst_14 : f32 to vector<1x32xf32>
    %34 = arith.maximumf %32, %33 : vector<1x32xf32>
    %c3 = arith.constant 3 : index
    %c0_15 = arith.constant 0 : index
    %35 = vector.load %arg2[%c3, %c0_15] : memref<8x64xf32, #tpu.memory_space<vmem>>, vector<1x32xf32>
    %36 = arith.mulf %34, %35 : vector<1x32xf32>
    %cst_16 = arith.constant dense<0.000000e+00> : vector<1xf32>
    %37 = vector.multi_reduction <add>, %36, %cst_16 [1] : vector<1x32xf32> to vector<1xf32>
    %38 = vector.shape_cast %37 : vector<1xf32> to vector<1x1xf32>
    %c4 = arith.constant 4 : index
    %c0_17 = arith.constant 0 : index
    %39 = vector.load %arg2[%c4, %c0_17] : memref<8x64xf32, #tpu.memory_space<vmem>>, vector<1x1xf32>
    %40 = arith.addf %38, %39 : vector<1x1xf32>
    %41 = math.tanh %40 : vector<1x1xf32>
    %c0_18 = arith.constant 0 : index
    %c0_19 = arith.constant 0 : index
    %42 = vector.load %arg4[%c0_18, %c0_19] : memref<64x384xf32, #tpu.memory_space<vmem>>, vector<64x384xf32>
    %cst_20 = arith.constant dense<0.000000e+00> : vector<48x384xf32>
    %43 = tpu.matmul %8, %42, %cst_20 {dimension_numbers = #tpu.dot_dimension_numbers<[1], [0], [0], [1], [0, 0, 1, 1], [], []>} : vector<48x64xf32>, vector<64x384xf32>, vector<48x384xf32> -> vector<48x384xf32>
    %44 = tpu.iota {dimensions = array<i32: 0>} : vector<48x384xi32>
    %45 = tpu.iota {dimensions = array<i32: 1>} : vector<48x384xi32>
    %c3_i32 = arith.constant 3 : i32
    %46 = vector.broadcast %c3_i32 : i32 to vector<48x384xi32>
    %47 = arith.shrsi %45, %46 : vector<48x384xi32>
    %48 = arith.cmpi eq, %44, %47 : vector<48x384xi32>
    %cst_21 = arith.constant 1.000000e+00 : f32
    %cst_22 = arith.constant 0.000000e+00 : f32
    %49 = vector.broadcast %cst_21 : f32 to vector<48x384xf32>
    %50 = vector.broadcast %cst_22 : f32 to vector<48x384xf32>
    %51 = arith.select %48, %49, %50 : vector<48x384xi1>, vector<48x384xf32>
    %52 = arith.mulf %43, %51 : vector<48x384xf32>
    %cst_23 = arith.constant dense<0.000000e+00> : vector<384xf32>
    %53 = vector.multi_reduction <add>, %52, %cst_23 [0] : vector<48x384xf32> to vector<384xf32>
    %54 = vector.shape_cast %53 : vector<384xf32> to vector<1x384xf32>
    %55 = tpu.iota {dimensions = array<i32: 0>} : vector<384x8xi32>
    %c7_i32 = arith.constant 7 : i32
    %56 = vector.broadcast %c7_i32 : i32 to vector<384x8xi32>
    %57 = arith.andi %55, %56 : vector<384x8xi32>
    %58 = tpu.iota {dimensions = array<i32: 1>} : vector<384x8xi32>
    %59 = arith.cmpi eq, %57, %58 : vector<384x8xi32>
    %cst_24 = arith.constant 1.000000e+00 : f32
    %cst_25 = arith.constant 0.000000e+00 : f32
    %60 = vector.broadcast %cst_24 : f32 to vector<384x8xf32>
    %61 = vector.broadcast %cst_25 : f32 to vector<384x8xf32>
    %62 = arith.select %59, %60, %61 : vector<384x8xi1>, vector<384x8xf32>
    %cst_26 = arith.constant dense<0.000000e+00> : vector<1x8xf32>
    %63 = tpu.matmul %54, %62, %cst_26 {dimension_numbers = #tpu.dot_dimension_numbers<[1], [0], [0], [1], [0, 0, 1, 1], [], []>} : vector<1x384xf32>, vector<384x8xf32>, vector<1x8xf32> -> vector<1x8xf32>
    %64 = vector.extract_strided_slice %63 {offsets = [0, 0], sizes = [1, 7], strides = [1, 1]} : vector<1x8xf32> to vector<1x7xf32>
    %c5 = arith.constant 5 : index
    %c0_27 = arith.constant 0 : index
    %65 = vector.load %arg2[%c5, %c0_27] : memref<8x64xf32, #tpu.memory_space<vmem>>, vector<1x7xf32>
    %66 = arith.addf %64, %65 : vector<1x7xf32>
    %cst_28 = arith.constant dense<0xFF800000> : vector<1xf32>
    %67 = vector.multi_reduction <maximumf>, %66, %cst_28 [1] : vector<1x7xf32> to vector<1xf32>
    %68 = vector.shape_cast %67 : vector<1xf32> to vector<1x1xf32>
    %69 = vector.broadcast %68 : vector<1x1xf32> to vector<1x7xf32>
    %70 = arith.subf %66, %69 : vector<1x7xf32>
    %71 = math.exp %70 : vector<1x7xf32>
    %cst_29 = arith.constant dense<0.000000e+00> : vector<1xf32>
    %72 = vector.multi_reduction <add>, %71, %cst_29 [1] : vector<1x7xf32> to vector<1xf32>
    %73 = vector.shape_cast %72 : vector<1xf32> to vector<1x1xf32>
    %74 = vector.broadcast %73 : vector<1x1xf32> to vector<1x7xf32>
    %75 = arith.divf %71, %74 : vector<1x7xf32>
    %76 = tpu.concatenate %75, %41 in 1 : vector<1x7xf32>, vector<1x1xf32> -> vector<1x8xf32>
    %c0_30 = arith.constant 0 : index
    %c0_31 = arith.constant 0 : index
    %c0_32 = arith.constant 0 : index
    %77 = vector.load %arg5[%c0_30, %c0_31, %c0_32] : memref<1x1x8xf32, #tpu.memory_space<vmem>>, vector<1x1x8xf32>
    %78 = vector.shape_cast %77 : vector<1x1x8xf32> to vector<1x8xf32>
    %79 = vector.shape_cast %76 : vector<1x8xf32> to vector<1x1x8xf32>
    tpu.vector_store %arg5[%c0_30, %c0_31, %c0_32], %79 {strides = array<i32>} : memref<1x1x8xf32, #tpu.memory_space<vmem>>, vector<1x1x8xf32>,
    return
  }
  func.func @transform_0(%arg0: i32) -> (i32, i32) {
    %c0_i32 = arith.constant 0 : i32
    %c0_i32_0 = arith.constant 0 : i32
    return %arg0, %c0_i32 : i32, i32
  }
  func.func @transform_1(%arg0: i32) -> (i32, i32) {
    %c0_i32 = arith.constant 0 : i32
    %c0_i32_0 = arith.constant 0 : i32
    %c0_i32_1 = arith.constant 0 : i32
    return %c0_i32, %c0_i32_0 : i32, i32
  }
  func.func @transform_2(%arg0: i32) -> (i32, i32) {
    %c0_i32 = arith.constant 0 : i32
    %c0_i32_0 = arith.constant 0 : i32
    %c0_i32_1 = arith.constant 0 : i32
    return %c0_i32, %c0_i32_0 : i32, i32
  }
  func.func @transform_3(%arg0: i32) -> (i32, i32) {
    %c0_i32 = arith.constant 0 : i32
    %c0_i32_0 = arith.constant 0 : i32
    %c0_i32_1 = arith.constant 0 : i32
    return %c0_i32, %c0_i32_0 : i32, i32
  }
  func.func @transform_4(%arg0: i32) -> (i32, i32, i32) {
    %c0_i32 = arith.constant 0 : i32
    %c0_i32_0 = arith.constant 0 : i32
    %c0_i32_1 = arith.constant 0 : i32
    return %arg0, %c0_i32, %c0_i32_0 : i32, i32, i32
  }
}

</mosaic_0001>

<llo_original>
// kernel: outblock_forward.2
$region0: #{outblock_forward.2}
  #allocation0 [shape = 'u32[]', space=smem, size = 0x4, offset = 0x4, fixed_abs, tag = 'smem constant byte address 0x4 - core index']
  #allocation1 [shape = 'u32[144,128]{1,0:T(1,128)}', space=vmem, size = 0x12000, scoped, tag = 'internal scratch']
  %s0 = inlined_call_operand.vmem [shape: f32[96,128], index: 0, kind: input, shape index: {}]
  %s1 = inlined_call_operand.vmem [shape: f32[128,64], index: 1, kind: input, shape index: {}]
  %s2 = inlined_call_operand.vmem [shape: f32[96,64], index: 2, kind: output, shape index: {0}]
  %s3 = inlined_call_operand.vmem [shape: f32[2,2,64], index: 3, kind: output, shape index: {1}]
  %4 = xla_tuple %s2, %s3
  %s5 = sld [smem:[#allocation0]]
  $region49: #{outblock_forward.2} parent=0
    _
  %s7 = ssub.s32 1, %s5
  %s8 = scalar_select 0, %s7, %s5
  loop: start=0, step=1, limit=4
  $region2: #{outblock_forward.2} parent=0 // loop_pre_header
    _
  $region3: #{outblock_forward.2} parent=0 // loop_header
    %s10 = sphi 0, %s14
    %p11 = scmp.ge.s32.totalorder %s10, 4
    %s20 = sphi 0, %s22
    %s23 = sphi 0, %s20
    %s24 = sphi 0, %s23
    %s40 = sphi 0, %s24
    %s44 = sphi 0, %s44
    %s46 = sphi 0, %s44
    %s47 = sphi 0, %s46
    %s61 = sphi 0, %s47
    %s67 = sphi 0, %s69
    %s70 = sphi 0, %s67
    %s71 = sphi 0, %s70
    %s87 = sphi 0, %s71
    %s93 = sphi 0, %s95
    %s96 = sphi 0, %s93
    %s97 = sphi 0, %s96
    %s113 = sphi 0, %s97
  $region4: #{outblock_forward.2} parent=0 // loop_header_branch
    %13 = sbr.rel (%p11) target = $region8
  $region5: #{outblock_forward.2} parent=0 // loop_body
    %s15 = ssub.s32 %s10, 1
    %s16 = ssub.s32 %s10, 2
    %s17 = sadd.s32 %s10, 1
    %s18 = ssub.s32 %s10, %s17
    %p19 = scmp.eq.s32.totalorder %s18, 0
    %s21 = sadd.s32 %s20, 1
    %s22 = scalar_select %p19, %s20, %s21
    %p25 = pneg %p19
    %p26 = scmp.eq.s32.totalorder %s10, 1
    %p27 = por %p25, %p26
    %p28 = scmp.ne.s32.totalorder %s20, %s23
    %p29 = scmp.eq.s32.totalorder %s10, 0
    %p30 = por %p28, %p29
    %p31 = scmp.ne.s32.totalorder %s20, %s23
    %p32 = scmp.eq.s32.totalorder %s15, 1
    %p33 = por %p31, %p32
    %p34 = scmp.ne.s32.totalorder %s23, %s24
    %p35 = scmp.eq.s32.totalorder %s15, 0
    %p36 = por %p34, %p35
    %p37 = scmp.ne.s32.totalorder %s23, %s24
    %p38 = scmp.eq.s32.totalorder %s16, 1
    %p39 = por %p37, %p38
    %p41 = scmp.ne.s32.totalorder %s24, %s40
    %p42 = scmp.eq.s32.totalorder %s16, 0
    %p43 = por %p41, %p42
    %s45 = sadd.s32 %s44, 1
    %p48 = scmp.eq.s32.totalorder %s10, 1
    %p49 = scmp.ne.s32.totalorder %s44, %s46
    %p50 = scmp.eq.s32.totalorder %s10, 0
    %p51 = por %p49, %p50
    %p52 = scmp.ne.s32.totalorder %s44, %s46
    %p53 = scmp.eq.s32.totalorder %s15, 1
    %p54 = por %p52, %p53
    %p55 = scmp.ne.s32.totalorder %s46, %s47
    %p56 = scmp.eq.s32.totalorder %s15, 0
    %p57 = por %p55, %p56
    %p58 = scmp.ne.s32.totalorder %s46, %s47
    %p59 = scmp.eq.s32.totalorder %s16, 1
    %p60 = por %p58, %p59
    %p62 = scmp.ne.s32.totalorder %s47, %s61
    %p63 = scmp.eq.s32.totalorder %s16, 0
    %p64 = por %p62, %p63
    %s65 = ssub.s32 %s10, %s17
    %p66 = scmp.eq.s32.totalorder %s65, 0
    %s68 = sadd.s32 %s67, 1
    %s69 = scalar_select %p66, %s67, %s68
    %p72 = pneg %p66
    %p73 = scmp.eq.s32.totalorder %s10, 1
    %p74 = por %p72, %p73
    %p75 = scmp.ne.s32.totalorder %s67, %s70
    %p76 = scmp.eq.s32.totalorder %s10, 0
    %p77 = por %p75, %p76
    %p78 = scmp.ne.s32.totalorder %s67, %s70
    %p79 = scmp.eq.s32.totalorder %s15, 1
    %p80 = por %p78, %p79
    %p81 = scmp.ne.s32.totalorder %s70, %s71
    %p82 = scmp.eq.s32.totalorder %s15, 0
    %p83 = por %p81, %p82
    %p84 = scmp.ne.s32.totalorder %s70, %s71
    %p85 = scmp.eq.s32.totalorder %s16, 1
    %p86 = por %p84, %p85
    %p88 = scmp.ne.s32.totalorder %s71, %s87
    %p89 = scmp.eq.s32.totalorder %s16, 0
    %p90 = por %p88, %p89
    %s91 = ssub.s32 %s10, %s17
    %p92 = scmp.eq.s32.totalorder %s91, 0
    %s94 = sadd.s32 %s93, 1
    %s95 = scalar_select %p92, %s93, %s94
    %p98 = pneg %p92
    %p99 = scmp.eq.s32.totalorder %s10, 1
    %p100 = por %p98, %p99
    %p101 = scmp.ne.s32.totalorder %s93, %s96
    %p102 = scmp.eq.s32.totalorder %s10, 0
    %p103 = por %p101, %p102
    %p104 = scmp.ne.s32.totalorder %s93, %s96
    %p105 = scmp.eq.s32.totalorder %s15, 1
    %p106 = por %p104, %p105
    %p107 = scmp.ne.s32.totalorder %s96, %s97
    %p108 = scmp.eq.s32.totalorder %s15, 0
    %p109 = por %p107, %p108
    %p110 = scmp.ne.s32.totalorder %s96, %s97
    %p111 = scmp.eq.s32.totalorder %s16, 1
    %p112 = por %p110, %p111
    %p114 = scmp.ne.s32.totalorder %s97, %s113
    %p115 = scmp.eq.s32.totalorder %s16, 0
    %p116 = por %p114, %p115
    %p117 = scmp.le.s32.totalorder 1, %s10
    %p118 = scmp.lt.s32.totalorder %s10, 3
    %p119 = pnand %p117, %p118
    %p120 = pneg %p119
    // Predicated region
    $region9: #{outblock_forward.2} parent=5 // pred_check
      _
    $region10: #{outblock_forward.2} parent=5 // pred_check_branch
      %122 = sbr.rel (%p119) target = $region12
    $region11: #{outblock_forward.2} parent=5 // pred_region
      %s123 = ssub.s32 %s10, 1
      // Predicated region
      $region13: #{outblock_forward.2} parent=11 // pred_check
        %p124 = pneg %p57
      $region14: #{outblock_forward.2} parent=11 // pred_check_branch
        %126 = sbr.rel (%p124) target = $region16
      $region15: #{outblock_forward.2} parent=11 // pred_region
        _
      $region16: #{outblock_forward.2} parent=11 // pred_fallthru
        _
    $region12: #{outblock_forward.2} parent=5 // pred_fallthru
      _
    %p127 = scmp.lt.s32.totalorder %s10, 2
    // Predicated region
    $region17: #{outblock_forward.2} parent=5 // pred_check
      %p128 = pneg %p127
    $region18: #{outblock_forward.2} parent=5 // pred_check_branch
      %130 = sbr.rel (%p128) target = $region20
    $region19: #{outblock_forward.2} parent=5 // pred_region
      // Predicated region
      $region21: #{outblock_forward.2} parent=19 // pred_check
        %p131 = pneg %p30
      $region22: #{outblock_forward.2} parent=19 // pred_check_branch
        %133 = sbr.rel (%p131) target = $region24
      $region23: #{outblock_forward.2} parent=19 // pred_region
        %s134 = smul.u32 6, %s10
        %p135 = scmp.lt.s32.totalorder %s134, 11
        %s136 = scalar_select %p135, %s134, 11
        %s137 = smul.addr %s136, 8
        %s138 = scalar_lea.vmem %s0, %s137
        %s139 = smul.u32 6, %s10
      $region24: #{outblock_forward.2} parent=19 // pred_fallthru
        _
    $region20: #{outblock_forward.2} parent=5 // pred_fallthru
      _
    %p140 = scmp.le.s32.totalorder 1, %s10
    %p141 = scmp.lt.s32.totalorder %s10, 3
    %p142 = pnand %p140, %p141
    %p143 = pneg %p142
    // Predicated region
    $region25: #{outblock_forward.2} parent=5 // pred_check
      _
    $region26: #{outblock_forward.2} parent=5 // pred_check_branch
      %145 = sbr.rel (%p142) target = $region28
    $region27: #{outblock_forward.2} parent=5 // pred_region
      %s146 = ssub.s32 %s10, 1
      %s147 = smul.u32 6, %s15
      %p148 = scmp.lt.s32.totalorder %s147, 11
      %s149 = scalar_select %p148, %s147, 11
      %s150 = smul.addr %s149, 8
      %s151 = scalar_lea.vmem %s0, %s150
      %p152 = pneg %p36
      %p153 = pneg %p33
      %p154 = pneg %p57
      %p155 = pneg %p54
      %p156 = pneg %p83
      %p157 = pneg %p80
      %s158 = smul.u32 6, %s15
      %p159 = scmp.lt.s32.totalorder %s158, 11
      %s160 = scalar_select %p159, %s158, 11
      %s161 = smul.addr %s160, 8
      %s162 = scalar_lea.vmem %s2, %s161
      %p163 = pneg %p109
      %p164 = pneg %p106
      %p165 = scmp.lt.s32.totalorder %s15, 1
      %s166 = scalar_select %p165, %s15, 1
      %s167 = smul.addr %s166, 2
      %s168 = scalar_lea.vmem %s3, %s167
      %s169 = smul.u32 6, %s15
      %p170 = scmp.lt.s32.totalorder %s169, 11
      %s171 = scalar_select %p170, %s169, 11
      %s172 = smul.addr %s171, 8
      %s173 = scalar_lea.vmem %s0, %s172
      %s174 = smul.u32 6, %s15
      %s175 = smul.u32 6, %s15
      %p176 = scmp.lt.s32.totalorder %s175, 11
      %s177 = scalar_select %p176, %s175, 11
      %s178 = smul.addr %s177, 8
      %s179 = scalar_lea.vmem %s2, %s178
      %s180 = smul.u32 6, %s15
      %p181 = scmp.lt.s32.totalorder %s15, 1
      %s182 = scalar_select %p181, %s15, 1
      %s183 = smul.addr %s182, 2
      %s184 = scalar_lea.vmem %s3, %s183
      %v185 = vld [vmem:[%s173] sm:$0xff]
      %v186 = vld [vmem:[%s173 + $0x8] sm:$0xff]
      %v187 = vld [vmem:[%s173 + $0x10] sm:$0xff]
      %v188 = vld [vmem:[%s173 + $0x18] sm:$0xff]
      %v189 = vld [vmem:[%s173 + $0x20] sm:$0xff]
      %v190 = vld [vmem:[%s173 + $0x28] sm:$0xff]
      %v191 = vld [vmem:[%s1] sm:$0xff]
      %v192 = vld [vmem:[%s1 + $0x8] sm:$0xff]
      %v193 = vld [vmem:[%s1 + $0x10] sm:$0xff]
      %v194 = vld [vmem:[%s1 + $0x18] sm:$0xff]
      %v195 = vld [vmem:[%s1 + $0x20] sm:$0xff]
      %v196 = vld [vmem:[%s1 + $0x28] sm:$0xff]
      %v197 = vld [vmem:[%s1 + $0x30] sm:$0xff]
      %v198 = vld [vmem:[%s1 + $0x38] sm:$0xff]
      %v199 = vld [vmem:[%s1 + $0x40] sm:$0xff]
      %v200 = vld [vmem:[%s1 + $0x48] sm:$0xff]
      %v201 = vld [vmem:[%s1 + $0x50] sm:$0xff]
      %v202 = vld [vmem:[%s1 + $0x58] sm:$0xff]
      %v203 = vld [vmem:[%s1 + $0x60] sm:$0xff]
      %v204 = vld [vmem:[%s1 + $0x68] sm:$0xff]
      %v205 = vld [vmem:[%s1 + $0x70] sm:$0xff]
      %v206 = vld [vmem:[%s1 + $0x78] sm:$0xff]
      %207 = vmatprep.subr.mxu0 0.0
      %208 = vmatpush1.msra.mxu0 %v191
      %209 = vmatprep.subr.mxu0 0.0
      %210 = vmatpush1.msra.mxu0 %v192
      %211 = vmatprep.subr.mxu0 0.0
      %212 = vmatpush1.msra.mxu0 %v193
      %213 = vmatprep.subr.mxu0 0.0
      %214 = vmatpush1.msra.mxu0 %v194
      %215 = vmatprep.subr.mxu0 0.0
      %216 = vmatpush1.msra.mxu0 %v195
      %217 = vmatprep.subr.mxu0 0.0
      %218 = vmatpush1.msra.mxu0 %v196
      %219 = vmatprep.subr.mxu0 0.0
      %220 = vmatpush1.msra.mxu0 %v197
      %221 = vmatprep.subr.mxu0 0.0
      %222 = vmatpush1.msra.mxu0 %v198
      %223 = vmatprep.subr.mxu0 0.0
      %224 = vmatpush1.msra.mxu0 %v199
      %225 = vmatprep.subr.mxu0 0.0
      %226 = vmatpush1.msra.mxu0 %v200
      %227 = vmatprep.subr.mxu0 0.0
      %228 = vmatpush1.msra.mxu0 %v201
      %229 = vmatprep.subr.mxu0 0.0
      %230 = vmatpush1.msra.mxu0 %v202
      %231 = vmatprep.subr.mxu0 0.0
      %232 = vmatpush1.msra.mxu0 %v203
      %233 = vmatprep.subr.mxu0 0.0
      %234 = vmatpush1.msra.mxu0 %v204
      %235 = vmatprep.subr.mxu0 0.0
      %236 = vmatpush1.msra.mxu0 %v205
      %237 = vmatprep.subr.mxu0 0.0
      %238 = vmatpush1.msra.mxu0 %v206
      %239 = vmatprep.subr.mxu0 0.0
      %240 = vmatpush1.msra.mxu0 0.0
      %241 = vmatprep.subr.mxu0 0.0
      %242 = vmatpush1.msra.mxu0 0.0
      %243 = vmatprep.subr.mxu0 0.0
      %244 = vmatpush1.msra.mxu0 0.0
      %245 = vmatprep.subr.mxu0 0.0
      %246 = vmatpush1.msra.mxu0 0.0
      %247 = vmatprep.subr.mxu0 0.0
      %248 = vmatpush1.msra.mxu0 0.0
      %249 = vmatprep.subr.mxu0 0.0
      %250 = vmatpush1.msra.mxu0 0.0
      %251 = vmatprep.subr.mxu0 0.0
      %252 = vmatpush1.msra.mxu0 0.0
      %253 = vmatprep.subr.mxu0 0.0
      %254 = vmatpush1.msra.mxu0 0.0
      %255 = vmatprep.subr.mxu0 0.0
      %256 = vmatpush1.msra.mxu0 0.0
      %257 = vmatprep.subr.mxu0 0.0
      %258 = vmatpush1.msra.mxu0 0.0
      %259 = vmatprep.subr.mxu0 0.0
      %260 = vmatpush1.msra.mxu0 0.0
      %261 = vmatprep.subr.mxu0 0.0
      %262 = vmatpush1.msra.mxu0 0.0
      %263 = vmatprep.subr.mxu0 0.0
      %264 = vmatpush1.msra.mxu0 0.0
      %265 = vmatprep.subr.mxu0 0.0
      %266 = vmatpush1.msra.mxu0 0.0
      %267 = vmatprep.subr.mxu0 0.0
      %268 = vmatpush1.msra.mxu0 0.0
      %269 = vmatprep.subr.mxu0 0.0
      %270 = vmatpush1.msra.mxu0 0.0
      %271 = vmatprep.mubr.f32.mxu0 0.0
      %272 = vmatmul.mubr.f32.gmra.mrb[0].mxu0 %v185
      %v273 = vpop.f32.mrb[0].mxu0
      %v274 = vadd.f32 0.0, %v273
      %v275 = vpop.f32.mrb[0].mxu0
      %276 = vmatprep.mubr.f32.mxu0 0.0
      %277 = vmatmul.mubr.f32.gmra.mrb[0].mxu0 %v186
      %v278 = vpop.f32.mrb[0].mxu0
      %v279 = vadd.f32 0.0, %v278
      %v280 = vpop.f32.mrb[0].mxu0
      %281 = vmatprep.mubr.f32.mxu0 0.0
      %282 = vmatmul.mubr.f32.gmra.mrb[0].mxu0 %v187
      %v283 = vpop.f32.mrb[0].mxu0
      %v284 = vadd.f32 0.0, %v283
      %v285 = vpop.f32.mrb[0].mxu0
      %286 = vmatprep.mubr.f32.mxu0 0.0
      %287 = vmatmul.mubr.f32.gmra.mrb[0].mxu0 %v188
      %v288 = vpop.f32.mrb[0].mxu0
      %v289 = vadd.f32 0.0, %v288
      %v290 = vpop.f32.mrb[0].mxu0
      %291 = vmatprep.mubr.f32.mxu0 0.0
      %292 = vmatmul.mubr.f32.gmra.mrb[0].mxu0 %v189
      %v293 = vpop.f32.mrb[0].mxu0
      %v294 = vadd.f32 0.0, %v293
      %v295 = vpop.f32.mrb[0].mxu0
      %296 = vmatprep.mubr.f32.mxu0 0.0
      %297 = vmatmul.mubr.f32.gmra.mrb[0].mxu0 %v190
      %v298 = vpop.f32.mrb[0].mxu0
      %v299 = vadd.f32 0.0, %v298
      %v300 = vpop.f32.mrb[0].mxu0
      %301 = vdwg.mxu0
      %vm302 = vcmask 523264
      %303 = vst.msk [vmem:[%s179] sm:$0xff] %vm302, %v274
      %304 = vst.msk [vmem:[%s179 + $0x8] sm:$0xff] %vm302, %v279
      %305 = vst.msk [vmem:[%s179 + $0x10] sm:$0xff] %vm302, %v284
      %306 = vst.msk [vmem:[%s179 + $0x18] sm:$0xff] %vm302, %v289
      %307 = vst.msk [vmem:[%s179 + $0x20] sm:$0xff] %vm302, %v294
      %308 = vst.msk [vmem:[%s179 + $0x28] sm:$0xff] %vm302, %v299
      %v309 = vsel %vm302, %v274, 0.0
      %v310 = vsel %vm302, %v279, 0.0
      %v311 = vadd.f32 %v309, %v310
      %v312 = vsel %vm302, %v284, 0.0
      %v313 = vadd.f32 %v311, %v312
      %v314 = vsel %vm302, %v289, 0.0
      %v315 = vadd.f32 %v313, %v314
      %v316 = vsel %vm302, %v294, 0.0
      %v317 = vadd.f32 %v315, %v316
      %v318 = vsel %vm302, %v299, 0.0
      %v319 = vadd.f32 %v317, %v318
      %v320 = vrot.slane %v319, 4
      %v321 = vadd.f32 %v319, %v320
      %v322 = vrot.slane %v321, 2
      %v323 = vadd.f32 %v321, %v322
      %v324 = vrot.slane %v323, 1
      %v325 = vadd.f32 %v323, %v324
      %v326 = vmul.f32 %v274, %v274
      %v327 = vmul.f32 %v279, %v279
      %v328 = vmul.f32 %v284, %v284
      %v329 = vmul.f32 %v289, %v289
      %v330 = vmul.f32 %v294, %v294
      %v331 = vmul.f32 %v299, %v299
      %v332 = vsel %vm302, %v326, 0.0
      %v333 = vsel %vm302, %v327, 0.0
      %v334 = vadd.f32 %v332, %v333
      %v335 = vsel %vm302, %v328, 0.0
      %v336 = vadd.f32 %v334, %v335
      %v337 = vsel %vm302, %v329, 0.0
      %v338 = vadd.f32 %v336, %v337
      %v339 = vsel %vm302, %v330, 0.0
      %v340 = vadd.f32 %v338, %v339
      %v341 = vsel %vm302, %v331, 0.0
      %v342 = vadd.f32 %v340, %v341
      %v343 = vrot.slane %v342, 4
      %v344 = vadd.f32 %v342, %v343
      %v345 = vrot.slane %v344, 2
      %v346 = vadd.f32 %v344, %v345
      %v347 = vrot.slane %v346, 1
      %v348 = vadd.f32 %v346, %v347
      %vm349 = vcmask 1040384
      %v350 = vsel %vm349, %v325, %v348
      %vm351 = vcmask 517120
      %352 = vst.msk [vmem:[%s184] sm:$0x3] %vm351, %v350
      %s353 = smul.u32 6, %s15
      %p354 = scmp.lt.s32.totalorder %s353, 11
      %s355 = scalar_select %p354, %s353, 11
      %s356 = smul.addr %s355, 8
      %s357 = scalar_lea.vmem %s2, %s356
      %p358 = scmp.lt.s32.totalorder %s15, 1
      %s359 = scalar_select %p358, %s15, 1
      %s360 = smul.addr %s359, 2
      %s361 = scalar_lea.vmem %s3, %s360
      // Predicated region
      $region29: #{outblock_forward.2} parent=27 // pred_check
        %p362 = pneg %p80
      $region30: #{outblock_forward.2} parent=27 // pred_check_branch
        %364 = sbr.rel (%p362) target = $region32
      $region31: #{outblock_forward.2} parent=27 // pred_region
        %s365 = smul.u32 6, %s15
      $region32: #{outblock_forward.2} parent=27 // pred_fallthru
        _
      // Predicated region
      $region33: #{outblock_forward.2} parent=27 // pred_check
        %p366 = pneg %p106
      $region34: #{outblock_forward.2} parent=27 // pred_check_branch
        %368 = sbr.rel (%p366) target = $region36
      $region35: #{outblock_forward.2} parent=27 // pred_region
        _
      $region36: #{outblock_forward.2} parent=27 // pred_fallthru
        _
    $region28: #{outblock_forward.2} parent=5 // pred_fallthru
      _
    %p369 = scmp.le.s32.totalorder 2, %s10
    // Predicated region
    $region37: #{outblock_forward.2} parent=5 // pred_check
      %p370 = pneg %p369
    $region38: #{outblock_forward.2} parent=5 // pred_check_branch
      %372 = sbr.rel (%p370) target = $region40
    $region39: #{outblock_forward.2} parent=5 // pred_region
      %s373 = ssub.s32 %s10, 2
      // Predicated region
      $region41: #{outblock_forward.2} parent=39 // pred_check
        %p374 = pneg %p86
      $region42: #{outblock_forward.2} parent=39 // pred_check_branch
        %376 = sbr.rel (%p374) target = $region44
      $region43: #{outblock_forward.2} parent=39 // pred_region
        %s377 = smul.u32 6, %s16
        %p378 = scmp.lt.s32.totalorder %s377, 11
        %s379 = scalar_select %p378, %s377, 11
        %s380 = smul.addr %s379, 8
        %s381 = scalar_lea.vmem %s2, %s380
      $region44: #{outblock_forward.2} parent=39 // pred_fallthru
        _
      // Predicated region
      $region45: #{outblock_forward.2} parent=39 // pred_check
        %p382 = pneg %p112
      $region46: #{outblock_forward.2} parent=39 // pred_check_branch
        %384 = sbr.rel (%p382) target = $region48
      $region47: #{outblock_forward.2} parent=39 // pred_region
        %p385 = scmp.lt.s32.totalorder %s16, 1
        %s386 = scalar_select %p385, %s16, 1
        %s387 = smul.addr %s386, 2
        %s388 = scalar_lea.vmem %s3, %s387
      $region48: #{outblock_forward.2} parent=39 // pred_fallthru
        _
    $region40: #{outblock_forward.2} parent=5 // pred_fallthru
      _
  $region6: #{outblock_forward.2} parent=0 // loop_footer
    %s14 = sadd.s32 1, %s10
  $region7: #{outblock_forward.2} parent=0 // loop_footer_branch
    %9 = sbr.rel target = $region3
  $region8: #{outblock_forward.2} parent=0 // loop_exit
    _

// kernel: outblock_forward.3
$region0: #{outblock_forward.3}
  #allocation0 [shape = 'u32[]', space=smem, size = 0x4, offset = 0x4, fixed_abs, tag = 'smem constant byte address 0x4 - core index']
  #allocation1 [shape = 'u32[144,128]{1,0:T(1,128)}', space=vmem, size = 0x12000, scoped, tag = 'internal scratch']
  %s0 = inlined_call_operand.vmem [shape: f32[96,64], index: 0, kind: input, shape index: {}]
  %s1 = inlined_call_operand.vmem [shape: f32[8,64], index: 1, kind: input, shape index: {}]
  %s2 = inlined_call_operand.vmem [shape: f32[64,1536], index: 2, kind: input, shape index: {}]
  %s3 = inlined_call_operand.vmem [shape: f32[64,384], index: 3, kind: input, shape index: {}]
  %s4 = inlined_call_operand.vmem [shape: f32[2,1,8], index: 4, kind: output, shape index: {}]
  %s5 = sld [smem:[#allocation0]]
  $region49: #{outblock_forward.3} parent=0
    _
  %s7 = ssub.s32 1, %s5
  %s8 = scalar_select 0, %s7, %s5
  loop: start=0, step=1, limit=4
  $region2: #{outblock_forward.3} parent=0 // loop_pre_header
    _
  $region3: #{outblock_forward.3} parent=0 // loop_header
    %s10 = sphi 0, %s14
    %p11 = scmp.ge.s32.totalorder %s10, 4
    %s20 = sphi 0, %s22
    %s23 = sphi 0, %s20
    %s24 = sphi 0, %s23
    %s40 = sphi 0, %s24
    %s44 = sphi 0, %s44
    %s46 = sphi 0, %s44
    %s47 = sphi 0, %s46
    %s61 = sphi 0, %s47
    %s65 = sphi 0, %s65
    %s67 = sphi 0, %s65
    %s68 = sphi 0, %s67
    %s82 = sphi 0, %s68
    %s86 = sphi 0, %s86
    %s88 = sphi 0, %s86
    %s89 = sphi 0, %s88
    %s103 = sphi 0, %s89
    %s109 = sphi 0, %s111
    %s112 = sphi 0, %s109
    %s113 = sphi 0, %s112
    %s129 = sphi 0, %s113
  $region4: #{outblock_forward.3} parent=0 // loop_header_branch
    %13 = sbr.rel (%p11) target = $region8
  $region5: #{outblock_forward.3} parent=0 // loop_body
    %s15 = ssub.s32 %s10, 1
    %s16 = ssub.s32 %s10, 2
    %s17 = sadd.s32 %s10, 1
    %s18 = ssub.s32 %s10, %s17
    %p19 = scmp.eq.s32.totalorder %s18, 0
    %s21 = sadd.s32 %s20, 1
    %s22 = scalar_select %p19, %s20, %s21
    %p25 = pneg %p19
    %p26 = scmp.eq.s32.totalorder %s10, 1
    %p27 = por %p25, %p26
    %p28 = scmp.ne.s32.totalorder %s20, %s23
    %p29 = scmp.eq.s32.totalorder %s10, 0
    %p30 = por %p28, %p29
    %p31 = scmp.ne.s32.totalorder %s20, %s23
    %p32 = scmp.eq.s32.totalorder %s15, 1
    %p33 = por %p31, %p32
    %p34 = scmp.ne.s32.totalorder %s23, %s24
    %p35 = scmp.eq.s32.totalorder %s15, 0
    %p36 = por %p34, %p35
    %p37 = scmp.ne.s32.totalorder %s23, %s24
    %p38 = scmp.eq.s32.totalorder %s16, 1
    %p39 = por %p37, %p38
    %p41 = scmp.ne.s32.totalorder %s24, %s40
    %p42 = scmp.eq.s32.totalorder %s16, 0
    %p43 = por %p41, %p42
    %s45 = sadd.s32 %s44, 1
    %p48 = scmp.eq.s32.totalorder %s10, 1
    %p49 = scmp.ne.s32.totalorder %s44, %s46
    %p50 = scmp.eq.s32.totalorder %s10, 0
    %p51 = por %p49, %p50
    %p52 = scmp.ne.s32.totalorder %s44, %s46
    %p53 = scmp.eq.s32.totalorder %s15, 1
    %p54 = por %p52, %p53
    %p55 = scmp.ne.s32.totalorder %s46, %s47
    %p56 = scmp.eq.s32.totalorder %s15, 0
    %p57 = por %p55, %p56
    %p58 = scmp.ne.s32.totalorder %s46, %s47
    %p59 = scmp.eq.s32.totalorder %s16, 1
    %p60 = por %p58, %p59
    %p62 = scmp.ne.s32.totalorder %s47, %s61
    %p63 = scmp.eq.s32.totalorder %s16, 0
    %p64 = por %p62, %p63
    %s66 = sadd.s32 %s65, 1
    %p69 = scmp.eq.s32.totalorder %s10, 1
    %p70 = scmp.ne.s32.totalorder %s65, %s67
    %p71 = scmp.eq.s32.totalorder %s10, 0
    %p72 = por %p70, %p71
    %p73 = scmp.ne.s32.totalorder %s65, %s67
    %p74 = scmp.eq.s32.totalorder %s15, 1
    %p75 = por %p73, %p74
    %p76 = scmp.ne.s32.totalorder %s67, %s68
    %p77 = scmp.eq.s32.totalorder %s15, 0
    %p78 = por %p76, %p77
    %p79 = scmp.ne.s32.totalorder %s67, %s68
    %p80 = scmp.eq.s32.totalorder %s16, 1
    %p81 = por %p79, %p80
    %p83 = scmp.ne.s32.totalorder %s68, %s82
    %p84 = scmp.eq.s32.totalorder %s16, 0
    %p85 = por %p83, %p84
    %s87 = sadd.s32 %s86, 1
    %p90 = scmp.eq.s32.totalorder %s10, 1
    %p91 = scmp.ne.s32.totalorder %s86, %s88
    %p92 = scmp.eq.s32.totalorder %s10, 0
    %p93 = por %p91, %p92
    %p94 = scmp.ne.s32.totalorder %s86, %s88
    %p95 = scmp.eq.s32.totalorder %s15, 1
    %p96 = por %p94, %p95
    %p97 = scmp.ne.s32.totalorder %s88, %s89
    %p98 = scmp.eq.s32.totalorder %s15, 0
    %p99 = por %p97, %p98
    %p100 = scmp.ne.s32.totalorder %s88, %s89
    %p101 = scmp.eq.s32.totalorder %s16, 1
    %p102 = por %p100, %p101
    %p104 = scmp.ne.s32.totalorder %s89, %s103
    %p105 = scmp.eq.s32.totalorder %s16, 0
    %p106 = por %p104, %p105
    %s107 = ssub.s32 %s10, %s17
    %p108 = scmp.eq.s32.totalorder %s107, 0
    %s110 = sadd.s32 %s109, 1
    %s111 = scalar_select %p108, %s109, %s110
    %p114 = pneg %p108
    %p115 = scmp.eq.s32.totalorder %s10, 1
    %p116 = por %p114, %p115
    %p117 = scmp.ne.s32.totalorder %s109, %s112
    %p118 = scmp.eq.s32.totalorder %s10, 0
    %p119 = por %p117, %p118
    %p120 = scmp.ne.s32.totalorder %s109, %s112
    %p121 = scmp.eq.s32.totalorder %s15, 1
    %p122 = por %p120, %p121
    %p123 = scmp.ne.s32.totalorder %s112, %s113
    %p124 = scmp.eq.s32.totalorder %s15, 0
    %p125 = por %p123, %p124
    %p126 = scmp.ne.s32.totalorder %s112, %s113
    %p127 = scmp.eq.s32.totalorder %s16, 1
    %p128 = por %p126, %p127
    %p130 = scmp.ne.s32.totalorder %s113, %s129
    %p131 = scmp.eq.s32.totalorder %s16, 0
    %p132 = por %p130, %p131
    %p133 = scmp.le.s32.totalorder 1, %s10
    %p134 = scmp.lt.s32.totalorder %s10, 3
    %p135 = pnand %p133, %p134
    %p136 = pneg %p135
    // Predicated region
    $region9: #{outblock_forward.3} parent=5 // pred_check
      _
    $region10: #{outblock_forward.3} parent=5 // pred_check_branch
      %138 = sbr.rel (%p135) target = $region12
    $region11: #{outblock_forward.3} parent=5 // pred_region
      %s139 = ssub.s32 %s10, 1
      // Predicated region
      $region13: #{outblock_forward.3} parent=11 // pred_check
        %p140 = pneg %p57
      $region14: #{outblock_forward.3} parent=11 // pred_check_branch
        %142 = sbr.rel (%p140) target = $region16
      $region15: #{outblock_forward.3} parent=11 // pred_region
        _
      $region16: #{outblock_forward.3} parent=11 // pred_fallthru
        _
      // Predicated region
      $region17: #{outblock_forward.3} parent=11 // pred_check
        %p143 = pneg %p78
      $region18: #{outblock_forward.3} parent=11 // pred_check_branch
        %145 = sbr.rel (%p143) target = $region20
      $region19: #{outblock_forward.3} parent=11 // pred_region
        _
      $region20: #{outblock_forward.3} parent=11 // pred_fallthru
        _
      // Predicated region
      $region21: #{outblock_forward.3} parent=11 // pred_check
        %p146 = pneg %p99
      $region22: #{outblock_forward.3} parent=11 // pred_check_branch
        %148 = sbr.rel (%p146) target = $region24
      $region23: #{outblock_forward.3} parent=11 // pred_region
        _
      $region24: #{outblock_forward.3} parent=11 // pred_fallthru
        _
    $region12: #{outblock_forward.3} parent=5 // pred_fallthru
      _
    %p149 = scmp.lt.s32.totalorder %s10, 2
    // Predicated region
    $region25: #{outblock_forward.3} parent=5 // pred_check
      %p150 = pneg %p149
    $region26: #{outblock_forward.3} parent=5 // pred_check_branch
      %152 = sbr.rel (%p150) target = $region28
    $region27: #{outblock_forward.3} parent=5 // pred_region
      // Predicated region
      $region29: #{outblock_forward.3} parent=27 // pred_check
        %p153 = pneg %p30
      $region30: #{outblock_forward.3} parent=27 // pred_check_branch
        %155 = sbr.rel (%p153) target = $region32
      $region31: #{outblock_forward.3} parent=27 // pred_region
        %s156 = smul.u32 6, %s10
        %p157 = scmp.lt.s32.totalorder %s156, 11
        %s158 = scalar_select %p157, %s156, 11
        %s159 = smul.addr %s158, 8
        %s160 = scalar_lea.vmem %s0, %s159
        %s161 = smul.u32 6, %s10
      $region32: #{outblock_forward.3} parent=27 // pred_fallthru
        _
    $region28: #{outblock_forward.3} parent=5 // pred_fallthru
      _
    %p162 = scmp.le.s32.totalorder 1, %s10
    %p163 = scmp.lt.s32.totalorder %s10, 3
    %p164 = pnand %p162, %p163
    %p165 = pneg %p164
    // Predicated region
    $region33: #{outblock_forward.3} parent=5 // pred_check
      _
    $region34: #{outblock_forward.3} parent=5 // pred_check_branch
      %167 = sbr.rel (%p164) target = $region36
    $region35: #{outblock_forward.3} parent=5 // pred_region
      %s168 = ssub.s32 %s10, 1
      %s169 = smul.u32 6, %s15
      %p170 = scmp.lt.s32.totalorder %s169, 11
      %s171 = scalar_select %p170, %s169, 11
      %s172 = smul.addr %s171, 8
      %s173 = scalar_lea.vmem %s0, %s172
      %p174 = pneg %p36
      %p175 = pneg %p33
      %p176 = pneg %p57
      %p177 = pneg %p54
      %p178 = pneg %p78
      %p179 = pneg %p75
      %p180 = pneg %p99
      %p181 = pneg %p96
      %p182 = pneg %p125
      %p183 = pneg %p122
      %p184 = scmp.lt.s32.totalorder %s15, 1
      %s185 = scalar_select %p184, %s15, 1
      %s186 = scalar_lea.vmem %s4, %s185
      %s187 = smul.u32 6, %s15
      %p188 = scmp.lt.s32.totalorder %s187, 11
      %s189 = scalar_select %p188, %s187, 11
      %s190 = smul.addr %s189, 8
      %s191 = scalar_lea.vmem %s0, %s190
      %s192 = smul.u32 6, %s15
      %p193 = scmp.lt.s32.totalorder %s15, 1
      %s194 = scalar_select %p193, %s15, 1
      %s195 = scalar_lea.vmem %s4, %s194
      %v196 = vld [vmem:[%s191] sm:$0xff]
      %v197 = vld [vmem:[%s191 + $0x8] sm:$0xff]
      %v198 = vld [vmem:[%s191 + $0x10] sm:$0xff]
      %v199 = vld [vmem:[%s191 + $0x18] sm:$0xff]
      %v200 = vld [vmem:[%s191 + $0x20] sm:$0xff]
      %v201 = vld [vmem:[%s191 + $0x28] sm:$0xff]
      %v202 = vld [vmem:[%s1] sm:$0x1]
      %v203 = vld [vmem:[%s1 + $0x1] sm:$0x1]
      %v204 = vlaneseq
      %v205 = vshrl.u32 %v204, 7
      %v206 = vsub.s32 0, %v205
      %v207 = vrot.slane %v202, %v206
      %v208 = vmul.f32 %v196, %v207
      %v209 = vmul.f32 %v197, %v207
      %v210 = vmul.f32 %v198, %v207
      %v211 = vmul.f32 %v199, %v207
      %v212 = vmul.f32 %v200, %v207
      %v213 = vmul.f32 %v201, %v207
      %v214 = vlaneseq
      %v215 = vshrl.u32 %v214, 7
      %v216 = vsub.s32 0, %v215
      %v217 = vrot.slane %v203, %v216
      %v218 = vadd.f32 %v208, %v217
      %v219 = vadd.f32 %v209, %v217
      %v220 = vadd.f32 %v210, %v217
      %v221 = vadd.f32 %v211, %v217
      %v222 = vadd.f32 %v212, %v217
      %v223 = vadd.f32 %v213, %v217
      %v224 = vmax.f32 %v218, 0.0
      %v225 = vmax.f32 %v219, 0.0
      %v226 = vmax.f32 %v220, 0.0
      %v227 = vmax.f32 %v221, 0.0
      %v228 = vmax.f32 %v222, 0.0
      %v229 = vmax.f32 %v223, 0.0
      %v230 = vld [vmem:[%s2] sm:$0xff]
      %v231 = vld [vmem:[%s2 + $0x8] sm:$0xff]
      %v232 = vld [vmem:[%s2 + $0x10] sm:$0xff]
      %v233 = vld [vmem:[%s2 + $0x18] sm:$0xff]
      %v234 = vld [vmem:[%s2 + $0x20] sm:$0xff]
      %v235 = vld [vmem:[%s2 + $0x28] sm:$0xff]
      %v236 = vld [vmem:[%s2 + $0x30] sm:$0xff]
      %v237 = vld [vmem:[%s2 + $0x38] sm:$0xff]
      %v238 = vld [vmem:[%s2 + $0x40] sm:$0xff]
      %v239 = vld [vmem:[%s2 + $0x48] sm:$0xff]
      %v240 = vld [vmem:[%s2 + $0x50] sm:$0xff]
      %v241 = vld [vmem:[%s2 + $0x58] sm:$0xff]
      %v242 = vld [vmem:[%s2 + $0x60] sm:$0xff]
      %v243 = vld [vmem:[%s2 + $0x68] sm:$0xff]
      %v244 = vld [vmem:[%s2 + $0x70] sm:$0xff]
      %v245 = vld [vmem:[%s2 + $0x78] sm:$0xff]
      %v246 = vld [vmem:[%s2 + $0x80] sm:$0xff]
      %v247 = vld [vmem:[%s2 + $0x88] sm:$0xff]
      %v248 = vld [vmem:[%s2 + $0x90] sm:$0xff]
      %v249 = vld [vmem:[%s2 + $0x98] sm:$0xff]
      %v250 = vld [vmem:[%s2 + $0xa0] sm:$0xff]
      %v251 = vld [vmem:[%s2 + $0xa8] sm:$0xff]
      %v252 = vld [vmem:[%s2 + $0xb0] sm:$0xff]
      %v253 = vld [vmem:[%s2 + $0xb8] sm:$0xff]
      %v254 = vld [vmem:[%s2 + $0xc0] sm:$0xff]
      %v255 = vld [vmem:[%s2 + $0xc8] sm:$0xff]
      %v256 = vld [vmem:[%s2 + $0xd0] sm:$0xff]
      %v257 = vld [vmem:[%s2 + $0xd8] sm:$0xff]
      %v258 = vld [vmem:[%s2 + $0xe0] sm:$0xff]
      %v259 = vld [vmem:[%s2 + $0xe8] sm:$0xff]
      %v260 = vld [vmem:[%s2 + $0xf0] sm:$0xff]
      %v261 = vld [vmem:[%s2 + $0xf8] sm:$0xff]
      %v262 = vld [vmem:[%s2 + $0x100] sm:$0xff]
      %v263 = vld [vmem:[%s2 + $0x108] sm:$0xff]
      %v264 = vld [vmem:[%s2 + $0x110] sm:$0xff]
      %v265 = vld [vmem:[%s2 + $0x118] sm:$0xff]
      %v266 = vld [vmem:[%s2 + $0x120] sm:$0xff]
      %v267 = vld [vmem:[%s2 + $0x128] sm:$0xff]
      %v268 = vld [vmem:[%s2 + $0x130] sm:$0xff]
      %v269 = vld [vmem:[%s2 + $0x138] sm:$0xff]
      %v270 = vld [vmem:[%s2 + $0x140] sm:$0xff]
      %v271 = vld [vmem:[%s2 + $0x148] sm:$0xff]
      %v272 = vld [vmem:[%s2 + $0x150] sm:$0xff]
      %v273 = vld [vmem:[%s2 + $0x158] sm:$0xff]
      %v274 = vld [vmem:[%s2 + $0x160] sm:$0xff]
      %v275 = vld [vmem:[%s2 + $0x168] sm:$0xff]
      %v276 = vld [vmem:[%s2 + $0x170] sm:$0xff]
      %v277 = vld [vmem:[%s2 + $0x178] sm:$0xff]
      %v278 = vld [vmem:[%s2 + $0x180] sm:$0xff]
      %v279 = vld [vmem:[%s2 + $0x188] sm:$0xff]
      %v280 = vld [vmem:[%s2 + $0x190] sm:$0xff]
      %v281 = vld [vmem:[%s2 + $0x198] sm:$0xff]
      %v282 = vld [vmem:[%s2 + $0x1a0] sm:$0xff]
      %v283 = vld [vmem:[%s2 + $0x1a8] sm:$0xff]
      %v284 = vld [vmem:[%s2 + $0x1b0] sm:$0xff]
      %v285 = vld [vmem:[%s2 + $0x1b8] sm:$0xff]
      %v286 = vld [vmem:[%s2 + $0x1c0] sm:$0xff]
      %v287 = vld [vmem:[%s2 + $0x1c8] sm:$0xff]
      %v288 = vld [vmem:[%s2 + $0x1d0] sm:$0xff]
      %v289 = vld [vmem:[%s2 + $0x1d8] sm:$0xff]
      %v290 = vld [vmem:[%s2 + $0x1e0] sm:$0xff]
      %v291 = vld [vmem:[%s2 + $0x1e8] sm:$0xff]
      %v292 = vld [vmem:[%s2 + $0x1f0] sm:$0xff]
      %v293 = vld [vmem:[%s2 + $0x1f8] sm:$0xff]
      %v294 = vld [vmem:[%s2 + $0x200] sm:$0xff]
      %v295 = vld [vmem:[%s2 + $0x208] sm:$0xff]
      %v296 = vld [vmem:[%s2 + $0x210] sm:$0xff]
      %v297 = vld [vmem:[%s2 + $0x218] sm:$0xff]
      %v298 = vld [vmem:[%s2 + $0x220] sm:$0xff]
      %v299 = vld [vmem:[%s2 + $0x228] sm:$0xff]
      %v300 = vld [vmem:[%s2 + $0x230] sm:$0xff]
      %v301 = vld [vmem:[%s2 + $0x238] sm:$0xff]
      %v302 = vld [vmem:[%s2 + $0x240] sm:$0xff]
      %v303 = vld [vmem:[%s2 + $0x248] sm:$0xff]
      %v304 = vld [vmem:[%s2 + $0x250] sm:$0xff]
      %v305 = vld [vmem:[%s2 + $0x258] sm:$0xff]
      %v306 = vld [vmem:[%s2 + $0x260] sm:$0xff]
      %v307 = vld [vmem:[%s2 + $0x268] sm:$0xff]
      %v308 = vld [vmem:[%s2 + $0x270] sm:$0xff]
      %v309 = vld [vmem:[%s2 + $0x278] sm:$0xff]
      %v310 = vld [vmem:[%s2 + $0x280] sm:$0xff]
      %v311 = vld [vmem:[%s2 + $0x288] sm:$0xff]
      %v312 = vld [vmem:[%s2 + $0x290] sm:$0xff]
      %v313 = vld [vmem:[%s2 + $0x298] sm:$0xff]
      %v314 = vld [vmem:[%s2 + $0x2a0] sm:$0xff]
      %v315 = vld [vmem:[%s2 + $0x2a8] sm:$0xff]
      %v316 = vld [vmem:[%s2 + $0x2b0] sm:$0xff]
      %v317 = vld [vmem:[%s2 + $0x2b8] sm:$0xff]
      %v318 = vld [vmem:[%s2 + $0x2c0] sm:$0xff]
      %v319 = vld [vmem:[%s2 + $0x2c8] sm:$0xff]
      %v320 = vld [vmem:[%s2 + $0x2d0] sm:$0xff]
      %v321 = vld [vmem:[%s2 + $0x2d8] sm:$0xff]
      %v322 = vld [vmem:[%s2 + $0x2e0] sm:$0xff]
      %v323 = vld [vmem:[%s2 + $0x2e8] sm:$0xff]
      %v324 = vld [vmem:[%s2 + $0x2f0] sm:$0xff]
      %v325 = vld [vmem:[%s2 + $0x2f8] sm:$0xff]
      %vm326 = vcmask 523264
      %v328 = vsel %vm326, %v224, 0
      %v331 = vsel %vm326, %v225, 0
      %v334 = vsel %vm326, %v226, 0
      %v337 = vsel %vm326, %v227, 0
      %v340 = vsel %vm326, %v228, 0
      %v343 = vsel %vm326, %v229, 0
      %345 = vmatprep.subr.mxu0 %v231
      %346 = vmatpush1.msra.mxu0 %v230
      %347 = vmatprep.subr.mxu0 %v243
      %348 = vmatpush1.msra.mxu0 %v242
      %349 = vmatprep.subr.mxu0 %v255
      %350 = vmatpush1.msra.mxu0 %v254
      %351 = vmatprep.subr.mxu0 %v267
      %352 = vmatpush1.msra.mxu0 %v266
      %353 = vmatprep.subr.mxu0 %v279
      %354 = vmatpush1.msra.mxu0 %v278
      %355 = vmatprep.subr.mxu0 %v291
      %356 = vmatpush1.msra.mxu0 %v290
      %357 = vmatprep.subr.mxu0 %v303
      %358 = vmatpush1.msra.mxu0 %v302
      %359 = vmatprep.subr.mxu0 %v315
      %360 = vmatpush1.msra.mxu0 %v314
      %361 = vmatprep.subr.mxu0 0.0
      %362 = vmatpush1.msra.mxu0 0.0
      %363 = vmatprep.subr.mxu0 0.0
      %364 = vmatpush1.msra.mxu0 0.0
      %365 = vmatprep.subr.mxu0 0.0
      %366 = vmatpush1.msra.mxu0 0.0
      %367 = vmatprep.subr.mxu0 0.0
      %368 = vmatpush1.msra.mxu0 0.0
      %369 = vmatprep.subr.mxu0 0.0
      %370 = vmatpush1.msra.mxu0 0.0
      %371 = vmatprep.subr.mxu0 0.0
      %372 = vmatpush1.msra.mxu0 0.0
      %373 = vmatprep.subr.mxu0 0.0
      %374 = vmatpush1.msra.mxu0 0.0
      %375 = vmatprep.subr.mxu0 0.0
      %376 = vmatpush1.msra.mxu0 0.0
      %377 = vmatprep.subr.mxu0 0.0
      %378 = vmatpush1.msra.mxu0 0.0
      %379 = vmatprep.subr.mxu0 0.0
      %380 = vmatpush1.msra.mxu0 0.0
      %381 = vmatprep.subr.mxu0 0.0
      %382 = vmatpush1.msra.mxu0 0.0
      %383 = vmatprep.subr.mxu0 0.0
      %384 = vmatpush1.msra.mxu0 0.0
      %385 = vmatprep.subr.mxu0 0.0
      %386 = vmatpush1.msra.mxu0 0.0
      %387 = vmatprep.subr.mxu0 0.0
      %388 = vmatpush1.msra.mxu0 0.0
      %389 = vmatprep.subr.mxu0 0.0
      %390 = vmatpush1.msra.mxu0 0.0
      %391 = vmatprep.subr.mxu0 0.0
      %392 = vmatpush1.msra.mxu0 0.0
      %393 = vmatprep.subr.mxu0 0.0
      %394 = vmatpush1.msra.mxu0 0.0
      %395 = vmatprep.subr.mxu0 0.0
      %396 = vmatpush1.msra.mxu0 0.0
      %397 = vmatprep.subr.mxu0 0.0
      %398 = vmatpush1.msra.mxu0 0.0
      %399 = vmatprep.subr.mxu0 0.0
      %400 = vmatpush1.msra.mxu0 0.0
      %401 = vmatprep.subr.mxu0 0.0
      %402 = vmatpush1.msra.mxu0 0.0
      %403 = vmatprep.subr.mxu0 0.0
      %404 = vmatpush1.msra.mxu0 0.0
      %405 = vmatprep.subr.mxu0 0.0
      %406 = vmatpush1.msra.mxu0 0.0
      %407 = vmatprep.subr.mxu0 0.0
      %408 = vmatpush1.msra.mxu0 0.0
      %409 = vmatprep.mubr.f32.mxu0 0.0
      %410 = vmatmul.mubr.f32.gmra.mrb[0].mxu0 %v328
      %v411 = vpop.f32.mrb[0].mxu0
      %v412 = vadd.f32 0.0, %v411
      %v413 = vpop.f32.mrb[0].mxu0
      %v414 = vadd.f32 0.0, %v413
      %415 = vmatprep.mubr.f32.mxu0 0.0
      %416 = vmatmul.mubr.f32.gmra.mrb[0].mxu0 %v331
      %v417 = vpop.f32.mrb[0].mxu0
      %v418 = vadd.f32 0.0, %v417
      %v419 = vpop.f32.mrb[0].mxu0
      %v420 = vadd.f32 0.0, %v419
      %421 = vmatprep.mubr.f32.mxu0 0.0
      %422 = vmatmul.mubr.f32.gmra.mrb[0].mxu0 %v334
      %v423 = vpop.f32.mrb[0].mxu0
      %v424 = vadd.f32 0.0, %v423
      %v425 = vpop.f32.mrb[0].mxu0
      %v426 = vadd.f32 0.0, %v425
      %427 = vmatprep.mubr.f32.mxu0 0.0
      %428 = vmatmul.mubr.f32.gmra.mrb[0].mxu0 %v337
      %v429 = vpop.f32.mrb[0].mxu0
      %v430 = vadd.f32 0.0, %v429
      %v431 = vpop.f32.mrb[0].mxu0
      %v432 = vadd.f32 0.0, %v431
      %433 = vmatprep.mubr.f32.mxu0 0.0
      %434 = vmatmul.mubr.f32.gmra.mrb[0].mxu0 %v340
      %v435 = vpop.f32.mrb[0].mxu0
      %v436 = vadd.f32 0.0, %v435
      %v437 = vpop.f32.mrb[0].mxu0
      %v438 = vadd.f32 0.0, %v437
      %439 = vmatprep.mubr.f32.mxu0 0.0
      %440 = vmatmul.mubr.f32.gmra.mrb[0].mxu0 %v343
      %v441 = vpop.f32.mrb[0].mxu0
      %v442 = vadd.f32 0.0, %v441
      %v443 = vpop.f32.mrb[0].mxu0
      %v444 = vadd.f32 0.0, %v443
      %445 = vdwg.mxu0
      %446 = vmatprep.subr.mxu0 %v233
      %447 = vmatpush1.msra.mxu0 %v232
      %448 = vmatprep.subr.mxu0 %v245
      %449 = vmatpush1.msra.mxu0 %v244
      %450 = vmatprep.subr.mxu0 %v257
      %451 = vmatpush1.msra.mxu0 %v256
      %452 = vmatprep.subr.mxu0 %v269
      %453 = vmatpush1.msra.mxu0 %v268
      %454 = vmatprep.subr.mxu0 %v281
      %455 = vmatpush1.msra.mxu0 %v280
      %456 = vmatprep.subr.mxu0 %v293
      %457 = vmatpush1.msra.mxu0 %v292
      %458 = vmatprep.subr.mxu0 %v305
      %459 = vmatpush1.msra.mxu0 %v304
      %460 = vmatprep.subr.mxu0 %v317
      %461 = vmatpush1.msra.mxu0 %v316
      %462 = vmatprep.subr.mxu0 0.0
      %463 = vmatpush1.msra.mxu0 0.0
      %464 = vmatprep.subr.mxu0 0.0
      %465 = vmatpush1.msra.mxu0 0.0
      %466 = vmatprep.subr.mxu0 0.0
      %467 = vmatpush1.msra.mxu0 0.0
      %468 = vmatprep.subr.mxu0 0.0
      %469 = vmatpush1.msra.mxu0 0.0
      %470 = vmatprep.subr.mxu0 0.0
      %471 = vmatpush1.msra.mxu0 0.0
      %472 = vmatprep.subr.mxu0 0.0
      %473 = vmatpush1.msra.mxu0 0.0
      %474 = vmatprep.subr.mxu0 0.0
      %475 = vmatpush1.msra.mxu0 0.0
      %476 = vmatprep.subr.mxu0 0.0
      %477 = vmatpush1.msra.mxu0 0.0
      %478 = vmatprep.subr.mxu0 0.0
      %479 = vmatpush1.msra.mxu0 0.0
      %480 = vmatprep.subr.mxu0 0.0
      %481 = vmatpush1.msra.mxu0 0.0
      %482 = vmatprep.subr.mxu0 0.0
      %483 = vmatpush1.msra.mxu0 0.0
      %484 = vmatprep.subr.mxu0 0.0
      %485 = vmatpush1.msra.mxu0 0.0
      %486 = vmatprep.subr.mxu0 0.0
      %487 = vmatpush1.msra.mxu0 0.0
      %488 = vmatprep.subr.mxu0 0.0
      %489 = vmatpush1.msra.mxu0 0.0
      %490 = vmatprep.subr.mxu0 0.0
      %491 = vmatpush1.msra.mxu0 0.0
      %492 = vmatprep.subr.mxu0 0.0
      %493 = vmatpush1.msra.mxu0 0.0
      %494 = vmatprep.subr.mxu0 0.0
      %495 = vmatpush1.msra.mxu0 0.0
      %496 = vmatprep.subr.mxu0 0.0
      %497 = vmatpush1.msra.mxu0 0.0
      %498 = vmatprep.subr.mxu0 0.0
      %499 = vmatpush1.msra.mxu0 0.0
      %500 = vmatprep.subr.mxu0 0.0
      %501 = vmatpush1.msra.mxu0 0.0
      %502 = vmatprep.subr.mxu0 0.0
      %503 = vmatpush1.msra.mxu0 0.0
      %504 = vmatprep.subr.mxu0 0.0
      %505 = vmatpush1.msra.mxu0 0.0
      %506 = vmatprep.subr.mxu0 0.0
      %507 = vmatpush1.msra.mxu0 0.0
      %508 = vmatprep.subr.mxu0 0.0
      %509 = vmatpush1.msra.mxu0 0.0
      %510 = vmatprep.mubr.f32.mxu0 0.0
      %511 = vmatmul.mubr.f32.gmra.mrb[0].mxu0 %v328
      %v512 = vpop.f32.mrb[0].mxu0
      %v513 = vadd.f32 0.0, %v512
      %v514 = vpop.f32.mrb[0].mxu0
      %v515 = vadd.f32 0.0, %v514
      %516 = vmatprep.mubr.f32.mxu0 0.0
      %517 = vmatmul.mubr.f32.gmra.mrb[0].mxu0 %v331
      %v518 = vpop.f32.mrb[0].mxu0
      %v519 = vadd.f32 0.0, %v518
      %v520 = vpop.f32.mrb[0].mxu0
      %v521 = vadd.f32 0.0, %v520
      %522 = vmatprep.mubr.f32.mxu0 0.0
      %523 = vmatmul.mubr.f32.gmra.mrb[0].mxu0 %v334
      %v524 = vpop.f32.mrb[0].mxu0
      %v525 = vadd.f32 0.0, %v524
      %v526 = vpop.f32.mrb[0].mxu0
      %v527 = vadd.f32 0.0, %v526
      %528 = vmatprep.mubr.f32.mxu0 0.0
      %529 = vmatmul.mubr.f32.gmra.mrb[0].mxu0 %v337
      %v530 = vpop.f32.mrb[0].mxu0
      %v531 = vadd.f32 0.0, %v530
      %v532 = vpop.f32.mrb[0].mxu0
      %v533 = vadd.f32 0.0, %v532
      %534 = vmatprep.mubr.f32.mxu0 0.0
      %535 = vmatmul.mubr.f32.gmra.mrb[0].mxu0 %v340
      %v536 = vpop.f32.mrb[0].mxu0
      %v537 = vadd.f32 0.0, %v536
      %v538 = vpop.f32.mrb[0].mxu0
      %v539 = vadd.f32 0.0, %v538
      %540 = vmatprep.mubr.f32.mxu0 0.0
      %541 = vmatmul.mubr.f32.gmra.mrb[0].mxu0 %v343
      %v542 = vpop.f32.mrb[0].mxu0
      %v543 = vadd.f32 0.0, %v542
      %v544 = vpop.f32.mrb[0].mxu0
      %v545 = vadd.f32 0.0, %v544
      %546 = vdwg.mxu0
      %547 = vmatprep.subr.mxu0 %v235
      %548 = vmatpush1.msra.mxu0 %v234
      %549 = vmatprep.subr.mxu0 %v247
      %550 = vmatpush1.msra.mxu0 %v246
      %551 = vmatprep.subr.mxu0 %v259
      %552 = vmatpush1.msra.mxu0 %v258
      %553 = vmatprep.subr.mxu0 %v271
      %554 = vmatpush1.msra.mxu0 %v270
      %555 = vmatprep.subr.mxu0 %v283
      %556 = vmatpush1.msra.mxu0 %v282
      %557 = vmatprep.subr.mxu0 %v295
      %558 = vmatpush1.msra.mxu0 %v294
      %559 = vmatprep.subr.mxu0 %v307
      %560 = vmatpush1.msra.mxu0 %v306
      %561 = vmatprep.subr.mxu0 %v319
      %562 = vmatpush1.msra.mxu0 %v318
      %563 = vmatprep.subr.mxu0 0.0
      %564 = vmatpush1.msra.mxu0 0.0
      %565 = vmatprep.subr.mxu0 0.0
      %566 = vmatpush1.msra.mxu0 0.0
      %567 = vmatprep.subr.mxu0 0.0
      %568 = vmatpush1.msra.mxu0 0.0
      %569 = vmatprep.subr.mxu0 0.0
      %570 = vmatpush1.msra.mxu0 0.0
      %571 = vmatprep.subr.mxu0 0.0
      %572 = vmatpush1.msra.mxu0 0.0
      %573 = vmatprep.subr.mxu0 0.0
      %574 = vmatpush1.msra.mxu0 0.0
      %575 = vmatprep.subr.mxu0 0.0
      %576 = vmatpush1.msra.mxu0 0.0
      %577 = vmatprep.subr.mxu0 0.0
      %578 = vmatpush1.msra.mxu0 0.0
      %579 = vmatprep.subr.mxu0 0.0
      %580 = vmatpush1.msra.mxu0 0.0
      %581 = vmatprep.subr.mxu0 0.0
      %582 = vmatpush1.msra.mxu0 0.0
      %583 = vmatprep.subr.mxu0 0.0
      %584 = vmatpush1.msra.mxu0 0.0
      %585 = vmatprep.subr.mxu0 0.0
      %586 = vmatpush1.msra.mxu0 0.0
      %587 = vmatprep.subr.mxu0 0.0
      %588 = vmatpush1.msra.mxu0 0.0
      %589 = vmatprep.subr.mxu0 0.0
      %590 = vmatpush1.msra.mxu0 0.0
      %591 = vmatprep.subr.mxu0 0.0
      %592 = vmatpush1.msra.mxu0 0.0
      %593 = vmatprep.subr.mxu0 0.0
      %594 = vmatpush1.msra.mxu0 0.0
      %595 = vmatprep.subr.mxu0 0.0
      %596 = vmatpush1.msra.mxu0 0.0
      %597 = vmatprep.subr.mxu0 0.0
      %598 = vmatpush1.msra.mxu0 0.0
      %599 = vmatprep.subr.mxu0 0.0
      %600 = vmatpush1.msra.mxu0 0.0
      %601 = vmatprep.subr.mxu0 0.0
      %602 = vmatpush1.msra.mxu0 0.0
      %603 = vmatprep.subr.mxu0 0.0
      %604 = vmatpush1.msra.mxu0 0.0
      %605 = vmatprep.subr.mxu0 0.0
      %606 = vmatpush1.msra.mxu0 0.0
      %607 = vmatprep.subr.mxu0 0.0
      %608 = vmatpush1.msra.mxu0 0.0
      %609 = vmatprep.subr.mxu0 0.0
      %610 = vmatpush1.msra.mxu0 0.0
      %611 = vmatprep.mubr.f32.mxu0 0.0
      %612 = vmatmul.mubr.f32.gmra.mrb[0].mxu0 %v328
      %v613 = vpop.f32.mrb[0].mxu0
      %v614 = vadd.f32 0.0, %v613
      %v615 = vpop.f32.mrb[0].mxu0
      %v616 = vadd.f32 0.0, %v615
      %617 = vmatprep.mubr.f32.mxu0 0.0
      %618 = vmatmul.mubr.f32.gmra.mrb[0].mxu0 %v331
      %v619 = vpop.f32.mrb[0].mxu0
      %v620 = vadd.f32 0.0, %v619
      %v621 = vpop.f32.mrb[0].mxu0
      %v622 = vadd.f32 0.0, %v621
      %623 = vmatprep.mubr.f32.mxu0 0.0
      %624 = vmatmul.mubr.f32.gmra.mrb[0].mxu0 %v334
      %v625 = vpop.f32.mrb[0].mxu0
      %v626 = vadd.f32 0.0, %v625
      %v627 = vpop.f32.mrb[0].mxu0
      %v628 = vadd.f32 0.0, %v627
      %629 = vmatprep.mubr.f32.mxu0 0.0
      %630 = vmatmul.mubr.f32.gmra.mrb[0].mxu0 %v337
      %v631 = vpop.f32.mrb[0].mxu0
      %v632 = vadd.f32 0.0, %v631
      %v633 = vpop.f32.mrb[0].mxu0
      %v634 = vadd.f32 0.0, %v633
      %635 = vmatprep.mubr.f32.mxu0 0.0
      %636 = vmatmul.mubr.f32.gmra.mrb[0].mxu0 %v340
      %v637 = vpop.f32.mrb[0].mxu0
      %v638 = vadd.f32 0.0, %v637
      %v639 = vpop.f32.mrb[0].mxu0
      %v640 = vadd.f32 0.0, %v639
      %641 = vmatprep.mubr.f32.mxu0 0.0
      %642 = vmatmul.mubr.f32.gmra.mrb[0].mxu0 %v343
      %v643 = vpop.f32.mrb[0].mxu0
      %v644 = vadd.f32 0.0, %v643
      %v645 = vpop.f32.mrb[0].mxu0
      %v646 = vadd.f32 0.0, %v645
      %647 = vdwg.mxu0
      %648 = vmatprep.subr.mxu0 %v237
      %649 = vmatpush1.msra.mxu0 %v236
      %650 = vmatprep.subr.mxu0 %v249
      %651 = vmatpush1.msra.mxu0 %v248
      %652 = vmatprep.subr.mxu0 %v261
      %653 = vmatpush1.msra.mxu0 %v260
      %654 = vmatprep.subr.mxu0 %v273
      %655 = vmatpush1.msra.mxu0 %v272
      %656 = vmatprep.subr.mxu0 %v285
      %657 = vmatpush1.msra.mxu0 %v284
      %658 = vmatprep.subr.mxu0 %v297
      %659 = vmatpush1.msra.mxu0 %v296
      %660 = vmatprep.subr.mxu0 %v309
      %661 = vmatpush1.msra.mxu0 %v308
      %662 = vmatprep.subr.mxu0 %v321
      %663 = vmatpush1.msra.mxu0 %v320
      %664 = vmatprep.subr.mxu0 0.0
      %665 = vmatpush1.msra.mxu0 0.0
      %666 = vmatprep.subr.mxu0 0.0
      %667 = vmatpush1.msra.mxu0 0.0
      %668 = vmatprep.subr.mxu0 0.0
      %669 = vmatpush1.msra.mxu0 0.0
      %670 = vmatprep.subr.mxu0 0.0
      %671 = vmatpush1.msra.mxu0 0.0
      %672 = vmatprep.subr.mxu0 0.0
      %673 = vmatpush1.msra.mxu0 0.0
      %674 = vmatprep.subr.mxu0 0.0
      %675 = vmatpush1.msra.mxu0 0.0
      %676 = vmatprep.subr.mxu0 0.0
      %677 = vmatpush1.msra.mxu0 0.0
      %678 = vmatprep.subr.mxu0 0.0
      %679 = vmatpush1.msra.mxu0 0.0
      %680 = vmatprep.subr.mxu0 0.0
      %681 = vmatpush1.msra.mxu0 0.0
      %682 = vmatprep.subr.mxu0 0.0
      %683 = vmatpush1.msra.mxu0 0.0
      %684 = vmatprep.subr.mxu0 0.0
      %685 = vmatpush1.msra.mxu0 0.0
      %686 = vmatprep.subr.mxu0 0.0
      %687 = vmatpush1.msra.mxu0 0.0
      %688 = vmatprep.subr.mxu0 0.0
      %689 = vmatpush1.msra.mxu0 0.0
      %690 = vmatprep.subr.mxu0 0.0
      %691 = vmatpush1.msra.mxu0 0.0
      %692 = vmatprep.subr.mxu0 0.0
      %693 = vmatpush1.msra.mxu0 0.0
      %694 = vmatprep.subr.mxu0 0.0
      %695 = vmatpush1.msra.mxu0 0.0
      %696 = vmatprep.subr.mxu0 0.0
      %697 = vmatpush1.msra.mxu0 0.0
      %698 = vmatprep.subr.mxu0 0.0
      %699 = vmatpush1.msra.mxu0 0.0
      %700 = vmatprep.subr.mxu0 0.0
      %701 = vmatpush1.msra.mxu0 0.0
      %702 = vmatprep.subr.mxu0 0.0
      %703 = vmatpush1.msra.mxu0 0.0
      %704 = vmatprep.subr.mxu0 0.0
      %705 = vmatpush1.msra.mxu0 0.0
      %706 = vmatprep.subr.mxu0 0.0
      %707 = vmatpush1.msra.mxu0 0.0
      %708 = vmatprep.subr.mxu0 0.0
      %709 = vmatpush1.msra.mxu0 0.0
      %710 = vmatprep.subr.mxu0 0.0
      %711 = vmatpush1.msra.mxu0 0.0
      %712 = vmatprep.mubr.f32.mxu0 0.0
      %713 = vmatmul.mubr.f32.gmra.mrb[0].mxu0 %v328
      %v714 = vpop.f32.mrb[0].mxu0
      %v715 = vadd.f32 0.0, %v714
      %v716 = vpop.f32.mrb[0].mxu0
      %v717 = vadd.f32 0.0, %v716
      %718 = vmatprep.mubr.f32.mxu0 0.0
      %719 = vmatmul.mubr.f32.gmra.mrb[0].mxu0 %v331
      %v720 = vpop.f32.mrb[0].mxu0
      %v721 = vadd.f32 0.0, %v720
      %v722 = vpop.f32.mrb[0].mxu0
      %v723 = vadd.f32 0.0, %v722
      %724 = vmatprep.mubr.f32.mxu0 0.0
      %725 = vmatmul.mubr.f32.gmra.mrb[0].mxu0 %v334
      %v726 = vpop.f32.mrb[0].mxu0
      %v727 = vadd.f32 0.0, %v726
      %v728 = vpop.f32.mrb[0].mxu0
      %v729 = vadd.f32 0.0, %v728
      %730 = vmatprep.mubr.f32.mxu0 0.0
      %731 = vmatmul.mubr.f32.gmra.mrb[0].mxu0 %v337
      %v732 = vpop.f32.mrb[0].mxu0
      %v733 = vadd.f32 0.0, %v732
      %v734 = vpop.f32.mrb[0].mxu0
      %v735 = vadd.f32 0.0, %v734
      %736 = vmatprep.mubr.f32.mxu0 0.0
      %737 = vmatmul.mubr.f32.gmra.mrb[0].mxu0 %v340
      %v738 = vpop.f32.mrb[0].mxu0
      %v739 = vadd.f32 0.0, %v738
      %v740 = vpop.f32.mrb[0].mxu0
      %v741 = vadd.f32 0.0, %v740
      %742 = vmatprep.mubr.f32.mxu0 0.0
      %743 = vmatmul.mubr.f32.gmra.mrb[0].mxu0 %v343
      %v744 = vpop.f32.mrb[0].mxu0
      %v745 = vadd.f32 0.0, %v744
      %v746 = vpop.f32.mrb[0].mxu0
      %v747 = vadd.f32 0.0, %v746
      %748 = vdwg.mxu0
      %749 = vmatprep.subr.mxu0 %v239
      %750 = vmatpush1.msra.mxu0 %v238
      %751 = vmatprep.subr.mxu0 %v251
      %752 = vmatpush1.msra.mxu0 %v250
      %753 = vmatprep.subr.mxu0 %v263
      %754 = vmatpush1.msra.mxu0 %v262
      %755 = vmatprep.subr.mxu0 %v275
      %756 = vmatpush1.msra.mxu0 %v274
      %757 = vmatprep.subr.mxu0 %v287
      %758 = vmatpush1.msra.mxu0 %v286
      %759 = vmatprep.subr.mxu0 %v299
      %760 = vmatpush1.msra.mxu0 %v298
      %761 = vmatprep.subr.mxu0 %v311
      %762 = vmatpush1.msra.mxu0 %v310
      %763 = vmatprep.subr.mxu0 %v323
      %764 = vmatpush1.msra.mxu0 %v322
      %765 = vmatprep.subr.mxu0 0.0
      %766 = vmatpush1.msra.mxu0 0.0
      %767 = vmatprep.subr.mxu0 0.0
      %768 = vmatpush1.msra.mxu0 0.0
      %769 = vmatprep.subr.mxu0 0.0
      %770 = vmatpush1.msra.mxu0 0.0
      %771 = vmatprep.subr.mxu0 0.0
      %772 = vmatpush1.msra.mxu0 0.0
      %773 = vmatprep.subr.mxu0 0.0
      %774 = vmatpush1.msra.mxu0 0.0
      %775 = vmatprep.subr.mxu0 0.0
      %776 = vmatpush1.msra.mxu0 0.0
      %777 = vmatprep.subr.mxu0 0.0
      %778 = vmatpush1.msra.mxu0 0.0
      %779 = vmatprep.subr.mxu0 0.0
      %780 = vmatpush1.msra.mxu0 0.0
      %781 = vmatprep.subr.mxu0 0.0
      %782 = vmatpush1.msra.mxu0 0.0
      %783 = vmatprep.subr.mxu0 0.0
      %784 = vmatpush1.msra.mxu0 0.0
      %785 = vmatprep.subr.mxu0 0.0
      %786 = vmatpush1.msra.mxu0 0.0
      %787 = vmatprep.subr.mxu0 0.0
      %788 = vmatpush1.msra.mxu0 0.0
      %789 = vmatprep.subr.mxu0 0.0
      %790 = vmatpush1.msra.mxu0 0.0
      %791 = vmatprep.subr.mxu0 0.0
      %792 = vmatpush1.msra.mxu0 0.0
      %793 = vmatprep.subr.mxu0 0.0
      %794 = vmatpush1.msra.mxu0 0.0
      %795 = vmatprep.subr.mxu0 0.0
      %796 = vmatpush1.msra.mxu0 0.0
      %797 = vmatprep.subr.mxu0 0.0
      %798 = vmatpush1.msra.mxu0 0.0
      %799 = vmatprep.subr.mxu0 0.0
      %800 = vmatpush1.msra.mxu0 0.0
      %801 = vmatprep.subr.mxu0 0.0
      %802 = vmatpush1.msra.mxu0 0.0
      %803 = vmatprep.subr.mxu0 0.0
      %804 = vmatpush1.msra.mxu0 0.0
      %805 = vmatprep.subr.mxu0 0.0
      %806 = vmatpush1.msra.mxu0 0.0
      %807 = vmatprep.subr.mxu0 0.0
      %808 = vmatpush1.msra.mxu0 0.0
      %809 = vmatprep.subr.mxu0 0.0
      %810 = vmatpush1.msra.mxu0 0.0
      %811 = vmatprep.subr.mxu0 0.0
      %812 = vmatpush1.msra.mxu0 0.0
      %813 = vmatprep.mubr.f32.mxu0 0.0
      %814 = vmatmul.mubr.f32.gmra.mrb[0].mxu0 %v328
      %v815 = vpop.f32.mrb[0].mxu0
      %v816 = vadd.f32 0.0, %v815
      %v817 = vpop.f32.mrb[0].mxu0
      %v818 = vadd.f32 0.0, %v817
      %819 = vmatprep.mubr.f32.mxu0 0.0
      %820 = vmatmul.mubr.f32.gmra.mrb[0].mxu0 %v331
      %v821 = vpop.f32.mrb[0].mxu0
      %v822 = vadd.f32 0.0, %v821
      %v823 = vpop.f32.mrb[0].mxu0
      %v824 = vadd.f32 0.0, %v823
      %825 = vmatprep.mubr.f32.mxu0 0.0
      %826 = vmatmul.mubr.f32.gmra.mrb[0].mxu0 %v334
      %v827 = vpop.f32.mrb[0].mxu0
      %v828 = vadd.f32 0.0, %v827
      %v829 = vpop.f32.mrb[0].mxu0
      %v830 = vadd.f32 0.0, %v829
      %831 = vmatprep.mubr.f32.mxu0 0.0
      %832 = vmatmul.mubr.f32.gmra.mrb[0].mxu0 %v337
      %v833 = vpop.f32.mrb[0].mxu0
      %v834 = vadd.f32 0.0, %v833
      %v835 = vpop.f32.mrb[0].mxu0
      %v836 = vadd.f32 0.0, %v835
      %837 = vmatprep.mubr.f32.mxu0 0.0
      %838 = vmatmul.mubr.f32.gmra.mrb[0].mxu0 %v340
      %v839 = vpop.f32.mrb[0].mxu0
      %v840 = vadd.f32 0.0, %v839
      %v841 = vpop.f32.mrb[0].mxu0
      %v842 = vadd.f32 0.0, %v841
      %843 = vmatprep.mubr.f32.mxu0 0.0
      %844 = vmatmul.mubr.f32.gmra.mrb[0].mxu0 %v343
      %v845 = vpop.f32.mrb[0].mxu0
      %v846 = vadd.f32 0.0, %v845
      %v847 = vpop.f32.mrb[0].mxu0
      %v848 = vadd.f32 0.0, %v847
      %849 = vdwg.mxu0
      %850 = vmatprep.subr.mxu0 %v241
      %851 = vmatpush1.msra.mxu0 %v240
      %852 = vmatprep.subr.mxu0 %v253
      %853 = vmatpush1.msra.mxu0 %v252
      %854 = vmatprep.subr.mxu0 %v265
      %855 = vmatpush1.msra.mxu0 %v264
      %856 = vmatprep.subr.mxu0 %v277
      %857 = vmatpush1.msra.mxu0 %v276
      %858 = vmatprep.subr.mxu0 %v289
      %859 = vmatpush1.msra.mxu0 %v288
      %860 = vmatprep.subr.mxu0 %v301
      %861 = vmatpush1.msra.mxu0 %v300
      %862 = vmatprep.subr.mxu0 %v313
      %863 = vmatpush1.msra.mxu0 %v312
      %864 = vmatprep.subr.mxu0 %v325
      %865 = vmatpush1.msra.mxu0 %v324
      %866 = vmatprep.subr.mxu0 0.0
      %867 = vmatpush1.msra.mxu0 0.0
      %868 = vmatprep.subr.mxu0 0.0
      %869 = vmatpush1.msra.mxu0 0.0
      %870 = vmatprep.subr.mxu0 0.0
      %871 = vmatpush1.msra.mxu0 0.0
      %872 = vmatprep.subr.mxu0 0.0
      %873 = vmatpush1.msra.mxu0 0.0
      %874 = vmatprep.subr.mxu0 0.0
      %875 = vmatpush1.msra.mxu0 0.0
      %876 = vmatprep.subr.mxu0 0.0
      %877 = vmatpush1.msra.mxu0 0.0
      %878 = vmatprep.subr.mxu0 0.0
      %879 = vmatpush1.msra.mxu0 0.0
      %880 = vmatprep.subr.mxu0 0.0
      %881 = vmatpush1.msra.mxu0 0.0
      %882 = vmatprep.subr.mxu0 0.0
      %883 = vmatpush1.msra.mxu0 0.0
      %884 = vmatprep.subr.mxu0 0.0
      %885 = vmatpush1.msra.mxu0 0.0
      %886 = vmatprep.subr.mxu0 0.0
      %887 = vmatpush1.msra.mxu0 0.0
      %888 = vmatprep.subr.mxu0 0.0
      %889 = vmatpush1.msra.mxu0 0.0
      %890 = vmatprep.subr.mxu0 0.0
      %891 = vmatpush1.msra.mxu0 0.0
      %892 = vmatprep.subr.mxu0 0.0
      %893 = vmatpush1.msra.mxu0 0.0
      %894 = vmatprep.subr.mxu0 0.0
      %895 = vmatpush1.msra.mxu0 0.0
      %896 = vmatprep.subr.mxu0 0.0
      %897 = vmatpush1.msra.mxu0 0.0
      %898 = vmatprep.subr.mxu0 0.0
      %899 = vmatpush1.msra.mxu0 0.0
      %900 = vmatprep.subr.mxu0 0.0
      %901 = vmatpush1.msra.mxu0 0.0
      %902 = vmatprep.subr.mxu0 0.0
      %903 = vmatpush1.msra.mxu0 0.0
      %904 = vmatprep.subr.mxu0 0.0
      %905 = vmatpush1.msra.mxu0 0.0
      %906 = vmatprep.subr.mxu0 0.0
      %907 = vmatpush1.msra.mxu0 0.0
      %908 = vmatprep.subr.mxu0 0.0
      %909 = vmatpush1.msra.mxu0 0.0
      %910 = vmatprep.subr.mxu0 0.0
      %911 = vmatpush1.msra.mxu0 0.0
      %912 = vmatprep.subr.mxu0 0.0
      %913 = vmatpush1.msra.mxu0 0.0
      %914 = vmatprep.mubr.f32.mxu0 0.0
      %915 = vmatmul.mubr.f32.gmra.mrb[0].mxu0 %v328
      %v916 = vpop.f32.mrb[0].mxu0
      %v917 = vadd.f32 0.0, %v916
      %v918 = vpop.f32.mrb[0].mxu0
      %v919 = vadd.f32 0.0, %v918
      %920 = vmatprep.mubr.f32.mxu0 0.0
      %921 = vmatmul.mubr.f32.gmra.mrb[0].mxu0 %v331
      %v922 = vpop.f32.mrb[0].mxu0
      %v923 = vadd.f32 0.0, %v922
      %v924 = vpop.f32.mrb[0].mxu0
      %v925 = vadd.f32 0.0, %v924
      %926 = vmatprep.mubr.f32.mxu0 0.0
      %927 = vmatmul.mubr.f32.gmra.mrb[0].mxu0 %v334
      %v928 = vpop.f32.mrb[0].mxu0
      %v929 = vadd.f32 0.0, %v928
      %v930 = vpop.f32.mrb[0].mxu0
      %v931 = vadd.f32 0.0, %v930
      %932 = vmatprep.mubr.f32.mxu0 0.0
      %933 = vmatmul.mubr.f32.gmra.mrb[0].mxu0 %v337
      %v934 = vpop.f32.mrb[0].mxu0
      %v935 = vadd.f32 0.0, %v934
      %v936 = vpop.f32.mrb[0].mxu0
      %v937 = vadd.f32 0.0, %v936
      %938 = vmatprep.mubr.f32.mxu0 0.0
      %939 = vmatmul.mubr.f32.gmra.mrb[0].mxu0 %v340
      %v940 = vpop.f32.mrb[0].mxu0
      %v941 = vadd.f32 0.0, %v940
      %v942 = vpop.f32.mrb[0].mxu0
      %v943 = vadd.f32 0.0, %v942
      %944 = vmatprep.mubr.f32.mxu0 0.0
      %945 = vmatmul.mubr.f32.gmra.mrb[0].mxu0 %v343
      %v946 = vpop.f32.mrb[0].mxu0
      %v947 = vadd.f32 0.0, %v946
      %v948 = vpop.f32.mrb[0].mxu0
      %v949 = vadd.f32 0.0, %v948
      %950 = vdwg.mxu0
      %v951 = vlaneseq
      %v952 = vshrl.u32 %v951, 7
      %v953 = vadd.s32 %v952, 8
      %v954 = vadd.s32 %v952, 16
      %v955 = vadd.s32 %v952, 24
      %v956 = vadd.s32 %v952, 32
      %v957 = vadd.s32 %v952, 40
      %v958 = vlaneseq
      %v959 = vand.u32 %v958, 127
      %v960 = vadd.s32 %v959, 128
      %v961 = vadd.s32 %v959, 256
      %v962 = vadd.s32 %v959, 384
      %v963 = vadd.s32 %v959, 512
      %v964 = vadd.s32 %v959, 640
      %v965 = vadd.s32 %v959, 768
      %v966 = vadd.s32 %v959, 896
      %v967 = vadd.s32 %v959, 1024
      %v968 = vadd.s32 %v959, 1152
      %v969 = vadd.s32 %v959, 1280
      %v970 = vadd.s32 %v959, 1408
      %v971 = vshra.s32 %v959, 5
      %v972 = vshra.s32 %v960, 5
      %v973 = vshra.s32 %v961, 5
      %v974 = vshra.s32 %v962, 5
      %v975 = vshra.s32 %v963, 5
      %v976 = vshra.s32 %v964, 5
      %v977 = vshra.s32 %v965, 5
      %v978 = vshra.s32 %v966, 5
      %v979 = vshra.s32 %v967, 5
      %v980 = vshra.s32 %v968, 5
      %v981 = vshra.s32 %v969, 5
      %v982 = vshra.s32 %v970, 5
      %vm983 = vcmp.eq.s32.totalorder %v952, %v971
      %vm984 = vcmp.eq.s32.totalorder %v952, %v972
      %vm985 = vcmp.eq.s32.totalorder %v952, %v973
      %vm986 = vcmp.eq.s32.totalorder %v952, %v974
      %vm987 = vcmp.eq.s32.totalorder %v952, %v975
      %vm988 = vcmp.eq.s32.totalorder %v952, %v976
      %vm989 = vcmp.eq.s32.totalorder %v952, %v977
      %vm990 = vcmp.eq.s32.totalorder %v952, %v978
      %vm991 = vcmp.eq.s32.totalorder %v952, %v979
      %vm992 = vcmp.eq.s32.totalorder %v952, %v980
      %vm993 = vcmp.eq.s32.totalorder %v952, %v981
      %vm994 = vcmp.eq.s32.totalorder %v952, %v982
      %vm995 = vcmp.eq.s32.totalorder %v953, %v971
      %vm996 = vcmp.eq.s32.totalorder %v953, %v972
      %vm997 = vcmp.eq.s32.totalorder %v953, %v973
      %vm998 = vcmp.eq.s32.totalorder %v953, %v974
      %vm999 = vcmp.eq.s32.totalorder %v953, %v975
      %vm1000 = vcmp.eq.s32.totalorder %v953, %v976
      %vm1001 = vcmp.eq.s32.totalorder %v953, %v977
      %vm1002 = vcmp.eq.s32.totalorder %v953, %v978
      %vm1003 = vcmp.eq.s32.totalorder %v953, %v979
      %vm1004 = vcmp.eq.s32.totalorder %v953, %v980
      %vm1005 = vcmp.eq.s32.totalorder %v953, %v981
      %vm1006 = vcmp.eq.s32.totalorder %v953, %v982
      %vm1007 = vcmp.eq.s32.totalorder %v954, %v971
      %vm1008 = vcmp.eq.s32.totalorder %v954, %v972
      %vm1009 = vcmp.eq.s32.totalorder %v954, %v973
      %vm1010 = vcmp.eq.s32.totalorder %v954, %v974
      %vm1011 = vcmp.eq.s32.totalorder %v954, %v975
      %vm1012 = vcmp.eq.s32.totalorder %v954, %v976
      %vm1013 = vcmp.eq.s32.totalorder %v954, %v977
      %vm1014 = vcmp.eq.s32.totalorder %v954, %v978
      %vm1015 = vcmp.eq.s32.totalorder %v954, %v979
      %vm1016 = vcmp.eq.s32.totalorder %v954, %v980
      %vm1017 = vcmp.eq.s32.totalorder %v954, %v981
      %vm1018 = vcmp.eq.s32.totalorder %v954, %v982
      %vm1019 = vcmp.eq.s32.totalorder %v955, %v971
      %vm1020 = vcmp.eq.s32.totalorder %v955, %v972
      %vm1021 = vcmp.eq.s32.totalorder %v955, %v973
      %vm1022 = vcmp.eq.s32.totalorder %v955, %v974
      %vm1023 = vcmp.eq.s32.totalorder %v955, %v975
      %vm1024 = vcmp.eq.s32.totalorder %v955, %v976
      %vm1025 = vcmp.eq.s32.totalorder %v955, %v977
      %vm1026 = vcmp.eq.s32.totalorder %v955, %v978
      %vm1027 = vcmp.eq.s32.totalorder %v955, %v979
      %vm1028 = vcmp.eq.s32.totalorder %v955, %v980
      %vm1029 = vcmp.eq.s32.totalorder %v955, %v981
      %vm1030 = vcmp.eq.s32.totalorder %v955, %v982
      %vm1031 = vcmp.eq.s32.totalorder %v956, %v971
      %vm1032 = vcmp.eq.s32.totalorder %v956, %v972
      %vm1033 = vcmp.eq.s32.totalorder %v956, %v973
      %vm1034 = vcmp.eq.s32.totalorder %v956, %v974
      %vm1035 = vcmp.eq.s32.totalorder %v956, %v975
      %vm1036 = vcmp.eq.s32.totalorder %v956, %v976
      %vm1037 = vcmp.eq.s32.totalorder %v956, %v977
      %vm1038 = vcmp.eq.s32.totalorder %v956, %v978
      %vm1039 = vcmp.eq.s32.totalorder %v956, %v979
      %vm1040 = vcmp.eq.s32.totalorder %v956, %v980
      %vm1041 = vcmp.eq.s32.totalorder %v956, %v981
      %vm1042 = vcmp.eq.s32.totalorder %v956, %v982
      %vm1043 = vcmp.eq.s32.totalorder %v957, %v971
      %vm1044 = vcmp.eq.s32.totalorder %v957, %v972
      %vm1045 = vcmp.eq.s32.totalorder %v957, %v973
      %vm1046 = vcmp.eq.s32.totalorder %v957, %v974
      %vm1047 = vcmp.eq.s32.totalorder %v957, %v975
      %vm1048 = vcmp.eq.s32.totalorder %v957, %v976
      %vm1049 = vcmp.eq.s32.totalorder %v957, %v977
      %vm1050 = vcmp.eq.s32.totalorder %v957, %v978
      %vm1051 = vcmp.eq.s32.totalorder %v957, %v979
      %vm1052 = vcmp.eq.s32.totalorder %v957, %v980
      %vm1053 = vcmp.eq.s32.totalorder %v957, %v981
      %vm1054 = vcmp.eq.s32.totalorder %v957, %v982
      %v1055 = vsel %vm983, 1.0, 0.0
      %v1056 = vsel %vm984, 1.0, 0.0
      %v1057 = vsel %vm985, 1.0, 0.0
      %v1058 = vsel %vm986, 1.0, 0.0
      %v1059 = vsel %vm987, 1.0, 0.0
      %v1060 = vsel %vm988, 1.0, 0.0
      %v1061 = vsel %vm989, 1.0, 0.0
      %v1062 = vsel %vm990, 1.0, 0.0
      %v1063 = vsel %vm991, 1.0, 0.0
      %v1064 = vsel %vm992, 1.0, 0.0
      %v1065 = vsel %vm993, 1.0, 0.0
      %v1066 = vsel %vm994, 1.0, 0.0
      %v1067 = vsel %vm995, 1.0, 0.0
      %v1068 = vsel %vm996, 1.0, 0.0
      %v1069 = vsel %vm997, 1.0, 0.0
      %v1070 = vsel %vm998, 1.0, 0.0
      %v1071 = vsel %vm999, 1.0, 0.0
      %v1072 = vsel %vm1000, 1.0, 0.0
      %v1073 = vsel %vm1001, 1.0, 0.0
      %v1074 = vsel %vm1002, 1.0, 0.0
      %v1075 = vsel %vm1003, 1.0, 0.0
      %v1076 = vsel %vm1004, 1.0, 0.0
      %v1077 = vsel %vm1005, 1.0, 0.0
      %v1078 = vsel %vm1006, 1.0, 0.0
      %v1079 = vsel %vm1007, 1.0, 0.0
      %v1080 = vsel %vm1008, 1.0, 0.0
      %v1081 = vsel %vm1009, 1.0, 0.0
      %v1082 = vsel %vm1010, 1.0, 0.0
      %v1083 = vsel %vm1011, 1.0, 0.0
      %v1084 = vsel %vm1012, 1.0, 0.0
      %v1085 = vsel %vm1013, 1.0, 0.0
      %v1086 = vsel %vm1014, 1.0, 0.0
      %v1087 = vsel %vm1015, 1.0, 0.0
      %v1088 = vsel %vm1016, 1.0, 0.0
      %v1089 = vsel %vm1017, 1.0, 0.0
      %v1090 = vsel %vm1018, 1.0, 0.0
      %v1091 = vsel %vm1019, 1.0, 0.0
      %v1092 = vsel %vm1020, 1.0, 0.0
      %v1093 = vsel %vm1021, 1.0, 0.0
      %v1094 = vsel %vm1022, 1.0, 0.0
      %v1095 = vsel %vm1023, 1.0, 0.0
      %v1096 = vsel %vm1024, 1.0, 0.0
      %v1097 = vsel %vm1025, 1.0, 0.0
      %v1098 = vsel %vm1026, 1.0, 0.0
      %v1099 = vsel %vm1027, 1.0, 0.0
      %v1100 = vsel %vm1028, 1.0, 0.0
      %v1101 = vsel %vm1029, 1.0, 0.0
      %v1102 = vsel %vm1030, 1.0, 0.0
      %v1103 = vsel %vm1031, 1.0, 0.0
      %v1104 = vsel %vm1032, 1.0, 0.0
      %v1105 = vsel %vm1033, 1.0, 0.0
      %v1106 = vsel %vm1034, 1.0, 0.0
      %v1107 = vsel %vm1035, 1.0, 0.0
      %v1108 = vsel %vm1036, 1.0, 0.0
      %v1109 = vsel %vm1037, 1.0, 0.0
      %v1110 = vsel %vm1038, 1.0, 0.0
      %v1111 = vsel %vm1039, 1.0, 0.0
      %v1112 = vsel %vm1040, 1.0, 0.0
      %v1113 = vsel %vm1041, 1.0, 0.0
      %v1114 = vsel %vm1042, 1.0, 0.0
      %v1115 = vsel %vm1043, 1.0, 0.0
      %v1116 = vsel %vm1044, 1.0, 0.0
      %v1117 = vsel %vm1045, 1.0, 0.0
      %v1118 = vsel %vm1046, 1.0, 0.0
      %v1119 = vsel %vm1047, 1.0, 0.0
      %v1120 = vsel %vm1048, 1.0, 0.0
      %v1121 = vsel %vm1049, 1.0, 0.0
      %v1122 = vsel %vm1050, 1.0, 0.0
      %v1123 = vsel %vm1051, 1.0, 0.0
      %v1124 = vsel %vm1052, 1.0, 0.0
      %v1125 = vsel %vm1053, 1.0, 0.0
      %v1126 = vsel %vm1054, 1.0, 0.0
      %v1127 = vmul.f32 %v412, %v1055
      %v1128 = vmul.f32 %v414, %v1056
      %v1129 = vmul.f32 %v513, %v1057
      %v1130 = vmul.f32 %v515, %v1058
      %v1131 = vmul.f32 %v614, %v1059
      %v1132 = vmul.f32 %v616, %v1060
      %v1133 = vmul.f32 %v715, %v1061
      %v1134 = vmul.f32 %v717, %v1062
      %v1135 = vmul.f32 %v816, %v1063
      %v1136 = vmul.f32 %v818, %v1064
      %v1137 = vmul.f32 %v917, %v1065
      %v1138 = vmul.f32 %v919, %v1066
      %v1139 = vmul.f32 %v418, %v1067
      %v1140 = vmul.f32 %v420, %v1068
      %v1141 = vmul.f32 %v519, %v1069
      %v1142 = vmul.f32 %v521, %v1070
      %v1143 = vmul.f32 %v620, %v1071
      %v1144 = vmul.f32 %v622, %v1072
      %v1145 = vmul.f32 %v721, %v1073
      %v1146 = vmul.f32 %v723, %v1074
      %v1147 = vmul.f32 %v822, %v1075
      %v1148 = vmul.f32 %v824, %v1076
      %v1149 = vmul.f32 %v923, %v1077
      %v1150 = vmul.f32 %v925, %v1078
      %v1151 = vmul.f32 %v424, %v1079
      %v1152 = vmul.f32 %v426, %v1080
      %v1153 = vmul.f32 %v525, %v1081
      %v1154 = vmul.f32 %v527, %v1082
      %v1155 = vmul.f32 %v626, %v1083
      %v1156 = vmul.f32 %v628, %v1084
      %v1157 = vmul.f32 %v727, %v1085
      %v1158 = vmul.f32 %v729, %v1086
      %v1159 = vmul.f32 %v828, %v1087
      %v1160 = vmul.f32 %v830, %v1088
      %v1161 = vmul.f32 %v929, %v1089
      %v1162 = vmul.f32 %v931, %v1090
      %v1163 = vmul.f32 %v430, %v1091
      %v1164 = vmul.f32 %v432, %v1092
      %v1165 = vmul.f32 %v531, %v1093
      %v1166 = vmul.f32 %v533, %v1094
      %v1167 = vmul.f32 %v632, %v1095
      %v1168 = vmul.f32 %v634, %v1096
      %v1169 = vmul.f32 %v733, %v1097
      %v1170 = vmul.f32 %v735, %v1098
      %v1171 = vmul.f32 %v834, %v1099
      %v1172 = vmul.f32 %v836, %v1100
      %v1173 = vmul.f32 %v935, %v1101
      %v1174 = vmul.f32 %v937, %v1102
      %v1175 = vmul.f32 %v436, %v1103
      %v1176 = vmul.f32 %v438, %v1104
      %v1177 = vmul.f32 %v537, %v1105
      %v1178 = vmul.f32 %v539, %v1106
      %v1179 = vmul.f32 %v638, %v1107
      %v1180 = vmul.f32 %v640, %v1108
      %v1181 = vmul.f32 %v739, %v1109
      %v1182 = vmul.f32 %v741, %v1110
      %v1183 = vmul.f32 %v840, %v1111
      %v1184 = vmul.f32 %v842, %v1112
      %v1185 = vmul.f32 %v941, %v1113
      %v1186 = vmul.f32 %v943, %v1114
      %v1187 = vmul.f32 %v442, %v1115
      %v1188 = vmul.f32 %v444, %v1116
      %v1189 = vmul.f32 %v543, %v1117
      %v1190 = vmul.f32 %v545, %v1118
      %v1191 = vmul.f32 %v644, %v1119
      %v1192 = vmul.f32 %v646, %v1120
      %v1193 = vmul.f32 %v745, %v1121
      %v1194 = vmul.f32 %v747, %v1122
      %v1195 = vmul.f32 %v846, %v1123
      %v1196 = vmul.f32 %v848, %v1124
      %v1197 = vmul.f32 %v947, %v1125
      %v1198 = vmul.f32 %v949, %v1126
      %v1199 = vadd.f32 %v1127, %v1139
      %v1200 = vadd.f32 %v1199, %v1151
      %v1201 = vadd.f32 %v1200, %v1163
      %v1202 = vadd.f32 %v1201, %v1175
      %v1203 = vadd.f32 %v1202, %v1187
      %v1204 = vrot.slane %v1203, 4
      %v1205 = vadd.f32 %v1203, %v1204
      %v1206 = vrot.slane %v1205, 2
      %v1207 = vadd.f32 %v1205, %v1206
      %v1208 = vrot.slane %v1207, 1
      %v1209 = vadd.f32 %v1207, %v1208
      %v1210 = vadd.f32 %v1128, %v1140
      %v1211 = vadd.f32 %v1210, %v1152
      %v1212 = vadd.f32 %v1211, %v1164
      %v1213 = vadd.f32 %v1212, %v1176
      %v1214 = vadd.f32 %v1213, %v1188
      %v1215 = vrot.slane %v1214, 4
      %v1216 = vadd.f32 %v1214, %v1215
      %v1217 = vrot.slane %v1216, 2
      %v1218 = vadd.f32 %v1216, %v1217
      %v1219 = vrot.slane %v1218, 1
      %v1220 = vadd.f32 %v1218, %v1219
      %v1221 = vadd.f32 %v1129, %v1141
      %v1222 = vadd.f32 %v1221, %v1153
      %v1223 = vadd.f32 %v1222, %v1165
      %v1224 = vadd.f32 %v1223, %v1177
      %v1225 = vadd.f32 %v1224, %v1189
      %v1226 = vrot.slane %v1225, 4
      %v1227 = vadd.f32 %v1225, %v1226
      %v1228 = vrot.slane %v1227, 2
      %v1229 = vadd.f32 %v1227, %v1228
      %v1230 = vrot.slane %v1229, 1
      %v1231 = vadd.f32 %v1229, %v1230
      %v1232 = vadd.f32 %v1130, %v1142
      %v1233 = vadd.f32 %v1232, %v1154
      %v1234 = vadd.f32 %v1233, %v1166
      %v1235 = vadd.f32 %v1234, %v1178
      %v1236 = vadd.f32 %v1235, %v1190
      %v1237 = vrot.slane %v1236, 4
      %v1238 = vadd.f32 %v1236, %v1237
      %v1239 = vrot.slane %v1238, 2
      %v1240 = vadd.f32 %v1238, %v1239
      %v1241 = vrot.slane %v1240, 1
      %v1242 = vadd.f32 %v1240, %v1241
      %v1243 = vadd.f32 %v1131, %v1143
      %v1244 = vadd.f32 %v1243, %v1155
      %v1245 = vadd.f32 %v1244, %v1167
      %v1246 = vadd.f32 %v1245, %v1179
      %v1247 = vadd.f32 %v1246, %v1191
      %v1248 = vrot.slane %v1247, 4
      %v1249 = vadd.f32 %v1247, %v1248
      %v1250 = vrot.slane %v1249, 2
      %v1251 = vadd.f32 %v1249, %v1250
      %v1252 = vrot.slane %v1251, 1
      %v1253 = vadd.f32 %v1251, %v1252
      %v1254 = vadd.f32 %v1132, %v1144
      %v1255 = vadd.f32 %v1254, %v1156
      %v1256 = vadd.f32 %v1255, %v1168
      %v1257 = vadd.f32 %v1256, %v1180
      %v1258 = vadd.f32 %v1257, %v1192
      %v1259 = vrot.slane %v1258, 4
      %v1260 = vadd.f32 %v1258, %v1259
      %v1261 = vrot.slane %v1260, 2
      %v1262 = vadd.f32 %v1260, %v1261
      %v1263 = vrot.slane %v1262, 1
      %v1264 = vadd.f32 %v1262, %v1263
      %v1265 = vadd.f32 %v1133, %v1145
      %v1266 = vadd.f32 %v1265, %v1157
      %v1267 = vadd.f32 %v1266, %v1169
      %v1268 = vadd.f32 %v1267, %v1181
      %v1269 = vadd.f32 %v1268, %v1193
      %v1270 = vrot.slane %v1269, 4
      %v1271 = vadd.f32 %v1269, %v1270
      %v1272 = vrot.slane %v1271, 2
      %v1273 = vadd.f32 %v1271, %v1272
      %v1274 = vrot.slane %v1273, 1
      %v1275 = vadd.f32 %v1273, %v1274
      %v1276 = vadd.f32 %v1134, %v1146
      %v1277 = vadd.f32 %v1276, %v1158
      %v1278 = vadd.f32 %v1277, %v1170
      %v1279 = vadd.f32 %v1278, %v1182
      %v1280 = vadd.f32 %v1279, %v1194
      %v1281 = vrot.slane %v1280, 4
      %v1282 = vadd.f32 %v1280, %v1281
      %v1283 = vrot.slane %v1282, 2
      %v1284 = vadd.f32 %v1282, %v1283
      %v1285 = vrot.slane %v1284, 1
      %v1286 = vadd.f32 %v1284, %v1285
      %v1287 = vadd.f32 %v1135, %v1147
      %v1288 = vadd.f32 %v1287, %v1159
      %v1289 = vadd.f32 %v1288, %v1171
      %v1290 = vadd.f32 %v1289, %v1183
      %v1291 = vadd.f32 %v1290, %v1195
      %v1292 = vrot.slane %v1291, 4
      %v1293 = vadd.f32 %v1291, %v1292
      %v1294 = vrot.slane %v1293, 2
      %v1295 = vadd.f32 %v1293, %v1294
      %v1296 = vrot.slane %v1295, 1
      %v1297 = vadd.f32 %v1295, %v1296
      %v1298 = vadd.f32 %v1136, %v1148
      %v1299 = vadd.f32 %v1298, %v1160
      %v1300 = vadd.f32 %v1299, %v1172
      %v1301 = vadd.f32 %v1300, %v1184
      %v1302 = vadd.f32 %v1301, %v1196
      %v1303 = vrot.slane %v1302, 4
      %v1304 = vadd.f32 %v1302, %v1303
      %v1305 = vrot.slane %v1304, 2
      %v1306 = vadd.f32 %v1304, %v1305
      %v1307 = vrot.slane %v1306, 1
      %v1308 = vadd.f32 %v1306, %v1307
      %v1309 = vadd.f32 %v1137, %v1149
      %v1310 = vadd.f32 %v1309, %v1161
      %v1311 = vadd.f32 %v1310, %v1173
      %v1312 = vadd.f32 %v1311, %v1185
      %v1313 = vadd.f32 %v1312, %v1197
      %v1314 = vrot.slane %v1313, 4
      %v1315 = vadd.f32 %v1313, %v1314
      %v1316 = vrot.slane %v1315, 2
      %v1317 = vadd.f32 %v1315, %v1316
      %v1318 = vrot.slane %v1317, 1
      %v1319 = vadd.f32 %v1317, %v1318
      %v1320 = vadd.f32 %v1138, %v1150
      %v1321 = vadd.f32 %v1320, %v1162
      %v1322 = vadd.f32 %v1321, %v1174
      %v1323 = vadd.f32 %v1322, %v1186
      %v1324 = vadd.f32 %v1323, %v1198
      %v1325 = vrot.slane %v1324, 4
      %v1326 = vadd.f32 %v1324, %v1325
      %v1327 = vrot.slane %v1326, 2
      %v1328 = vadd.f32 %v1326, %v1327
      %v1329 = vrot.slane %v1328, 1
      %v1330 = vadd.f32 %v1328, %v1329
      %v1331 = vadd.s32 %v952, 48
      %v1332 = vadd.s32 %v952, 56
      %v1333 = vadd.s32 %v952, 64
      %v1334 = vadd.s32 %v952, 72
      %v1335 = vadd.s32 %v952, 80
      %v1336 = vadd.s32 %v952, 88
      %v1337 = vadd.s32 %v952, 96
      %v1338 = vadd.s32 %v952, 104
      %v1339 = vadd.s32 %v952, 112
      %v1340 = vadd.s32 %v952, 120
      %v1341 = vadd.s32 %v952, 128
      %v1342 = vadd.s32 %v952, 136
      %v1343 = vadd.s32 %v952, 144
      %v1344 = vadd.s32 %v952, 152
      %v1345 = vadd.s32 %v952, 160
      %v1346 = vadd.s32 %v952, 168
      %v1347 = vadd.s32 %v952, 176
      %v1348 = vadd.s32 %v952, 184
      %v1349 = vadd.s32 %v952, 192
      %v1350 = vadd.s32 %v952, 200
      %v1351 = vadd.s32 %v952, 208
      %v1352 = vadd.s32 %v952, 216
      %v1353 = vadd.s32 %v952, 224
      %v1354 = vadd.s32 %v952, 232
      %v1355 = vadd.s32 %v952, 240
      %v1356 = vadd.s32 %v952, 248
      %v1357 = vadd.s32 %v952, 256
      %v1358 = vadd.s32 %v952, 264
      %v1359 = vadd.s32 %v952, 272
      %v1360 = vadd.s32 %v952, 280
      %v1361 = vadd.s32 %v952, 288
      %v1362 = vadd.s32 %v952, 296
      %v1363 = vadd.s32 %v952, 304
      %v1364 = vadd.s32 %v952, 312
      %v1365 = vadd.s32 %v952, 320
      %v1366 = vadd.s32 %v952, 328
      %v1367 = vadd.s32 %v952, 336
      %v1368 = vadd.s32 %v952, 344
      %v1369 = vadd.s32 %v952, 352
      %v1370 = vadd.s32 %v952, 360
      %v1371 = vadd.s32 %v952, 368
      %v1372 = vadd.s32 %v952, 376
      %v1373 = vadd.s32 %v952, 384
      %v1374 = vadd.s32 %v952, 392
      %v1375 = vadd.s32 %v952, 400
      %v1376 = vadd.s32 %v952, 408
      %v1377 = vadd.s32 %v952, 416
      %v1378 = vadd.s32 %v952, 424
      %v1379 = vadd.s32 %v952, 432
      %v1380 = vadd.s32 %v952, 440
      %v1381 = vadd.s32 %v952, 448
      %v1382 = vadd.s32 %v952, 456
      %v1383 = vadd.s32 %v952, 464
      %v1384 = vadd.s32 %v952, 472
      %v1385 = vadd.s32 %v952, 480
      %v1386 = vadd.s32 %v952, 488
      %v1387 = vadd.s32 %v952, 496
      %v1388 = vadd.s32 %v952, 504
      %v1389 = vadd.s32 %v952, 512
      %v1390 = vadd.s32 %v952, 520
      %v1391 = vadd.s32 %v952, 528
      %v1392 = vadd.s32 %v952, 536
      %v1393 = vadd.s32 %v952, 544
      %v1394 = vadd.s32 %v952, 552
      %v1395 = vadd.s32 %v952, 560
      %v1396 = vadd.s32 %v952, 568
      %v1397 = vadd.s32 %v952, 576
      %v1398 = vadd.s32 %v952, 584
      %v1399 = vadd.s32 %v952, 592
      %v1400 = vadd.s32 %v952, 600
      %v1401 = vadd.s32 %v952, 608
      %v1402 = vadd.s32 %v952, 616
      %v1403 = vadd.s32 %v952, 624
      %v1404 = vadd.s32 %v952, 632
      %v1405 = vadd.s32 %v952, 640
      %v1406 = vadd.s32 %v952, 648
      %v1407 = vadd.s32 %v952, 656
      %v1408 = vadd.s32 %v952, 664
      %v1409 = vadd.s32 %v952, 672
      %v1410 = vadd.s32 %v952, 680
      %v1411 = vadd.s32 %v952, 688
      %v1412 = vadd.s32 %v952, 696
      %v1413 = vadd.s32 %v952, 704
      %v1414 = vadd.s32 %v952, 712
      %v1415 = vadd.s32 %v952, 720
      %v1416 = vadd.s32 %v952, 728
      %v1417 = vadd.s32 %v952, 736
      %v1418 = vadd.s32 %v952, 744
      %v1419 = vadd.s32 %v952, 752
      %v1420 = vadd.s32 %v952, 760
      %v1421 = vadd.s32 %v952, 768
      %v1422 = vadd.s32 %v952, 776
      %v1423 = vadd.s32 %v952, 784
      %v1424 = vadd.s32 %v952, 792
      %v1425 = vadd.s32 %v952, 800
      %v1426 = vadd.s32 %v952, 808
      %v1427 = vadd.s32 %v952, 816
      %v1428 = vadd.s32 %v952, 824
      %v1429 = vadd.s32 %v952, 832
      %v1430 = vadd.s32 %v952, 840
      %v1431 = vadd.s32 %v952, 848
      %v1432 = vadd.s32 %v952, 856
      %v1433 = vadd.s32 %v952, 864
      %v1434 = vadd.s32 %v952, 872
      %v1435 = vadd.s32 %v952, 880
      %v1436 = vadd.s32 %v952, 888
      %v1437 = vadd.s32 %v952, 896
      %v1438 = vadd.s32 %v952, 904
      %v1439 = vadd.s32 %v952, 912
      %v1440 = vadd.s32 %v952, 920
      %v1441 = vadd.s32 %v952, 928
      %v1442 = vadd.s32 %v952, 936
      %v1443 = vadd.s32 %v952, 944
      %v1444 = vadd.s32 %v952, 952
      %v1445 = vadd.s32 %v952, 960
      %v1446 = vadd.s32 %v952, 968
      %v1447 = vadd.s32 %v952, 976
      %v1448 = vadd.s32 %v952, 984
      %v1449 = vadd.s32 %v952, 992
      %v1450 = vadd.s32 %v952, 1000
      %v1451 = vadd.s32 %v952, 1008
      %v1452 = vadd.s32 %v952, 1016
      %v1453 = vadd.s32 %v952, 1024
      %v1454 = vadd.s32 %v952, 1032
      %v1455 = vadd.s32 %v952, 1040
      %v1456 = vadd.s32 %v952, 1048
      %v1457 = vadd.s32 %v952, 1056
      %v1458 = vadd.s32 %v952, 1064
      %v1459 = vadd.s32 %v952, 1072
      %v1460 = vadd.s32 %v952, 1080
      %v1461 = vadd.s32 %v952, 1088
      %v1462 = vadd.s32 %v952, 1096
      %v1463 = vadd.s32 %v952, 1104
      %v1464 = vadd.s32 %v952, 1112
      %v1465 = vadd.s32 %v952, 1120
      %v1466 = vadd.s32 %v952, 1128
      %v1467 = vadd.s32 %v952, 1136
      %v1468 = vadd.s32 %v952, 1144
      %v1469 = vadd.s32 %v952, 1152
      %v1470 = vadd.s32 %v952, 1160
      %v1471 = vadd.s32 %v952, 1168
      %v1472 = vadd.s32 %v952, 1176
      %v1473 = vadd.s32 %v952, 1184
      %v1474 = vadd.s32 %v952, 1192
      %v1475 = vadd.s32 %v952, 1200
      %v1476 = vadd.s32 %v952, 1208
      %v1477 = vadd.s32 %v952, 1216
      %v1478 = vadd.s32 %v952, 1224
      %v1479 = vadd.s32 %v952, 1232
      %v1480 = vadd.s32 %v952, 1240
      %v1481 = vadd.s32 %v952, 1248
      %v1482 = vadd.s32 %v952, 1256
      %v1483 = vadd.s32 %v952, 1264
      %v1484 = vadd.s32 %v952, 1272
      %v1485 = vadd.s32 %v952, 1280
      %v1486 = vadd.s32 %v952, 1288
      %v1487 = vadd.s32 %v952, 1296
      %v1488 = vadd.s32 %v952, 1304
      %v1489 = vadd.s32 %v952, 1312
      %v1490 = vadd.s32 %v952, 1320
      %v1491 = vadd.s32 %v952, 1328
      %v1492 = vadd.s32 %v952, 1336
      %v1493 = vadd.s32 %v952, 1344
      %v1494 = vadd.s32 %v952, 1352
      %v1495 = vadd.s32 %v952, 1360
      %v1496 = vadd.s32 %v952, 1368
      %v1497 = vadd.s32 %v952, 1376
      %v1498 = vadd.s32 %v952, 1384
      %v1499 = vadd.s32 %v952, 1392
      %v1500 = vadd.s32 %v952, 1400
      %v1501 = vadd.s32 %v952, 1408
      %v1502 = vadd.s32 %v952, 1416
      %v1503 = vadd.s32 %v952, 1424
      %v1504 = vadd.s32 %v952, 1432
      %v1505 = vadd.s32 %v952, 1440
      %v1506 = vadd.s32 %v952, 1448
      %v1507 = vadd.s32 %v952, 1456
      %v1508 = vadd.s32 %v952, 1464
      %v1509 = vadd.s32 %v952, 1472
      %v1510 = vadd.s32 %v952, 1480
      %v1511 = vadd.s32 %v952, 1488
      %v1512 = vadd.s32 %v952, 1496
      %v1513 = vadd.s32 %v952, 1504
      %v1514 = vadd.s32 %v952, 1512
      %v1515 = vadd.s32 %v952, 1520
      %v1516 = vadd.s32 %v952, 1528
      %v1517 = vand.u32 %v952, 31
      %v1518 = vand.u32 %v953, 31
      %v1519 = vand.u32 %v954, 31
      %v1520 = vand.u32 %v955, 31
      %v1521 = vand.u32 %v956, 31
      %v1522 = vand.u32 %v957, 31
      %v1523 = vand.u32 %v1331, 31
      %v1524 = vand.u32 %v1332, 31
      %v1525 = vand.u32 %v1333, 31
      %v1526 = vand.u32 %v1334, 31
      %v1527 = vand.u32 %v1335, 31
      %v1528 = vand.u32 %v1336, 31
      %v1529 = vand.u32 %v1337, 31
      %v1530 = vand.u32 %v1338, 31
      %v1531 = vand.u32 %v1339, 31
      %v1532 = vand.u32 %v1340, 31
      %v1533 = vand.u32 %v1341, 31
      %v1534 = vand.u32 %v1342, 31
      %v1535 = vand.u32 %v1343, 31
      %v1536 = vand.u32 %v1344, 31
      %v1537 = vand.u32 %v1345, 31
      %v1538 = vand.u32 %v1346, 31
      %v1539 = vand.u32 %v1347, 31
      %v1540 = vand.u32 %v1348, 31
      %v1541 = vand.u32 %v1349, 31
      %v1542 = vand.u32 %v1350, 31
      %v1543 = vand.u32 %v1351, 31
      %v1544 = vand.u32 %v1352, 31
      %v1545 = vand.u32 %v1353, 31
      %v1546 = vand.u32 %v1354, 31
      %v1547 = vand.u32 %v1355, 31
      %v1548 = vand.u32 %v1356, 31
      %v1549 = vand.u32 %v1357, 31
      %v1550 = vand.u32 %v1358, 31
      %v1551 = vand.u32 %v1359, 31
      %v1552 = vand.u32 %v1360, 31
      %v1553 = vand.u32 %v1361, 31
      %v1554 = vand.u32 %v1362, 31
      %v1555 = vand.u32 %v1363, 31
      %v1556 = vand.u32 %v1364, 31
      %v1557 = vand.u32 %v1365, 31
      %v1558 = vand.u32 %v1366, 31
      %v1559 = vand.u32 %v1367, 31
      %v1560 = vand.u32 %v1368, 31
      %v1561 = vand.u32 %v1369, 31
      %v1562 = vand.u32 %v1370, 31
      %v1563 = vand.u32 %v1371, 31
      %v1564 = vand.u32 %v1372, 31
      %v1565 = vand.u32 %v1373, 31
      %v1566 = vand.u32 %v1374, 31
      %v1567 = vand.u32 %v1375, 31
      %v1568 = vand.u32 %v1376, 31
      %v1569 = vand.u32 %v1377, 31
      %v1570 = vand.u32 %v1378, 31
      %v1571 = vand.u32 %v1379, 31
      %v1572 = vand.u32 %v1380, 31
      %v1573 = vand.u32 %v1381, 31
      %v1574 = vand.u32 %v1382, 31
      %v1575 = vand.u32 %v1383, 31
      %v1576 = vand.u32 %v1384, 31
      %v1577 = vand.u32 %v1385, 31
      %v1578 = vand.u32 %v1386, 31
      %v1579 = vand.u32 %v1387, 31
      %v1580 = vand.u32 %v1388, 31
      %v1581 = vand.u32 %v1389, 31
      %v1582 = vand.u32 %v1390, 31
      %v1583 = vand.u32 %v1391, 31
      %v1584 = vand.u32 %v1392, 31
      %v1585 = vand.u32 %v1393, 31
      %v1586 = vand.u32 %v1394, 31
      %v1587 = vand.u32 %v1395, 31
      %v1588 = vand.u32 %v1396, 31
      %v1589 = vand.u32 %v1397, 31
      %v1590 = vand.u32 %v1398, 31
      %v1591 = vand.u32 %v1399, 31
      %v1592 = vand.u32 %v1400, 31
      %v1593 = vand.u32 %v1401, 31
      %v1594 = vand.u32 %v1402, 31
      %v1595 = vand.u32 %v1403, 31
      %v1596 = vand.u32 %v1404, 31
      %v1597 = vand.u32 %v1405, 31
      %v1598 = vand.u32 %v1406, 31
      %v1599 = vand.u32 %v1407, 31
      %v1600 = vand.u32 %v1408, 31
      %v1601 = vand.u32 %v1409, 31
      %v1602 = vand.u32 %v1410, 31
      %v1603 = vand.u32 %v1411, 31
      %v1604 = vand.u32 %v1412, 31
      %v1605 = vand.u32 %v1413, 31
      %v1606 = vand.u32 %v1414, 31
      %v1607 = vand.u32 %v1415, 31
      %v1608 = vand.u32 %v1416, 31
      %v1609 = vand.u32 %v1417, 31
      %v1610 = vand.u32 %v1418, 31
      %v1611 = vand.u32 %v1419, 31
      %v1612 = vand.u32 %v1420, 31
      %v1613 = vand.u32 %v1421, 31
      %v1614 = vand.u32 %v1422, 31
      %v1615 = vand.u32 %v1423, 31
      %v1616 = vand.u32 %v1424, 31
      %v1617 = vand.u32 %v1425, 31
      %v1618 = vand.u32 %v1426, 31
      %v1619 = vand.u32 %v1427, 31
      %v1620 = vand.u32 %v1428, 31
      %v1621 = vand.u32 %v1429, 31
      %v1622 = vand.u32 %v1430, 31
      %v1623 = vand.u32 %v1431, 31
      %v1624 = vand.u32 %v1432, 31
      %v1625 = vand.u32 %v1433, 31
      %v1626 = vand.u32 %v1434, 31
      %v1627 = vand.u32 %v1435, 31
      %v1628 = vand.u32 %v1436, 31
      %v1629 = vand.u32 %v1437, 31
      %v1630 = vand.u32 %v1438, 31
      %v1631 = vand.u32 %v1439, 31
      %v1632 = vand.u32 %v1440, 31
      %v1633 = vand.u32 %v1441, 31
      %v1634 = vand.u32 %v1442, 31
      %v1635 = vand.u32 %v1443, 31
      %v1636 = vand.u32 %v1444, 31
      %v1637 = vand.u32 %v1445, 31
      %v1638 = vand.u32 %v1446, 31
      %v1639 = vand.u32 %v1447, 31
      %v1640 = vand.u32 %v1448, 31
      %v1641 = vand.u32 %v1449, 31
      %v1642 = vand.u32 %v1450, 31
      %v1643 = vand.u32 %v1451, 31
      %v1644 = vand.u32 %v1452, 31
      %v1645 = vand.u32 %v1453, 31
      %v1646 = vand.u32 %v1454, 31
      %v1647 = vand.u32 %v1455, 31
      %v1648 = vand.u32 %v1456, 31
      %v1649 = vand.u32 %v1457, 31
      %v1650 = vand.u32 %v1458, 31
      %v1651 = vand.u32 %v1459, 31
      %v1652 = vand.u32 %v1460, 31
      %v1653 = vand.u32 %v1461, 31
      %v1654 = vand.u32 %v1462, 31
      %v1655 = vand.u32 %v1463, 31
      %v1656 = vand.u32 %v1464, 31
      %v1657 = vand.u32 %v1465, 31
      %v1658 = vand.u32 %v1466, 31
      %v1659 = vand.u32 %v1467, 31
      %v1660 = vand.u32 %v1468, 31
      %v1661 = vand.u32 %v1469, 31
      %v1662 = vand.u32 %v1470, 31
      %v1663 = vand.u32 %v1471, 31
      %v1664 = vand.u32 %v1472, 31
      %v1665 = vand.u32 %v1473, 31
      %v1666 = vand.u32 %v1474, 31
      %v1667 = vand.u32 %v1475, 31
      %v1668 = vand.u32 %v1476, 31
      %v1669 = vand.u32 %v1477, 31
      %v1670 = vand.u32 %v1478, 31
      %v1671 = vand.u32 %v1479, 31
      %v1672 = vand.u32 %v1480, 31
      %v1673 = vand.u32 %v1481, 31
      %v1674 = vand.u32 %v1482, 31
      %v1675 = vand.u32 %v1483, 31
      %v1676 = vand.u32 %v1484, 31
      %v1677 = vand.u32 %v1485, 31
      %v1678 = vand.u32 %v1486, 31
      %v1679 = vand.u32 %v1487, 31
      %v1680 = vand.u32 %v1488, 31
      %v1681 = vand.u32 %v1489, 31
      %v1682 = vand.u32 %v1490, 31
      %v1683 = vand.u32 %v1491, 31
      %v1684 = vand.u32 %v1492, 31
      %v1685 = vand.u32 %v1493, 31
      %v1686 = vand.u32 %v1494, 31
      %v1687 = vand.u32 %v1495, 31
      %v1688 = vand.u32 %v1496, 31
      %v1689 = vand.u32 %v1497, 31
      %v1690 = vand.u32 %v1498, 31
      %v1691 = vand.u32 %v1499, 31
      %v1692 = vand.u32 %v1500, 31
      %v1693 = vand.u32 %v1501, 31
      %v1694 = vand.u32 %v1502, 31
      %v1695 = vand.u32 %v1503, 31
      %v1696 = vand.u32 %v1504, 31
      %v1697 = vand.u32 %v1505, 31
      %v1698 = vand.u32 %v1506, 31
      %v1699 = vand.u32 %v1507, 31
      %v1700 = vand.u32 %v1508, 31
      %v1701 = vand.u32 %v1509, 31
      %v1702 = vand.u32 %v1510, 31
      %v1703 = vand.u32 %v1511, 31
      %v1704 = vand.u32 %v1512, 31
      %v1705 = vand.u32 %v1513, 31
      %v1706 = vand.u32 %v1514, 31
      %v1707 = vand.u32 %v1515, 31
      %v1708 = vand.u32 %v1516, 31
      %vm1709 = vcmp.eq.s32.totalorder %v1517, %v959
      %vm1710 = vcmp.eq.s32.totalorder %v1518, %v959
      %vm1711 = vcmp.eq.s32.totalorder %v1519, %v959
      %vm1712 = vcmp.eq.s32.totalorder %v1520, %v959
      %vm1713 = vcmp.eq.s32.totalorder %v1521, %v959
      %vm1714 = vcmp.eq.s32.totalorder %v1522, %v959
      %vm1715 = vcmp.eq.s32.totalorder %v1523, %v959
      %vm1716 = vcmp.eq.s32.totalorder %v1524, %v959
      %vm1717 = vcmp.eq.s32.totalorder %v1525, %v959
      %vm1718 = vcmp.eq.s32.totalorder %v1526, %v959
      %vm1719 = vcmp.eq.s32.totalorder %v1527, %v959
      %vm1720 = vcmp.eq.s32.totalorder %v1528, %v959
      %vm1721 = vcmp.eq.s32.totalorder %v1529, %v959
      %vm1722 = vcmp.eq.s32.totalorder %v1530, %v959
      %vm1723 = vcmp.eq.s32.totalorder %v1531, %v959
      %vm1724 = vcmp.eq.s32.totalorder %v1532, %v959
      %vm1725 = vcmp.eq.s32.totalorder %v1533, %v959
      %vm1726 = vcmp.eq.s32.totalorder %v1534, %v959
      %vm1727 = vcmp.eq.s32.totalorder %v1535, %v959
      %vm1728 = vcmp.eq.s32.totalorder %v1536, %v959
      %vm1729 = vcmp.eq.s32.totalorder %v1537, %v959
      %vm1730 = vcmp.eq.s32.totalorder %v1538, %v959
      %vm1731 = vcmp.eq.s32.totalorder %v1539, %v959
      %vm1732 = vcmp.eq.s32.totalorder %v1540, %v959
      %vm1733 = vcmp.eq.s32.totalorder %v1541, %v959
      %vm1734 = vcmp.eq.s32.totalorder %v1542, %v959
      %vm1735 = vcmp.eq.s32.totalorder %v1543, %v959
      %vm1736 = vcmp.eq.s32.totalorder %v1544, %v959
      %vm1737 = vcmp.eq.s32.totalorder %v1545, %v959
      %vm1738 = vcmp.eq.s32.totalorder %v1546, %v959
      %vm1739 = vcmp.eq.s32.totalorder %v1547, %v959
      %vm1740 = vcmp.eq.s32.totalorder %v1548, %v959
      %vm1741 = vcmp.eq.s32.totalorder %v1549, %v959
      %vm1742 = vcmp.eq.s32.totalorder %v1550, %v959
      %vm1743 = vcmp.eq.s32.totalorder %v1551, %v959
      %vm1744 = vcmp.eq.s32.totalorder %v1552, %v959
      %vm1745 = vcmp.eq.s32.totalorder %v1553, %v959
      %vm1746 = vcmp.eq.s32.totalorder %v1554, %v959
      %vm1747 = vcmp.eq.s32.totalorder %v1555, %v959
      %vm1748 = vcmp.eq.s32.totalorder %v1556, %v959
      %vm1749 = vcmp.eq.s32.totalorder %v1557, %v959
      %vm1750 = vcmp.eq.s32.totalorder %v1558, %v959
      %vm1751 = vcmp.eq.s32.totalorder %v1559, %v959
      %vm1752 = vcmp.eq.s32.totalorder %v1560, %v959
      %vm1753 = vcmp.eq.s32.totalorder %v1561, %v959
      %vm1754 = vcmp.eq.s32.totalorder %v1562, %v959
      %vm1755 = vcmp.eq.s32.totalorder %v1563, %v959
      %vm1756 = vcmp.eq.s32.totalorder %v1564, %v959
      %vm1757 = vcmp.eq.s32.totalorder %v1565, %v959
      %vm1758 = vcmp.eq.s32.totalorder %v1566, %v959
      %vm1759 = vcmp.eq.s32.totalorder %v1567, %v959
      %vm1760 = vcmp.eq.s32.totalorder %v1568, %v959
      %vm1761 = vcmp.eq.s32.totalorder %v1569, %v959
      %vm1762 = vcmp.eq.s32.totalorder %v1570, %v959
      %vm1763 = vcmp.eq.s32.totalorder %v1571, %v959
      %vm1764 = vcmp.eq.s32.totalorder %v1572, %v959
      %vm1765 = vcmp.eq.s32.totalorder %v1573, %v959
      %vm1766 = vcmp.eq.s32.totalorder %v1574, %v959
      %vm1767 = vcmp.eq.s32.totalorder %v1575, %v959
      %vm1768 = vcmp.eq.s32.totalorder %v1576, %v959
      %vm1769 = vcmp.eq.s32.totalorder %v1577, %v959
      %vm1770 = vcmp.eq.s32.totalorder %v1578, %v959
      %vm1771 = vcmp.eq.s32.totalorder %v1579, %v959
      %vm1772 = vcmp.eq.s32.totalorder %v1580, %v959
      %vm1773 = vcmp.eq.s32.totalorder %v1581, %v959
      %vm1774 = vcmp.eq.s32.totalorder %v1582, %v959
      %vm1775 = vcmp.eq.s32.totalorder %v1583, %v959
      %vm1776 = vcmp.eq.s32.totalorder %v1584, %v959
      %vm1777 = vcmp.eq.s32.totalorder %v1585, %v959
      %vm1778 = vcmp.eq.s32.totalorder %v1586, %v959
      %vm1779 = vcmp.eq.s32.totalorder %v1587, %v959
      %vm1780 = vcmp.eq.s32.totalorder %v1588, %v959
      %vm1781 = vcmp.eq.s32.totalorder %v1589, %v959
      %vm1782 = vcmp.eq.s32.totalorder %v1590, %v959
      %vm1783 = vcmp.eq.s32.totalorder %v1591, %v959
      %vm1784 = vcmp.eq.s32.totalorder %v1592, %v959
      %vm1785 = vcmp.eq.s32.totalorder %v1593, %v959
      %vm1786 = vcmp.eq.s32.totalorder %v1594, %v959
      %vm1787 = vcmp.eq.s32.totalorder %v1595, %v959
      %vm1788 = vcmp.eq.s32.totalorder %v1596, %v959
      %vm1789 = vcmp.eq.s32.totalorder %v1597, %v959
      %vm1790 = vcmp.eq.s32.totalorder %v1598, %v959
      %vm1791 = vcmp.eq.s32.totalorder %v1599, %v959
      %vm1792 = vcmp.eq.s32.totalorder %v1600, %v959
      %vm1793 = vcmp.eq.s32.totalorder %v1601, %v959
      %vm1794 = vcmp.eq.s32.totalorder %v1602, %v959
      %vm1795 = vcmp.eq.s32.totalorder %v1603, %v959
      %vm1796 = vcmp.eq.s32.totalorder %v1604, %v959
      %vm1797 = vcmp.eq.s32.totalorder %v1605, %v959
      %vm1798 = vcmp.eq.s32.totalorder %v1606, %v959
      %vm1799 = vcmp.eq.s32.totalorder %v1607, %v959
      %vm1800 = vcmp.eq.s32.totalorder %v1608, %v959
      %vm1801 = vcmp.eq.s32.totalorder %v1609, %v959
      %vm1802 = vcmp.eq.s32.totalorder %v1610, %v959
      %vm1803 = vcmp.eq.s32.totalorder %v1611, %v959
      %vm1804 = vcmp.eq.s32.totalorder %v1612, %v959
      %vm1805 = vcmp.eq.s32.totalorder %v1613, %v959
      %vm1806 = vcmp.eq.s32.totalorder %v1614, %v959
      %vm1807 = vcmp.eq.s32.totalorder %v1615, %v959
      %vm1808 = vcmp.eq.s32.totalorder %v1616, %v959
      %vm1809 = vcmp.eq.s32.totalorder %v1617, %v959
      %vm1810 = vcmp.eq.s32.totalorder %v1618, %v959
      %vm1811 = vcmp.eq.s32.totalorder %v1619, %v959
      %vm1812 = vcmp.eq.s32.totalorder %v1620, %v959
      %vm1813 = vcmp.eq.s32.totalorder %v1621, %v959
      %vm1814 = vcmp.eq.s32.totalorder %v1622, %v959
      %vm1815 = vcmp.eq.s32.totalorder %v1623, %v959
      %vm1816 = vcmp.eq.s32.totalorder %v1624, %v959
      %vm1817 = vcmp.eq.s32.totalorder %v1625, %v959
      %vm1818 = vcmp.eq.s32.totalorder %v1626, %v959
      %vm1819 = vcmp.eq.s32.totalorder %v1627, %v959
      %vm1820 = vcmp.eq.s32.totalorder %v1628, %v959
      %vm1821 = vcmp.eq.s32.totalorder %v1629, %v959
      %vm1822 = vcmp.eq.s32.totalorder %v1630, %v959
      %vm1823 = vcmp.eq.s32.totalorder %v1631, %v959
      %vm1824 = vcmp.eq.s32.totalorder %v1632, %v959
      %vm1825 = vcmp.eq.s32.totalorder %v1633, %v959
      %vm1826 = vcmp.eq.s32.totalorder %v1634, %v959
      %vm1827 = vcmp.eq.s32.totalorder %v1635, %v959
      %vm1828 = vcmp.eq.s32.totalorder %v1636, %v959
      %vm1829 = vcmp.eq.s32.totalorder %v1637, %v959
      %vm1830 = vcmp.eq.s32.totalorder %v1638, %v959
      %vm1831 = vcmp.eq.s32.totalorder %v1639, %v959
      %vm1832 = vcmp.eq.s32.totalorder %v1640, %v959
      %vm1833 = vcmp.eq.s32.totalorder %v1641, %v959
      %vm1834 = vcmp.eq.s32.totalorder %v1642, %v959
      %vm1835 = vcmp.eq.s32.totalorder %v1643, %v959
      %vm1836 = vcmp.eq.s32.totalorder %v1644, %v959
      %vm1837 = vcmp.eq.s32.totalorder %v1645, %v959
      %vm1838 = vcmp.eq.s32.totalorder %v1646, %v959
      %vm1839 = vcmp.eq.s32.totalorder %v1647, %v959
      %vm1840 = vcmp.eq.s32.totalorder %v1648, %v959
      %vm1841 = vcmp.eq.s32.totalorder %v1649, %v959
      %vm1842 = vcmp.eq.s32.totalorder %v1650, %v959
      %vm1843 = vcmp.eq.s32.totalorder %v1651, %v959
      %vm1844 = vcmp.eq.s32.totalorder %v1652, %v959
      %vm1845 = vcmp.eq.s32.totalorder %v1653, %v959
      %vm1846 = vcmp.eq.s32.totalorder %v1654, %v959
      %vm1847 = vcmp.eq.s32.totalorder %v1655, %v959
      %vm1848 = vcmp.eq.s32.totalorder %v1656, %v959
      %vm1849 = vcmp.eq.s32.totalorder %v1657, %v959
      %vm1850 = vcmp.eq.s32.totalorder %v1658, %v959
      %vm1851 = vcmp.eq.s32.totalorder %v1659, %v959
      %vm1852 = vcmp.eq.s32.totalorder %v1660, %v959
      %vm1853 = vcmp.eq.s32.totalorder %v1661, %v959
      %vm1854 = vcmp.eq.s32.totalorder %v1662, %v959
      %vm1855 = vcmp.eq.s32.totalorder %v1663, %v959
      %vm1856 = vcmp.eq.s32.totalorder %v1664, %v959
      %vm1857 = vcmp.eq.s32.totalorder %v1665, %v959
      %vm1858 = vcmp.eq.s32.totalorder %v1666, %v959
      %vm1859 = vcmp.eq.s32.totalorder %v1667, %v959
      %vm1860 = vcmp.eq.s32.totalorder %v1668, %v959
      %vm1861 = vcmp.eq.s32.totalorder %v1669, %v959
      %vm1862 = vcmp.eq.s32.totalorder %v1670, %v959
      %vm1863 = vcmp.eq.s32.totalorder %v1671, %v959
      %vm1864 = vcmp.eq.s32.totalorder %v1672, %v959
      %vm1865 = vcmp.eq.s32.totalorder %v1673, %v959
      %vm1866 = vcmp.eq.s32.totalorder %v1674, %v959
      %vm1867 = vcmp.eq.s32.totalorder %v1675, %v959
      %vm1868 = vcmp.eq.s32.totalorder %v1676, %v959
      %vm1869 = vcmp.eq.s32.totalorder %v1677, %v959
      %vm1870 = vcmp.eq.s32.totalorder %v1678, %v959
      %vm1871 = vcmp.eq.s32.totalorder %v1679, %v959
      %vm1872 = vcmp.eq.s32.totalorder %v1680, %v959
      %vm1873 = vcmp.eq.s32.totalorder %v1681, %v959
      %vm1874 = vcmp.eq.s32.totalorder %v1682, %v959
      %vm1875 = vcmp.eq.s32.totalorder %v1683, %v959
      %vm1876 = vcmp.eq.s32.totalorder %v1684, %v959
      %vm1877 = vcmp.eq.s32.totalorder %v1685, %v959
      %vm1878 = vcmp.eq.s32.totalorder %v1686, %v959
      %vm1879 = vcmp.eq.s32.totalorder %v1687, %v959
      %vm1880 = vcmp.eq.s32.totalorder %v1688, %v959
      %vm1881 = vcmp.eq.s32.totalorder %v1689, %v959
      %vm1882 = vcmp.eq.s32.totalorder %v1690, %v959
      %vm1883 = vcmp.eq.s32.totalorder %v1691, %v959
      %vm1884 = vcmp.eq.s32.totalorder %v1692, %v959
      %vm1885 = vcmp.eq.s32.totalorder %v1693, %v959
      %vm1886 = vcmp.eq.s32.totalorder %v1694, %v959
      %vm1887 = vcmp.eq.s32.totalorder %v1695, %v959
      %vm1888 = vcmp.eq.s32.totalorder %v1696, %v959
      %vm1889 = vcmp.eq.s32.totalorder %v1697, %v959
      %vm1890 = vcmp.eq.s32.totalorder %v1698, %v959
      %vm1891 = vcmp.eq.s32.totalorder %v1699, %v959
      %vm1892 = vcmp.eq.s32.totalorder %v1700, %v959
      %vm1893 = vcmp.eq.s32.totalorder %v1701, %v959
      %vm1894 = vcmp.eq.s32.totalorder %v1702, %v959
      %vm1895 = vcmp.eq.s32.totalorder %v1703, %v959
      %vm1896 = vcmp.eq.s32.totalorder %v1704, %v959
      %vm1897 = vcmp.eq.s32.totalorder %v1705, %v959
      %vm1898 = vcmp.eq.s32.totalorder %v1706, %v959
      %vm1899 = vcmp.eq.s32.totalorder %v1707, %v959
      %vm1900 = vcmp.eq.s32.totalorder %v1708, %v959
      %v1901 = vsel %vm1709, 1.0, 0.0
      %v1902 = vsel %vm1710, 1.0, 0.0
      %v1903 = vsel %vm1711, 1.0, 0.0
      %v1904 = vsel %vm1712, 1.0, 0.0
      %v1905 = vsel %vm1713, 1.0, 0.0
      %v1906 = vsel %vm1714, 1.0, 0.0
      %v1907 = vsel %vm1715, 1.0, 0.0
      %v1908 = vsel %vm1716, 1.0, 0.0
      %v1909 = vsel %vm1717, 1.0, 0.0
      %v1910 = vsel %vm1718, 1.0, 0.0
      %v1911 = vsel %vm1719, 1.0, 0.0
      %v1912 = vsel %vm1720, 1.0, 0.0
      %v1913 = vsel %vm1721, 1.0, 0.0
      %v1914 = vsel %vm1722, 1.0, 0.0
      %v1915 = vsel %vm1723, 1.0, 0.0
      %v1916 = vsel %vm1724, 1.0, 0.0
      %v1917 = vsel %vm1725, 1.0, 0.0
      %v1918 = vsel %vm1726, 1.0, 0.0
      %v1919 = vsel %vm1727, 1.0, 0.0
      %v1920 = vsel %vm1728, 1.0, 0.0
      %v1921 = vsel %vm1729, 1.0, 0.0
      %v1922 = vsel %vm1730, 1.0, 0.0
      %v1923 = vsel %vm1731, 1.0, 0.0
      %v1924 = vsel %vm1732, 1.0, 0.0
      %v1925 = vsel %vm1733, 1.0, 0.0
      %v1926 = vsel %vm1734, 1.0, 0.0
      %v1927 = vsel %vm1735, 1.0, 0.0
      %v1928 = vsel %vm1736, 1.0, 0.0
      %v1929 = vsel %vm1737, 1.0, 0.0
      %v1930 = vsel %vm1738, 1.0, 0.0
      %v1931 = vsel %vm1739, 1.0, 0.0
      %v1932 = vsel %vm1740, 1.0, 0.0
      %v1933 = vsel %vm1741, 1.0, 0.0
      %v1934 = vsel %vm1742, 1.0, 0.0
      %v1935 = vsel %vm1743, 1.0, 0.0
      %v1936 = vsel %vm1744, 1.0, 0.0
      %v1937 = vsel %vm1745, 1.0, 0.0
      %v1938 = vsel %vm1746, 1.0, 0.0
      %v1939 = vsel %vm1747, 1.0, 0.0
      %v1940 = vsel %vm1748, 1.0, 0.0
      %v1941 = vsel %vm1749, 1.0, 0.0
      %v1942 = vsel %vm1750, 1.0, 0.0
      %v1943 = vsel %vm1751, 1.0, 0.0
      %v1944 = vsel %vm1752, 1.0, 0.0
      %v1945 = vsel %vm1753, 1.0, 0.0
      %v1946 = vsel %vm1754, 1.0, 0.0
      %v1947 = vsel %vm1755, 1.0, 0.0
      %v1948 = vsel %vm1756, 1.0, 0.0
      %v1949 = vsel %vm1757, 1.0, 0.0
      %v1950 = vsel %vm1758, 1.0, 0.0
      %v1951 = vsel %vm1759, 1.0, 0.0
      %v1952 = vsel %vm1760, 1.0, 0.0
      %v1953 = vsel %vm1761, 1.0, 0.0
      %v1954 = vsel %vm1762, 1.0, 0.0
      %v1955 = vsel %vm1763, 1.0, 0.0
      %v1956 = vsel %vm1764, 1.0, 0.0
      %v1957 = vsel %vm1765, 1.0, 0.0
      %v1958 = vsel %vm1766, 1.0, 0.0
      %v1959 = vsel %vm1767, 1.0, 0.0
      %v1960 = vsel %vm1768, 1.0, 0.0
      %v1961 = vsel %vm1769, 1.0, 0.0
      %v1962 = vsel %vm1770, 1.0, 0.0
      %v1963 = vsel %vm1771, 1.0, 0.0
      %v1964 = vsel %vm1772, 1.0, 0.0
      %v1965 = vsel %vm1773, 1.0, 0.0
      %v1966 = vsel %vm1774, 1.0, 0.0
      %v1967 = vsel %vm1775, 1.0, 0.0
      %v1968 = vsel %vm1776, 1.0, 0.0
      %v1969 = vsel %vm1777, 1.0, 0.0
      %v1970 = vsel %vm1778, 1.0, 0.0
      %v1971 = vsel %vm1779, 1.0, 0.0
      %v1972 = vsel %vm1780, 1.0, 0.0
      %v1973 = vsel %vm1781, 1.0, 0.0
      %v1974 = vsel %vm1782, 1.0, 0.0
      %v1975 = vsel %vm1783, 1.0, 0.0
      %v1976 = vsel %vm1784, 1.0, 0.0
      %v1977 = vsel %vm1785, 1.0, 0.0
      %v1978 = vsel %vm1786, 1.0, 0.0
      %v1979 = vsel %vm1787, 1.0, 0.0
      %v1980 = vsel %vm1788, 1.0, 0.0
      %v1981 = vsel %vm1789, 1.0, 0.0
      %v1982 = vsel %vm1790, 1.0, 0.0
      %v1983 = vsel %vm1791, 1.0, 0.0
      %v1984 = vsel %vm1792, 1.0, 0.0
      %v1985 = vsel %vm1793, 1.0, 0.0
      %v1986 = vsel %vm1794, 1.0, 0.0
      %v1987 = vsel %vm1795, 1.0, 0.0
      %v1988 = vsel %vm1796, 1.0, 0.0
      %v1989 = vsel %vm1797, 1.0, 0.0
      %v1990 = vsel %vm1798, 1.0, 0.0
      %v1991 = vsel %vm1799, 1.0, 0.0
      %v1992 = vsel %vm1800, 1.0, 0.0
      %v1993 = vsel %vm1801, 1.0, 0.0
      %v1994 = vsel %vm1802, 1.0, 0.0
      %v1995 = vsel %vm1803, 1.0, 0.0
      %v1996 = vsel %vm1804, 1.0, 0.0
      %v1997 = vsel %vm1805, 1.0, 0.0
      %v1998 = vsel %vm1806, 1.0, 0.0
      %v1999 = vsel %vm1807, 1.0, 0.0
      %v2000 = vsel %vm1808, 1.0, 0.0
      %v2001 = vsel %vm1809, 1.0, 0.0
      %v2002 = vsel %vm1810, 1.0, 0.0
      %v2003 = vsel %vm1811, 1.0, 0.0
      %v2004 = vsel %vm1812, 1.0, 0.0
      %v2005 = vsel %vm1813, 1.0, 0.0
      %v2006 = vsel %vm1814, 1.0, 0.0
      %v2007 = vsel %vm1815, 1.0, 0.0
      %v2008 = vsel %vm1816, 1.0, 0.0
      %v2009 = vsel %vm1817, 1.0, 0.0
      %v2010 = vsel %vm1818, 1.0, 0.0
      %v2011 = vsel %vm1819, 1.0, 0.0
      %v2012 = vsel %vm1820, 1.0, 0.0
      %v2013 = vsel %vm1821, 1.0, 0.0
      %v2014 = vsel %vm1822, 1.0, 0.0
      %v2015 = vsel %vm1823, 1.0, 0.0
      %v2016 = vsel %vm1824, 1.0, 0.0
      %v2017 = vsel %vm1825, 1.0, 0.0
      %v2018 = vsel %vm1826, 1.0, 0.0
      %v2019 = vsel %vm1827, 1.0, 0.0
      %v2020 = vsel %vm1828, 1.0, 0.0
      %v2021 = vsel %vm1829, 1.0, 0.0
      %v2022 = vsel %vm1830, 1.0, 0.0
      %v2023 = vsel %vm1831, 1.0, 0.0
      %v2024 = vsel %vm1832, 1.0, 0.0
      %v2025 = vsel %vm1833, 1.0, 0.0
      %v2026 = vsel %vm1834, 1.0, 0.0
      %v2027 = vsel %vm1835, 1.0, 0.0
      %v2028 = vsel %vm1836, 1.0, 0.0
      %v2029 = vsel %vm1837, 1.0, 0.0
      %v2030 = vsel %vm1838, 1.0, 0.0
      %v2031 = vsel %vm1839, 1.0, 0.0
      %v2032 = vsel %vm1840, 1.0, 0.0
      %v2033 = vsel %vm1841, 1.0, 0.0
      %v2034 = vsel %vm1842, 1.0, 0.0
      %v2035 = vsel %vm1843, 1.0, 0.0
      %v2036 = vsel %vm1844, 1.0, 0.0
      %v2037 = vsel %vm1845, 1.0, 0.0
      %v2038 = vsel %vm1846, 1.0, 0.0
      %v2039 = vsel %vm1847, 1.0, 0.0
      %v2040 = vsel %vm1848, 1.0, 0.0
      %v2041 = vsel %vm1849, 1.0, 0.0
      %v2042 = vsel %vm1850, 1.0, 0.0
      %v2043 = vsel %vm1851, 1.0, 0.0
      %v2044 = vsel %vm1852, 1.0, 0.0
      %v2045 = vsel %vm1853, 1.0, 0.0
      %v2046 = vsel %vm1854, 1.0, 0.0
      %v2047 = vsel %vm1855, 1.0, 0.0
      %v2048 = vsel %vm1856, 1.0, 0.0
      %v2049 = vsel %vm1857, 1.0, 0.0
      %v2050 = vsel %vm1858, 1.0, 0.0
      %v2051 = vsel %vm1859, 1.0, 0.0
      %v2052 = vsel %vm1860, 1.0, 0.0
      %v2053 = vsel %vm1861, 1.0, 0.0
      %v2054 = vsel %vm1862, 1.0, 0.0
      %v2055 = vsel %vm1863, 1.0, 0.0
      %v2056 = vsel %vm1864, 1.0, 0.0
      %v2057 = vsel %vm1865, 1.0, 0.0
      %v2058 = vsel %vm1866, 1.0, 0.0
      %v2059 = vsel %vm1867, 1.0, 0.0
      %v2060 = vsel %vm1868, 1.0, 0.0
      %v2061 = vsel %vm1869, 1.0, 0.0
      %v2062 = vsel %vm1870, 1.0, 0.0
      %v2063 = vsel %vm1871, 1.0, 0.0
      %v2064 = vsel %vm1872, 1.0, 0.0
      %v2065 = vsel %vm1873, 1.0, 0.0
      %v2066 = vsel %vm1874, 1.0, 0.0
      %v2067 = vsel %vm1875, 1.0, 0.0
      %v2068 = vsel %vm1876, 1.0, 0.0
      %v2069 = vsel %vm1877, 1.0, 0.0
      %v2070 = vsel %vm1878, 1.0, 0.0
      %v2071 = vsel %vm1879, 1.0, 0.0
      %v2072 = vsel %vm1880, 1.0, 0.0
      %v2073 = vsel %vm1881, 1.0, 0.0
      %v2074 = vsel %vm1882, 1.0, 0.0
      %v2075 = vsel %vm1883, 1.0, 0.0
      %v2076 = vsel %vm1884, 1.0, 0.0
      %v2077 = vsel %vm1885, 1.0, 0.0
      %v2078 = vsel %vm1886, 1.0, 0.0
      %v2079 = vsel %vm1887, 1.0, 0.0
      %v2080 = vsel %vm1888, 1.0, 0.0
      %v2081 = vsel %vm1889, 1.0, 0.0
      %v2082 = vsel %vm1890, 1.0, 0.0
      %v2083 = vsel %vm1891, 1.0, 0.0
      %v2084 = vsel %vm1892, 1.0, 0.0
      %v2085 = vsel %vm1893, 1.0, 0.0
      %v2086 = vsel %vm1894, 1.0, 0.0
      %v2087 = vsel %vm1895, 1.0, 0.0
      %v2088 = vsel %vm1896, 1.0, 0.0
      %v2089 = vsel %vm1897, 1.0, 0.0
      %v2090 = vsel %vm1898, 1.0, 0.0
      %v2091 = vsel %vm1899, 1.0, 0.0
      %v2092 = vsel %vm1900, 1.0, 0.0
      %v2093 = vld [vmem:[%s1 + $0x2] sm:$0x1]
      %2094 = vmatprep.subr.mxu0 0.0
      %2095 = vmatpush1.msra.mxu0 %v1901
      %2096 = vmatprep.subr.mxu0 0.0
      %2097 = vmatpush1.msra.mxu0 %v1902
      %2098 = vmatprep.subr.mxu0 0.0
      %2099 = vmatpush1.msra.mxu0 %v1903
      %2100 = vmatprep.subr.mxu0 0.0
      %2101 = vmatpush1.msra.mxu0 %v1904
      %2102 = vmatprep.subr.mxu0 0.0
      %2103 = vmatpush1.msra.mxu0 %v1905
      %2104 = vmatprep.subr.mxu0 0.0
      %2105 = vmatpush1.msra.mxu0 %v1906
      %2106 = vmatprep.subr.mxu0 0.0
      %2107 = vmatpush1.msra.mxu0 %v1907
      %2108 = vmatprep.subr.mxu0 0.0
      %2109 = vmatpush1.msra.mxu0 %v1908
      %2110 = vmatprep.subr.mxu0 0.0
      %2111 = vmatpush1.msra.mxu0 %v1909
      %2112 = vmatprep.subr.mxu0 0.0
      %2113 = vmatpush1.msra.mxu0 %v1910
      %2114 = vmatprep.subr.mxu0 0.0
      %2115 = vmatpush1.msra.mxu0 %v1911
      %2116 = vmatprep.subr.mxu0 0.0
      %2117 = vmatpush1.msra.mxu0 %v1912
      %2118 = vmatprep.subr.mxu0 0.0
      %2119 = vmatpush1.msra.mxu0 %v1913
      %2120 = vmatprep.subr.mxu0 0.0
      %2121 = vmatpush1.msra.mxu0 %v1914
      %2122 = vmatprep.subr.mxu0 0.0
      %2123 = vmatpush1.msra.mxu0 %v1915
      %2124 = vmatprep.subr.mxu0 0.0
      %2125 = vmatpush1.msra.mxu0 %v1916
      %2126 = vmatprep.subr.mxu0 0.0
      %2127 = vmatpush1.msra.mxu0 %v1917
      %2128 = vmatprep.subr.mxu0 0.0
      %2129 = vmatpush1.msra.mxu0 %v1918
      %2130 = vmatprep.subr.mxu0 0.0
      %2131 = vmatpush1.msra.mxu0 %v1919
      %2132 = vmatprep.subr.mxu0 0.0
      %2133 = vmatpush1.msra.mxu0 %v1920
      %2134 = vmatprep.subr.mxu0 0.0
      %2135 = vmatpush1.msra.mxu0 %v1921
      %2136 = vmatprep.subr.mxu0 0.0
      %2137 = vmatpush1.msra.mxu0 %v1922
      %2138 = vmatprep.subr.mxu0 0.0
      %2139 = vmatpush1.msra.mxu0 %v1923
      %2140 = vmatprep.subr.mxu0 0.0
      %2141 = vmatpush1.msra.mxu0 %v1924
      %2142 = vmatprep.subr.mxu0 0.0
      %2143 = vmatpush1.msra.mxu0 %v1925
      %2144 = vmatprep.subr.mxu0 0.0
      %2145 = vmatpush1.msra.mxu0 %v1926
      %2146 = vmatprep.subr.mxu0 0.0
      %2147 = vmatpush1.msra.mxu0 %v1927
      %2148 = vmatprep.subr.mxu0 0.0
      %2149 = vmatpush1.msra.mxu0 %v1928
      %2150 = vmatprep.subr.mxu0 0.0
      %2151 = vmatpush1.msra.mxu0 %v1929
      %2152 = vmatprep.subr.mxu0 0.0
      %2153 = vmatpush1.msra.mxu0 %v1930
      %2154 = vmatprep.subr.mxu0 0.0
      %2155 = vmatpush1.msra.mxu0 %v1931
      %2156 = vmatprep.subr.mxu0 0.0
      %2157 = vmatpush1.msra.mxu0 %v1932
      %2158 = vmatprep.mubr.f32.mxu0 %v1220
      %2159 = vmatmul.mubr.f32.gmra.mrb[0].mxu0 %v1209
      %v2160 = vpop.f32.mrb[0].mxu0
      %v2161 = vadd.f32 %v2093, %v2160
      %v2162 = vpop.f32.mrb[0].mxu0
      %2163 = vdwg.mxu0
      %2164 = vmatprep.subr.mxu0 0.0
      %2165 = vmatpush1.msra.mxu0 %v1933
      %2166 = vmatprep.subr.mxu0 0.0
      %2167 = vmatpush1.msra.mxu0 %v1934
      %2168 = vmatprep.subr.mxu0 0.0
      %2169 = vmatpush1.msra.mxu0 %v1935
      %2170 = vmatprep.subr.mxu0 0.0
      %2171 = vmatpush1.msra.mxu0 %v1936
      %2172 = vmatprep.subr.mxu0 0.0
      %2173 = vmatpush1.msra.mxu0 %v1937
      %2174 = vmatprep.subr.mxu0 0.0
      %2175 = vmatpush1.msra.mxu0 %v1938
      %2176 = vmatprep.subr.mxu0 0.0
      %2177 = vmatpush1.msra.mxu0 %v1939
      %2178 = vmatprep.subr.mxu0 0.0
      %2179 = vmatpush1.msra.mxu0 %v1940
      %2180 = vmatprep.subr.mxu0 0.0
      %2181 = vmatpush1.msra.mxu0 %v1941
      %2182 = vmatprep.subr.mxu0 0.0
      %2183 = vmatpush1.msra.mxu0 %v1942
      %2184 = vmatprep.subr.mxu0 0.0
      %2185 = vmatpush1.msra.mxu0 %v1943
      %2186 = vmatprep.subr.mxu0 0.0
      %2187 = vmatpush1.msra.mxu0 %v1944
      %2188 = vmatprep.subr.mxu0 0.0
      %2189 = vmatpush1.msra.mxu0 %v1945
      %2190 = vmatprep.subr.mxu0 0.0
      %2191 = vmatpush1.msra.mxu0 %v1946
      %2192 = vmatprep.subr.mxu0 0.0
      %2193 = vmatpush1.msra.mxu0 %v1947
      %2194 = vmatprep.subr.mxu0 0.0
      %2195 = vmatpush1.msra.mxu0 %v1948
      %2196 = vmatprep.subr.mxu0 0.0
      %2197 = vmatpush1.msra.mxu0 %v1949
      %2198 = vmatprep.subr.mxu0 0.0
      %2199 = vmatpush1.msra.mxu0 %v1950
      %2200 = vmatprep.subr.mxu0 0.0
      %2201 = vmatpush1.msra.mxu0 %v1951
      %2202 = vmatprep.subr.mxu0 0.0
      %2203 = vmatpush1.msra.mxu0 %v1952
      %2204 = vmatprep.subr.mxu0 0.0
      %2205 = vmatpush1.msra.mxu0 %v1953
      %2206 = vmatprep.subr.mxu0 0.0
      %2207 = vmatpush1.msra.mxu0 %v1954
      %2208 = vmatprep.subr.mxu0 0.0
      %2209 = vmatpush1.msra.mxu0 %v1955
      %2210 = vmatprep.subr.mxu0 0.0
      %2211 = vmatpush1.msra.mxu0 %v1956
      %2212 = vmatprep.subr.mxu0 0.0
      %2213 = vmatpush1.msra.mxu0 %v1957
      %2214 = vmatprep.subr.mxu0 0.0
      %2215 = vmatpush1.msra.mxu0 %v1958
      %2216 = vmatprep.subr.mxu0 0.0
      %2217 = vmatpush1.msra.mxu0 %v1959
      %2218 = vmatprep.subr.mxu0 0.0
      %2219 = vmatpush1.msra.mxu0 %v1960
      %2220 = vmatprep.subr.mxu0 0.0
      %2221 = vmatpush1.msra.mxu0 %v1961
      %2222 = vmatprep.subr.mxu0 0.0
      %2223 = vmatpush1.msra.mxu0 %v1962
      %2224 = vmatprep.subr.mxu0 0.0
      %2225 = vmatpush1.msra.mxu0 %v1963
      %2226 = vmatprep.subr.mxu0 0.0
      %2227 = vmatpush1.msra.mxu0 %v1964
      %2228 = vmatprep.mubr.f32.mxu0 %v1242
      %2229 = vmatmul.mubr.f32.gmra.mrb[0].mxu0 %v1231
      %v2230 = vpop.f32.mrb[0].mxu0
      %v2231 = vadd.f32 %v2161, %v2230
      %v2232 = vpop.f32.mrb[0].mxu0
      %2233 = vdwg.mxu0
      %2234 = vmatprep.subr.mxu0 0.0
      %2235 = vmatpush1.msra.mxu0 %v1965
      %2236 = vmatprep.subr.mxu0 0.0
      %2237 = vmatpush1.msra.mxu0 %v1966
      %2238 = vmatprep.subr.mxu0 0.0
      %2239 = vmatpush1.msra.mxu0 %v1967
      %2240 = vmatprep.subr.mxu0 0.0
      %2241 = vmatpush1.msra.mxu0 %v1968
      %2242 = vmatprep.subr.mxu0 0.0
      %2243 = vmatpush1.msra.mxu0 %v1969
      %2244 = vmatprep.subr.mxu0 0.0
      %2245 = vmatpush1.msra.mxu0 %v1970
      %2246 = vmatprep.subr.mxu0 0.0
      %2247 = vmatpush1.msra.mxu0 %v1971
      %2248 = vmatprep.subr.mxu0 0.0
      %2249 = vmatpush1.msra.mxu0 %v1972
      %2250 = vmatprep.subr.mxu0 0.0
      %2251 = vmatpush1.msra.mxu0 %v1973
      %2252 = vmatprep.subr.mxu0 0.0
      %2253 = vmatpush1.msra.mxu0 %v1974
      %2254 = vmatprep.subr.mxu0 0.0
      %2255 = vmatpush1.msra.mxu0 %v1975
      %2256 = vmatprep.subr.mxu0 0.0
      %2257 = vmatpush1.msra.mxu0 %v1976
      %2258 = vmatprep.subr.mxu0 0.0
      %2259 = vmatpush1.msra.mxu0 %v1977
      %2260 = vmatprep.subr.mxu0 0.0
      %2261 = vmatpush1.msra.mxu0 %v1978
      %2262 = vmatprep.subr.mxu0 0.0
      %2263 = vmatpush1.msra.mxu0 %v1979
      %2264 = vmatprep.subr.mxu0 0.0
      %2265 = vmatpush1.msra.mxu0 %v1980
      %2266 = vmatprep.subr.mxu0 0.0
      %2267 = vmatpush1.msra.mxu0 %v1981
      %2268 = vmatprep.subr.mxu0 0.0
      %2269 = vmatpush1.msra.mxu0 %v1982
      %2270 = vmatprep.subr.mxu0 0.0
      %2271 = vmatpush1.msra.mxu0 %v1983
      %2272 = vmatprep.subr.mxu0 0.0
      %2273 = vmatpush1.msra.mxu0 %v1984
      %2274 = vmatprep.subr.mxu0 0.0
      %2275 = vmatpush1.msra.mxu0 %v1985
      %2276 = vmatprep.subr.mxu0 0.0
      %2277 = vmatpush1.msra.mxu0 %v1986
      %2278 = vmatprep.subr.mxu0 0.0
      %2279 = vmatpush1.msra.mxu0 %v1987
      %2280 = vmatprep.subr.mxu0 0.0
      %2281 = vmatpush1.msra.mxu0 %v1988
      %2282 = vmatprep.subr.mxu0 0.0
      %2283 = vmatpush1.msra.mxu0 %v1989
      %2284 = vmatprep.subr.mxu0 0.0
      %2285 = vmatpush1.msra.mxu0 %v1990
      %2286 = vmatprep.subr.mxu0 0.0
      %2287 = vmatpush1.msra.mxu0 %v1991
      %2288 = vmatprep.subr.mxu0 0.0
      %2289 = vmatpush1.msra.mxu0 %v1992
      %2290 = vmatprep.subr.mxu0 0.0
      %2291 = vmatpush1.msra.mxu0 %v1993
      %2292 = vmatprep.subr.mxu0 0.0
      %2293 = vmatpush1.msra.mxu0 %v1994
      %2294 = vmatprep.subr.mxu0 0.0
      %2295 = vmatpush1.msra.mxu0 %v1995
      %2296 = vmatprep.subr.mxu0 0.0
      %2297 = vmatpush1.msra.mxu0 %v1996
      %2298 = vmatprep.mubr.f32.mxu0 %v1264
      %2299 = vmatmul.mubr.f32.gmra.mrb[0].mxu0 %v1253
      %v2300 = vpop.f32.mrb[0].mxu0
      %v2301 = vadd.f32 %v2231, %v2300
      %v2302 = vpop.f32.mrb[0].mxu0
      %2303 = vdwg.mxu0
      %2304 = vmatprep.subr.mxu0 0.0
      %2305 = vmatpush1.msra.mxu0 %v1997
      %2306 = vmatprep.subr.mxu0 0.0
      %2307 = vmatpush1.msra.mxu0 %v1998
      %2308 = vmatprep.subr.mxu0 0.0
      %2309 = vmatpush1.msra.mxu0 %v1999
      %2310 = vmatprep.subr.mxu0 0.0
      %2311 = vmatpush1.msra.mxu0 %v2000
      %2312 = vmatprep.subr.mxu0 0.0
      %2313 = vmatpush1.msra.mxu0 %v2001
      %2314 = vmatprep.subr.mxu0 0.0
      %2315 = vmatpush1.msra.mxu0 %v2002
      %2316 = vmatprep.subr.mxu0 0.0
      %2317 = vmatpush1.msra.mxu0 %v2003
      %2318 = vmatprep.subr.mxu0 0.0
      %2319 = vmatpush1.msra.mxu0 %v2004
      %2320 = vmatprep.subr.mxu0 0.0
      %2321 = vmatpush1.msra.mxu0 %v2005
      %2322 = vmatprep.subr.mxu0 0.0
      %2323 = vmatpush1.msra.mxu0 %v2006
      %2324 = vmatprep.subr.mxu0 0.0
      %2325 = vmatpush1.msra.mxu0 %v2007
      %2326 = vmatprep.subr.mxu0 0.0
      %2327 = vmatpush1.msra.mxu0 %v2008
      %2328 = vmatprep.subr.mxu0 0.0
      %2329 = vmatpush1.msra.mxu0 %v2009
      %2330 = vmatprep.subr.mxu0 0.0
      %2331 = vmatpush1.msra.mxu0 %v2010
      %2332 = vmatprep.subr.mxu0 0.0
      %2333 = vmatpush1.msra.mxu0 %v2011
      %2334 = vmatprep.subr.mxu0 0.0
      %2335 = vmatpush1.msra.mxu0 %v2012
      %2336 = vmatprep.subr.mxu0 0.0
      %2337 = vmatpush1.msra.mxu0 %v2013
      %2338 = vmatprep.subr.mxu0 0.0
      %2339 = vmatpush1.msra.mxu0 %v2014
      %2340 = vmatprep.subr.mxu0 0.0
      %2341 = vmatpush1.msra.mxu0 %v2015
      %2342 = vmatprep.subr.mxu0 0.0
      %2343 = vmatpush1.msra.mxu0 %v2016
      %2344 = vmatprep.subr.mxu0 0.0
      %2345 = vmatpush1.msra.mxu0 %v2017
      %2346 = vmatprep.subr.mxu0 0.0
      %2347 = vmatpush1.msra.mxu0 %v2018
      %2348 = vmatprep.subr.mxu0 0.0
      %2349 = vmatpush1.msra.mxu0 %v2019
      %2350 = vmatprep.subr.mxu0 0.0
      %2351 = vmatpush1.msra.mxu0 %v2020
      %2352 = vmatprep.subr.mxu0 0.0
      %2353 = vmatpush1.msra.mxu0 %v2021
      %2354 = vmatprep.subr.mxu0 0.0
      %2355 = vmatpush1.msra.mxu0 %v2022
      %2356 = vmatprep.subr.mxu0 0.0
      %2357 = vmatpush1.msra.mxu0 %v2023
      %2358 = vmatprep.subr.mxu0 0.0
      %2359 = vmatpush1.msra.mxu0 %v2024
      %2360 = vmatprep.subr.mxu0 0.0
      %2361 = vmatpush1.msra.mxu0 %v2025
      %2362 = vmatprep.subr.mxu0 0.0
      %2363 = vmatpush1.msra.mxu0 %v2026
      %2364 = vmatprep.subr.mxu0 0.0
      %2365 = vmatpush1.msra.mxu0 %v2027
      %2366 = vmatprep.subr.mxu0 0.0
      %2367 = vmatpush1.msra.mxu0 %v2028
      %2368 = vmatprep.mubr.f32.mxu0 %v1286
      %2369 = vmatmul.mubr.f32.gmra.mrb[0].mxu0 %v1275
      %v2370 = vpop.f32.mrb[0].mxu0
      %v2371 = vadd.f32 %v2301, %v2370
      %v2372 = vpop.f32.mrb[0].mxu0
      %2373 = vdwg.mxu0
      %2374 = vmatprep.subr.mxu0 0.0
      %2375 = vmatpush1.msra.mxu0 %v2029
      %2376 = vmatprep.subr.mxu0 0.0
      %2377 = vmatpush1.msra.mxu0 %v2030
      %2378 = vmatprep.subr.mxu0 0.0
      %2379 = vmatpush1.msra.mxu0 %v2031
      %2380 = vmatprep.subr.mxu0 0.0
      %2381 = vmatpush1.msra.mxu0 %v2032
      %2382 = vmatprep.subr.mxu0 0.0
      %2383 = vmatpush1.msra.mxu0 %v2033
      %2384 = vmatprep.subr.mxu0 0.0
      %2385 = vmatpush1.msra.mxu0 %v2034
      %2386 = vmatprep.subr.mxu0 0.0
      %2387 = vmatpush1.msra.mxu0 %v2035
      %2388 = vmatprep.subr.mxu0 0.0
      %2389 = vmatpush1.msra.mxu0 %v2036
      %2390 = vmatprep.subr.mxu0 0.0
      %2391 = vmatpush1.msra.mxu0 %v2037
      %2392 = vmatprep.subr.mxu0 0.0
      %2393 = vmatpush1.msra.mxu0 %v2038
      %2394 = vmatprep.subr.mxu0 0.0
      %2395 = vmatpush1.msra.mxu0 %v2039
      %2396 = vmatprep.subr.mxu0 0.0
      %2397 = vmatpush1.msra.mxu0 %v2040
      %2398 = vmatprep.subr.mxu0 0.0
      %2399 = vmatpush1.msra.mxu0 %v2041
      %2400 = vmatprep.subr.mxu0 0.0
      %2401 = vmatpush1.msra.mxu0 %v2042
      %2402 = vmatprep.subr.mxu0 0.0
      %2403 = vmatpush1.msra.mxu0 %v2043
      %2404 = vmatprep.subr.mxu0 0.0
      %2405 = vmatpush1.msra.mxu0 %v2044
      %2406 = vmatprep.subr.mxu0 0.0
      %2407 = vmatpush1.msra.mxu0 %v2045
      %2408 = vmatprep.subr.mxu0 0.0
      %2409 = vmatpush1.msra.mxu0 %v2046
      %2410 = vmatprep.subr.mxu0 0.0
      %2411 = vmatpush1.msra.mxu0 %v2047
      %2412 = vmatprep.subr.mxu0 0.0
      %2413 = vmatpush1.msra.mxu0 %v2048
      %2414 = vmatprep.subr.mxu0 0.0
      %2415 = vmatpush1.msra.mxu0 %v2049
      %2416 = vmatprep.subr.mxu0 0.0
      %2417 = vmatpush1.msra.mxu0 %v2050
      %2418 = vmatprep.subr.mxu0 0.0
      %2419 = vmatpush1.msra.mxu0 %v2051
      %2420 = vmatprep.subr.mxu0 0.0
      %2421 = vmatpush1.msra.mxu0 %v2052
      %2422 = vmatprep.subr.mxu0 0.0
      %2423 = vmatpush1.msra.mxu0 %v2053
      %2424 = vmatprep.subr.mxu0 0.0
      %2425 = vmatpush1.msra.mxu0 %v2054
      %2426 = vmatprep.subr.mxu0 0.0
      %2427 = vmatpush1.msra.mxu0 %v2055
      %2428 = vmatprep.subr.mxu0 0.0
      %2429 = vmatpush1.msra.mxu0 %v2056
      %2430 = vmatprep.subr.mxu0 0.0
      %2431 = vmatpush1.msra.mxu0 %v2057
      %2432 = vmatprep.subr.mxu0 0.0
      %2433 = vmatpush1.msra.mxu0 %v2058
      %2434 = vmatprep.subr.mxu0 0.0
      %2435 = vmatpush1.msra.mxu0 %v2059
      %2436 = vmatprep.subr.mxu0 0.0
      %2437 = vmatpush1.msra.mxu0 %v2060
      %2438 = vmatprep.mubr.f32.mxu0 %v1308
      %2439 = vmatmul.mubr.f32.gmra.mrb[0].mxu0 %v1297
      %v2440 = vpop.f32.mrb[0].mxu0
      %v2441 = vadd.f32 %v2371, %v2440
      %v2442 = vpop.f32.mrb[0].mxu0
      %2443 = vdwg.mxu0
      %2444 = vmatprep.subr.mxu0 0.0
      %2445 = vmatpush1.msra.mxu0 %v2061
      %2446 = vmatprep.subr.mxu0 0.0
      %2447 = vmatpush1.msra.mxu0 %v2062
      %2448 = vmatprep.subr.mxu0 0.0
      %2449 = vmatpush1.msra.mxu0 %v2063
      %2450 = vmatprep.subr.mxu0 0.0
      %2451 = vmatpush1.msra.mxu0 %v2064
      %2452 = vmatprep.subr.mxu0 0.0
      %2453 = vmatpush1.msra.mxu0 %v2065
      %2454 = vmatprep.subr.mxu0 0.0
      %2455 = vmatpush1.msra.mxu0 %v2066
      %2456 = vmatprep.subr.mxu0 0.0
      %2457 = vmatpush1.msra.mxu0 %v2067
      %2458 = vmatprep.subr.mxu0 0.0
      %2459 = vmatpush1.msra.mxu0 %v2068
      %2460 = vmatprep.subr.mxu0 0.0
      %2461 = vmatpush1.msra.mxu0 %v2069
      %2462 = vmatprep.subr.mxu0 0.0
      %2463 = vmatpush1.msra.mxu0 %v2070
      %2464 = vmatprep.subr.mxu0 0.0
      %2465 = vmatpush1.msra.mxu0 %v2071
      %2466 = vmatprep.subr.mxu0 0.0
      %2467 = vmatpush1.msra.mxu0 %v2072
      %2468 = vmatprep.subr.mxu0 0.0
      %2469 = vmatpush1.msra.mxu0 %v2073
      %2470 = vmatprep.subr.mxu0 0.0
      %2471 = vmatpush1.msra.mxu0 %v2074
      %2472 = vmatprep.subr.mxu0 0.0
      %2473 = vmatpush1.msra.mxu0 %v2075
      %2474 = vmatprep.subr.mxu0 0.0
      %2475 = vmatpush1.msra.mxu0 %v2076
      %2476 = vmatprep.subr.mxu0 0.0
      %2477 = vmatpush1.msra.mxu0 %v2077
      %2478 = vmatprep.subr.mxu0 0.0
      %2479 = vmatpush1.msra.mxu0 %v2078
      %2480 = vmatprep.subr.mxu0 0.0
      %2481 = vmatpush1.msra.mxu0 %v2079
      %2482 = vmatprep.subr.mxu0 0.0
      %2483 = vmatpush1.msra.mxu0 %v2080
      %2484 = vmatprep.subr.mxu0 0.0
      %2485 = vmatpush1.msra.mxu0 %v2081
      %2486 = vmatprep.subr.mxu0 0.0
      %2487 = vmatpush1.msra.mxu0 %v2082
      %2488 = vmatprep.subr.mxu0 0.0
      %2489 = vmatpush1.msra.mxu0 %v2083
      %2490 = vmatprep.subr.mxu0 0.0
      %2491 = vmatpush1.msra.mxu0 %v2084
      %2492 = vmatprep.subr.mxu0 0.0
      %2493 = vmatpush1.msra.mxu0 %v2085
      %2494 = vmatprep.subr.mxu0 0.0
      %2495 = vmatpush1.msra.mxu0 %v2086
      %2496 = vmatprep.subr.mxu0 0.0
      %2497 = vmatpush1.msra.mxu0 %v2087
      %2498 = vmatprep.subr.mxu0 0.0
      %2499 = vmatpush1.msra.mxu0 %v2088
      %2500 = vmatprep.subr.mxu0 0.0
      %2501 = vmatpush1.msra.mxu0 %v2089
      %2502 = vmatprep.subr.mxu0 0.0
      %2503 = vmatpush1.msra.mxu0 %v2090
      %2504 = vmatprep.subr.mxu0 0.0
      %2505 = vmatpush1.msra.mxu0 %v2091
      %2506 = vmatprep.subr.mxu0 0.0
      %2507 = vmatpush1.msra.mxu0 %v2092
      %2508 = vmatprep.mubr.f32.mxu0 %v1330
      %2509 = vmatmul.mubr.f32.gmra.mrb[0].mxu0 %v1319
      %v2510 = vpop.f32.mrb[0].mxu0
      %v2511 = vadd.f32 %v2441, %v2510
      %v2512 = vpop.f32.mrb[0].mxu0
      %2513 = vdwg.mxu0
      %v2514 = vmax.f32 %v2511, 0.0
      %v2515 = vld [vmem:[%s1 + $0x3] sm:$0x1]
      %v2516 = vmul.f32 %v2514, %v2515
      %vm2517 = vcmask 253952
      %v2518 = vsel %vm2517, %v2516, 0.0
      %2519 = vadd.xlane.f32.xlu0 %v2518
      %v2520 = vpop.xlane.xlu0 %2519
      %v2521 = vld [vmem:[%s1 + $0x4] sm:$0x1]
      %v2522 = vadd.f32 %v2520, %v2521
      %v2523 = vtanh.pop %v2522
      %v2524 = vld [vmem:[%s3] sm:$0xff]
      %v2525 = vld [vmem:[%s3 + $0x8] sm:$0xff]
      %v2526 = vld [vmem:[%s3 + $0x10] sm:$0xff]
      %v2527 = vld [vmem:[%s3 + $0x18] sm:$0xff]
      %v2528 = vld [vmem:[%s3 + $0x20] sm:$0xff]
      %v2529 = vld [vmem:[%s3 + $0x28] sm:$0xff]
      %v2530 = vld [vmem:[%s3 + $0x30] sm:$0xff]
      %v2531 = vld [vmem:[%s3 + $0x38] sm:$0xff]
      %v2532 = vld [vmem:[%s3 + $0x40] sm:$0xff]
      %v2533 = vld [vmem:[%s3 + $0x48] sm:$0xff]
      %v2534 = vld [vmem:[%s3 + $0x50] sm:$0xff]
      %v2535 = vld [vmem:[%s3 + $0x58] sm:$0xff]
      %v2536 = vld [vmem:[%s3 + $0x60] sm:$0xff]
      %v2537 = vld [vmem:[%s3 + $0x68] sm:$0xff]
      %v2538 = vld [vmem:[%s3 + $0x70] sm:$0xff]
      %v2539 = vld [vmem:[%s3 + $0x78] sm:$0xff]
      %v2540 = vld [vmem:[%s3 + $0x80] sm:$0xff]
      %v2541 = vld [vmem:[%s3 + $0x88] sm:$0xff]
      %v2542 = vld [vmem:[%s3 + $0x90] sm:$0xff]
      %v2543 = vld [vmem:[%s3 + $0x98] sm:$0xff]
      %v2544 = vld [vmem:[%s3 + $0xa0] sm:$0xff]
      %v2545 = vld [vmem:[%s3 + $0xa8] sm:$0xff]
      %v2546 = vld [vmem:[%s3 + $0xb0] sm:$0xff]
      %v2547 = vld [vmem:[%s3 + $0xb8] sm:$0xff]
      %2548 = vmatprep.subr.mxu0 %v2525
      %2549 = vmatpush1.msra.mxu0 %v2524
      %2550 = vmatprep.subr.mxu0 %v2528
      %2551 = vmatpush1.msra.mxu0 %v2527
      %2552 = vmatprep.subr.mxu0 %v2531
      %2553 = vmatpush1.msra.mxu0 %v2530
      %2554 = vmatprep.subr.mxu0 %v2534
      %2555 = vmatpush1.msra.mxu0 %v2533
      %2556 = vmatprep.subr.mxu0 %v2537
      %2557 = vmatpush1.msra.mxu0 %v2536
      %2558 = vmatprep.subr.mxu0 %v2540
      %2559 = vmatpush1.msra.mxu0 %v2539
      %2560 = vmatprep.subr.mxu0 %v2543
      %2561 = vmatpush1.msra.mxu0 %v2542
      %2562 = vmatprep.subr.mxu0 %v2546
      %2563 = vmatpush1.msra.mxu0 %v2545
      %2564 = vmatprep.subr.mxu0 0.0
      %2565 = vmatpush1.msra.mxu0 0.0
      %2566 = vmatprep.subr.mxu0 0.0
      %2567 = vmatpush1.msra.mxu0 0.0
      %2568 = vmatprep.subr.mxu0 0.0
      %2569 = vmatpush1.msra.mxu0 0.0
      %2570 = vmatprep.subr.mxu0 0.0
      %2571 = vmatpush1.msra.mxu0 0.0
      %2572 = vmatprep.subr.mxu0 0.0
      %2573 = vmatpush1.msra.mxu0 0.0
      %2574 = vmatprep.subr.mxu0 0.0
      %2575 = vmatpush1.msra.mxu0 0.0
      %2576 = vmatprep.subr.mxu0 0.0
      %2577 = vmatpush1.msra.mxu0 0.0
      %2578 = vmatprep.subr.mxu0 0.0
      %2579 = vmatpush1.msra.mxu0 0.0
      %2580 = vmatprep.subr.mxu0 0.0
      %2581 = vmatpush1.msra.mxu0 0.0
      %2582 = vmatprep.subr.mxu0 0.0
      %2583 = vmatpush1.msra.mxu0 0.0
      %2584 = vmatprep.subr.mxu0 0.0
      %2585 = vmatpush1.msra.mxu0 0.0
      %2586 = vmatprep.subr.mxu0 0.0
      %2587 = vmatpush1.msra.mxu0 0.0
      %2588 = vmatprep.subr.mxu0 0.0
      %2589 = vmatpush1.msra.mxu0 0.0
      %2590 = vmatprep.subr.mxu0 0.0
      %2591 = vmatpush1.msra.mxu0 0.0
      %2592 = vmatprep.subr.mxu0 0.0
      %2593 = vmatpush1.msra.mxu0 0.0
      %2594 = vmatprep.subr.mxu0 0.0
      %2595 = vmatpush1.msra.mxu0 0.0
      %2596 = vmatprep.subr.mxu0 0.0
      %2597 = vmatpush1.msra.mxu0 0.0
      %2598 = vmatprep.subr.mxu0 0.0
      %2599 = vmatpush1.msra.mxu0 0.0
      %2600 = vmatprep.subr.mxu0 0.0
      %2601 = vmatpush1.msra.mxu0 0.0
      %2602 = vmatprep.subr.mxu0 0.0
      %2603 = vmatpush1.msra.mxu0 0.0
      %2604 = vmatprep.subr.mxu0 0.0
      %2605 = vmatpush1.msra.mxu0 0.0
      %2606 = vmatprep.subr.mxu0 0.0
      %2607 = vmatpush1.msra.mxu0 0.0
      %2608 = vmatprep.subr.mxu0 0.0
      %2609 = vmatpush1.msra.mxu0 0.0
      %2610 = vmatprep.subr.mxu0 0.0
      %2611 = vmatpush1.msra.mxu0 0.0
      %2612 = vmatprep.mubr.f32.mxu0 0.0
      %2613 = vmatmul.mubr.f32.gmra.mrb[0].mxu0 %v328
      %v2614 = vpop.f32.mrb[0].mxu0
      %v2615 = vadd.f32 0.0, %v2614
      %v2616 = vpop.f32.mrb[0].mxu0
      %v2617 = vadd.f32 0.0, %v2616
      %2618 = vmatprep.mubr.f32.mxu0 0.0
      %2619 = vmatmul.mubr.f32.gmra.mrb[0].mxu0 %v331
      %v2620 = vpop.f32.mrb[0].mxu0
      %v2621 = vadd.f32 0.0, %v2620
      %v2622 = vpop.f32.mrb[0].mxu0
      %v2623 = vadd.f32 0.0, %v2622
      %2624 = vmatprep.mubr.f32.mxu0 0.0
      %2625 = vmatmul.mubr.f32.gmra.mrb[0].mxu0 %v334
      %v2626 = vpop.f32.mrb[0].mxu0
      %v2627 = vadd.f32 0.0, %v2626
      %v2628 = vpop.f32.mrb[0].mxu0
      %v2629 = vadd.f32 0.0, %v2628
      %2630 = vmatprep.mubr.f32.mxu0 0.0
      %2631 = vmatmul.mubr.f32.gmra.mrb[0].mxu0 %v337
      %v2632 = vpop.f32.mrb[0].mxu0
      %v2633 = vadd.f32 0.0, %v2632
      %v2634 = vpop.f32.mrb[0].mxu0
      %v2635 = vadd.f32 0.0, %v2634
      %2636 = vmatprep.mubr.f32.mxu0 0.0
      %2637 = vmatmul.mubr.f32.gmra.mrb[0].mxu0 %v340
      %v2638 = vpop.f32.mrb[0].mxu0
      %v2639 = vadd.f32 0.0, %v2638
      %v2640 = vpop.f32.mrb[0].mxu0
      %v2641 = vadd.f32 0.0, %v2640
      %2642 = vmatprep.mubr.f32.mxu0 0.0
      %2643 = vmatmul.mubr.f32.gmra.mrb[0].mxu0 %v343
      %v2644 = vpop.f32.mrb[0].mxu0
      %v2645 = vadd.f32 0.0, %v2644
      %v2646 = vpop.f32.mrb[0].mxu0
      %v2647 = vadd.f32 0.0, %v2646
      %2648 = vdwg.mxu0
      %2649 = vmatprep.subr.mxu0 0.0
      %2650 = vmatpush1.msra.mxu0 %v2526
      %2651 = vmatprep.subr.mxu0 0.0
      %2652 = vmatpush1.msra.mxu0 %v2529
      %2653 = vmatprep.subr.mxu0 0.0
      %2654 = vmatpush1.msra.mxu0 %v2532
      %2655 = vmatprep.subr.mxu0 0.0
      %2656 = vmatpush1.msra.mxu0 %v2535
      %2657 = vmatprep.subr.mxu0 0.0
      %2658 = vmatpush1.msra.mxu0 %v2538
      %2659 = vmatprep.subr.mxu0 0.0
      %2660 = vmatpush1.msra.mxu0 %v2541
      %2661 = vmatprep.subr.mxu0 0.0
      %2662 = vmatpush1.msra.mxu0 %v2544
      %2663 = vmatprep.subr.mxu0 0.0
      %2664 = vmatpush1.msra.mxu0 %v2547
      %2665 = vmatprep.subr.mxu0 0.0
      %2666 = vmatpush1.msra.mxu0 0.0
      %2667 = vmatprep.subr.mxu0 0.0
      %2668 = vmatpush1.msra.mxu0 0.0
      %2669 = vmatprep.subr.mxu0 0.0
      %2670 = vmatpush1.msra.mxu0 0.0
      %2671 = vmatprep.subr.mxu0 0.0
      %2672 = vmatpush1.msra.mxu0 0.0
      %2673 = vmatprep.subr.mxu0 0.0
      %2674 = vmatpush1.msra.mxu0 0.0
      %2675 = vmatprep.subr.mxu0 0.0
      %2676 = vmatpush1.msra.mxu0 0.0
      %2677 = vmatprep.subr.mxu0 0.0
      %2678 = vmatpush1.msra.mxu0 0.0
      %2679 = vmatprep.subr.mxu0 0.0
      %2680 = vmatpush1.msra.mxu0 0.0
      %2681 = vmatprep.subr.mxu0 0.0
      %2682 = vmatpush1.msra.mxu0 0.0
      %2683 = vmatprep.subr.mxu0 0.0
      %2684 = vmatpush1.msra.mxu0 0.0
      %2685 = vmatprep.subr.mxu0 0.0
      %2686 = vmatpush1.msra.mxu0 0.0
      %2687 = vmatprep.subr.mxu0 0.0
      %2688 = vmatpush1.msra.mxu0 0.0
      %2689 = vmatprep.subr.mxu0 0.0
      %2690 = vmatpush1.msra.mxu0 0.0
      %2691 = vmatprep.subr.mxu0 0.0
      %2692 = vmatpush1.msra.mxu0 0.0
      %2693 = vmatprep.subr.mxu0 0.0
      %2694 = vmatpush1.msra.mxu0 0.0
      %2695 = vmatprep.subr.mxu0 0.0
      %2696 = vmatpush1.msra.mxu0 0.0
      %2697 = vmatprep.subr.mxu0 0.0
      %2698 = vmatpush1.msra.mxu0 0.0
      %2699 = vmatprep.subr.mxu0 0.0
      %2700 = vmatpush1.msra.mxu0 0.0
      %2701 = vmatprep.subr.mxu0 0.0
      %2702 = vmatpush1.msra.mxu0 0.0
      %2703 = vmatprep.subr.mxu0 0.0
      %2704 = vmatpush1.msra.mxu0 0.0
      %2705 = vmatprep.subr.mxu0 0.0
      %2706 = vmatpush1.msra.mxu0 0.0
      %2707 = vmatprep.subr.mxu0 0.0
      %2708 = vmatpush1.msra.mxu0 0.0
      %2709 = vmatprep.subr.mxu0 0.0
      %2710 = vmatpush1.msra.mxu0 0.0
      %2711 = vmatprep.subr.mxu0 0.0
      %2712 = vmatpush1.msra.mxu0 0.0
      %2713 = vmatprep.mubr.f32.mxu0 0.0
      %2714 = vmatmul.mubr.f32.gmra.mrb[0].mxu0 %v328
      %v2715 = vpop.f32.mrb[0].mxu0
      %v2716 = vadd.f32 0.0, %v2715
      %v2717 = vpop.f32.mrb[0].mxu0
      %2718 = vmatprep.mubr.f32.mxu0 0.0
      %2719 = vmatmul.mubr.f32.gmra.mrb[0].mxu0 %v331
      %v2720 = vpop.f32.mrb[0].mxu0
      %v2721 = vadd.f32 0.0, %v2720
      %v2722 = vpop.f32.mrb[0].mxu0
      %2723 = vmatprep.mubr.f32.mxu0 0.0
      %2724 = vmatmul.mubr.f32.gmra.mrb[0].mxu0 %v334
      %v2725 = vpop.f32.mrb[0].mxu0
      %v2726 = vadd.f32 0.0, %v2725
      %v2727 = vpop.f32.mrb[0].mxu0
      %2728 = vmatprep.mubr.f32.mxu0 0.0
      %2729 = vmatmul.mubr.f32.gmra.mrb[0].mxu0 %v337
      %v2730 = vpop.f32.mrb[0].mxu0
      %v2731 = vadd.f32 0.0, %v2730
      %v2732 = vpop.f32.mrb[0].mxu0
      %2733 = vmatprep.mubr.f32.mxu0 0.0
      %2734 = vmatmul.mubr.f32.gmra.mrb[0].mxu0 %v340
      %v2735 = vpop.f32.mrb[0].mxu0
      %v2736 = vadd.f32 0.0, %v2735
      %v2737 = vpop.f32.mrb[0].mxu0
      %2738 = vmatprep.mubr.f32.mxu0 0.0
      %2739 = vmatmul.mubr.f32.gmra.mrb[0].mxu0 %v343
      %v2740 = vpop.f32.mrb[0].mxu0
      %v2741 = vadd.f32 0.0, %v2740
      %v2742 = vpop.f32.mrb[0].mxu0
      %2743 = vdwg.mxu0
      %v2744 = vshra.s32 %v959, 3
      %v2745 = vshra.s32 %v960, 3
      %v2746 = vshra.s32 %v961, 3
      %vm2747 = vcmp.eq.s32.totalorder %v952, %v2744
      %vm2748 = vcmp.eq.s32.totalorder %v952, %v2745
      %vm2749 = vcmp.eq.s32.totalorder %v952, %v2746
      %vm2750 = vcmp.eq.s32.totalorder %v953, %v2744
      %vm2751 = vcmp.eq.s32.totalorder %v953, %v2745
      %vm2752 = vcmp.eq.s32.totalorder %v953, %v2746
      %vm2753 = vcmp.eq.s32.totalorder %v954, %v2744
      %vm2754 = vcmp.eq.s32.totalorder %v954, %v2745
      %vm2755 = vcmp.eq.s32.totalorder %v954, %v2746
      %vm2756 = vcmp.eq.s32.totalorder %v955, %v2744
      %vm2757 = vcmp.eq.s32.totalorder %v955, %v2745
      %vm2758 = vcmp.eq.s32.totalorder %v955, %v2746
      %vm2759 = vcmp.eq.s32.totalorder %v956, %v2744
      %vm2760 = vcmp.eq.s32.totalorder %v956, %v2745
      %vm2761 = vcmp.eq.s32.totalorder %v956, %v2746
      %vm2762 = vcmp.eq.s32.totalorder %v957, %v2744
      %vm2763 = vcmp.eq.s32.totalorder %v957, %v2745
      %vm2764 = vcmp.eq.s32.totalorder %v957, %v2746
      %v2765 = vsel %vm2747, 1.0, 0.0
      %v2766 = vsel %vm2748, 1.0, 0.0
      %v2767 = vsel %vm2749, 1.0, 0.0
      %v2768 = vsel %vm2750, 1.0, 0.0
      %v2769 = vsel %vm2751, 1.0, 0.0
      %v2770 = vsel %vm2752, 1.0, 0.0
      %v2771 = vsel %vm2753, 1.0, 0.0
      %v2772 = vsel %vm2754, 1.0, 0.0
      %v2773 = vsel %vm2755, 1.0, 0.0
      %v2774 = vsel %vm2756, 1.0, 0.0
      %v2775 = vsel %vm2757, 1.0, 0.0
      %v2776 = vsel %vm2758, 1.0, 0.0
      %v2777 = vsel %vm2759, 1.0, 0.0
      %v2778 = vsel %vm2760, 1.0, 0.0
      %v2779 = vsel %vm2761, 1.0, 0.0
      %v2780 = vsel %vm2762, 1.0, 0.0
      %v2781 = vsel %vm2763, 1.0, 0.0
      %v2782 = vsel %vm2764, 1.0, 0.0
      %v2783 = vmul.f32 %v2615, %v2765
      %v2784 = vmul.f32 %v2617, %v2766
      %v2785 = vmul.f32 %v2716, %v2767
      %v2786 = vmul.f32 %v2621, %v2768
      %v2787 = vmul.f32 %v2623, %v2769
      %v2788 = vmul.f32 %v2721, %v2770
      %v2789 = vmul.f32 %v2627, %v2771
      %v2790 = vmul.f32 %v2629, %v2772
      %v2791 = vmul.f32 %v2726, %v2773
      %v2792 = vmul.f32 %v2633, %v2774
      %v2793 = vmul.f32 %v2635, %v2775
      %v2794 = vmul.f32 %v2731, %v2776
      %v2795 = vmul.f32 %v2639, %v2777
      %v2796 = vmul.f32 %v2641, %v2778
      %v2797 = vmul.f32 %v2736, %v2779
      %v2798 = vmul.f32 %v2645, %v2780
      %v2799 = vmul.f32 %v2647, %v2781
      %v2800 = vmul.f32 %v2741, %v2782
      %v2801 = vadd.f32 %v2783, %v2786
      %v2802 = vadd.f32 %v2801, %v2789
      %v2803 = vadd.f32 %v2802, %v2792
      %v2804 = vadd.f32 %v2803, %v2795
      %v2805 = vadd.f32 %v2804, %v2798
      %v2806 = vrot.slane %v2805, 4
      %v2807 = vadd.f32 %v2805, %v2806
      %v2808 = vrot.slane %v2807, 2
      %v2809 = vadd.f32 %v2807, %v2808
      %v2810 = vrot.slane %v2809, 1
      %v2811 = vadd.f32 %v2809, %v2810
      %v2812 = vadd.f32 %v2784, %v2787
      %v2813 = vadd.f32 %v2812, %v2790
      %v2814 = vadd.f32 %v2813, %v2793
      %v2815 = vadd.f32 %v2814, %v2796
      %v2816 = vadd.f32 %v2815, %v2799
      %v2817 = vrot.slane %v2816, 4
      %v2818 = vadd.f32 %v2816, %v2817
      %v2819 = vrot.slane %v2818, 2
      %v2820 = vadd.f32 %v2818, %v2819
      %v2821 = vrot.slane %v2820, 1
      %v2822 = vadd.f32 %v2820, %v2821
      %v2823 = vadd.f32 %v2785, %v2788
      %v2824 = vadd.f32 %v2823, %v2791
      %v2825 = vadd.f32 %v2824, %v2794
      %v2826 = vadd.f32 %v2825, %v2797
      %v2827 = vadd.f32 %v2826, %v2800
      %v2828 = vrot.slane %v2827, 4
      %v2829 = vadd.f32 %v2827, %v2828
      %v2830 = vrot.slane %v2829, 2
      %v2831 = vadd.f32 %v2829, %v2830
      %v2832 = vrot.slane %v2831, 1
      %v2833 = vadd.f32 %v2831, %v2832
      %v2834 = vand.u32 %v952, 7
      %v2835 = vand.u32 %v953, 7
      %v2836 = vand.u32 %v954, 7
      %v2837 = vand.u32 %v955, 7
      %v2838 = vand.u32 %v956, 7
      %v2839 = vand.u32 %v957, 7
      %v2840 = vand.u32 %v1331, 7
      %v2841 = vand.u32 %v1332, 7
      %v2842 = vand.u32 %v1333, 7
      %v2843 = vand.u32 %v1334, 7
      %v2844 = vand.u32 %v1335, 7
      %v2845 = vand.u32 %v1336, 7
      %v2846 = vand.u32 %v1337, 7
      %v2847 = vand.u32 %v1338, 7
      %v2848 = vand.u32 %v1339, 7
      %v2849 = vand.u32 %v1340, 7
      %v2850 = vand.u32 %v1341, 7
      %v2851 = vand.u32 %v1342, 7
      %v2852 = vand.u32 %v1343, 7
      %v2853 = vand.u32 %v1344, 7
      %v2854 = vand.u32 %v1345, 7
      %v2855 = vand.u32 %v1346, 7
      %v2856 = vand.u32 %v1347, 7
      %v2857 = vand.u32 %v1348, 7
      %v2858 = vand.u32 %v1349, 7
      %v2859 = vand.u32 %v1350, 7
      %v2860 = vand.u32 %v1351, 7
      %v2861 = vand.u32 %v1352, 7
      %v2862 = vand.u32 %v1353, 7
      %v2863 = vand.u32 %v1354, 7
      %v2864 = vand.u32 %v1355, 7
      %v2865 = vand.u32 %v1356, 7
      %v2866 = vand.u32 %v1357, 7
      %v2867 = vand.u32 %v1358, 7
      %v2868 = vand.u32 %v1359, 7
      %v2869 = vand.u32 %v1360, 7
      %v2870 = vand.u32 %v1361, 7
      %v2871 = vand.u32 %v1362, 7
      %v2872 = vand.u32 %v1363, 7
      %v2873 = vand.u32 %v1364, 7
      %v2874 = vand.u32 %v1365, 7
      %v2875 = vand.u32 %v1366, 7
      %v2876 = vand.u32 %v1367, 7
      %v2877 = vand.u32 %v1368, 7
      %v2878 = vand.u32 %v1369, 7
      %v2879 = vand.u32 %v1370, 7
      %v2880 = vand.u32 %v1371, 7
      %v2881 = vand.u32 %v1372, 7
      %vm2882 = vcmp.eq.s32.totalorder %v2834, %v959
      %vm2883 = vcmp.eq.s32.totalorder %v2835, %v959
      %vm2884 = vcmp.eq.s32.totalorder %v2836, %v959
      %vm2885 = vcmp.eq.s32.totalorder %v2837, %v959
      %vm2886 = vcmp.eq.s32.totalorder %v2838, %v959
      %vm2887 = vcmp.eq.s32.totalorder %v2839, %v959
      %vm2888 = vcmp.eq.s32.totalorder %v2840, %v959
      %vm2889 = vcmp.eq.s32.totalorder %v2841, %v959
      %vm2890 = vcmp.eq.s32.totalorder %v2842, %v959
      %vm2891 = vcmp.eq.s32.totalorder %v2843, %v959
      %vm2892 = vcmp.eq.s32.totalorder %v2844, %v959
      %vm2893 = vcmp.eq.s32.totalorder %v2845, %v959
      %vm2894 = vcmp.eq.s32.totalorder %v2846, %v959
      %vm2895 = vcmp.eq.s32.totalorder %v2847, %v959
      %vm2896 = vcmp.eq.s32.totalorder %v2848, %v959
      %vm2897 = vcmp.eq.s32.totalorder %v2849, %v959
      %vm2898 = vcmp.eq.s32.totalorder %v2850, %v959
      %vm2899 = vcmp.eq.s32.totalorder %v2851, %v959
      %vm2900 = vcmp.eq.s32.totalorder %v2852, %v959
      %vm2901 = vcmp.eq.s32.totalorder %v2853, %v959
      %vm2902 = vcmp.eq.s32.totalorder %v2854, %v959
      %vm2903 = vcmp.eq.s32.totalorder %v2855, %v959
      %vm2904 = vcmp.eq.s32.totalorder %v2856, %v959
      %vm2905 = vcmp.eq.s32.totalorder %v2857, %v959
      %vm2906 = vcmp.eq.s32.totalorder %v2858, %v959
      %vm2907 = vcmp.eq.s32.totalorder %v2859, %v959
      %vm2908 = vcmp.eq.s32.totalorder %v2860, %v959
      %vm2909 = vcmp.eq.s32.totalorder %v2861, %v959
      %vm2910 = vcmp.eq.s32.totalorder %v2862, %v959
      %vm2911 = vcmp.eq.s32.totalorder %v2863, %v959
      %vm2912 = vcmp.eq.s32.totalorder %v2864, %v959
      %vm2913 = vcmp.eq.s32.totalorder %v2865, %v959
      %vm2914 = vcmp.eq.s32.totalorder %v2866, %v959
      %vm2915 = vcmp.eq.s32.totalorder %v2867, %v959
      %vm2916 = vcmp.eq.s32.totalorder %v2868, %v959
      %vm2917 = vcmp.eq.s32.totalorder %v2869, %v959
      %vm2918 = vcmp.eq.s32.totalorder %v2870, %v959
      %vm2919 = vcmp.eq.s32.totalorder %v2871, %v959
      %vm2920 = vcmp.eq.s32.totalorder %v2872, %v959
      %vm2921 = vcmp.eq.s32.totalorder %v2873, %v959
      %vm2922 = vcmp.eq.s32.totalorder %v2874, %v959
      %vm2923 = vcmp.eq.s32.totalorder %v2875, %v959
      %vm2924 = vcmp.eq.s32.totalorder %v2876, %v959
      %vm2925 = vcmp.eq.s32.totalorder %v2877, %v959
      %vm2926 = vcmp.eq.s32.totalorder %v2878, %v959
      %vm2927 = vcmp.eq.s32.totalorder %v2879, %v959
      %vm2928 = vcmp.eq.s32.totalorder %v2880, %v959
      %vm2929 = vcmp.eq.s32.totalorder %v2881, %v959
      %v2930 = vsel %vm2882, 1.0, 0.0
      %v2931 = vsel %vm2883, 1.0, 0.0
      %v2932 = vsel %vm2884, 1.0, 0.0
      %v2933 = vsel %vm2885, 1.0, 0.0
      %v2934 = vsel %vm2886, 1.0, 0.0
      %v2935 = vsel %vm2887, 1.0, 0.0
      %v2936 = vsel %vm2888, 1.0, 0.0
      %v2937 = vsel %vm2889, 1.0, 0.0
      %v2938 = vsel %vm2890, 1.0, 0.0
      %v2939 = vsel %vm2891, 1.0, 0.0
      %v2940 = vsel %vm2892, 1.0, 0.0
      %v2941 = vsel %vm2893, 1.0, 0.0
      %v2942 = vsel %vm2894, 1.0, 0.0
      %v2943 = vsel %vm2895, 1.0, 0.0
      %v2944 = vsel %vm2896, 1.0, 0.0
      %v2945 = vsel %vm2897, 1.0, 0.0
      %v2946 = vsel %vm2898, 1.0, 0.0
      %v2947 = vsel %vm2899, 1.0, 0.0
      %v2948 = vsel %vm2900, 1.0, 0.0
      %v2949 = vsel %vm2901, 1.0, 0.0
      %v2950 = vsel %vm2902, 1.0, 0.0
      %v2951 = vsel %vm2903, 1.0, 0.0
      %v2952 = vsel %vm2904, 1.0, 0.0
      %v2953 = vsel %vm2905, 1.0, 0.0
      %v2954 = vsel %vm2906, 1.0, 0.0
      %v2955 = vsel %vm2907, 1.0, 0.0
      %v2956 = vsel %vm2908, 1.0, 0.0
      %v2957 = vsel %vm2909, 1.0, 0.0
      %v2958 = vsel %vm2910, 1.0, 0.0
      %v2959 = vsel %vm2911, 1.0, 0.0
      %v2960 = vsel %vm2912, 1.0, 0.0
      %v2961 = vsel %vm2913, 1.0, 0.0
      %v2962 = vsel %vm2914, 1.0, 0.0
      %v2963 = vsel %vm2915, 1.0, 0.0
      %v2964 = vsel %vm2916, 1.0, 0.0
      %v2965 = vsel %vm2917, 1.0, 0.0
      %v2966 = vsel %vm2918, 1.0, 0.0
      %v2967 = vsel %vm2919, 1.0, 0.0
      %v2968 = vsel %vm2920, 1.0, 0.0
      %v2969 = vsel %vm2921, 1.0, 0.0
      %v2970 = vsel %vm2922, 1.0, 0.0
      %v2971 = vsel %vm2923, 1.0, 0.0
      %v2972 = vsel %vm2924, 1.0, 0.0
      %v2973 = vsel %vm2925, 1.0, 0.0
      %v2974 = vsel %vm2926, 1.0, 0.0
      %v2975 = vsel %vm2927, 1.0, 0.0
      %v2976 = vsel %vm2928, 1.0, 0.0
      %v2977 = vsel %vm2929, 1.0, 0.0
      %2978 = vmatprep.subr.mxu0 0.0
      %2979 = vmatpush1.msra.mxu0 %v2930
      %2980 = vmatprep.subr.mxu0 0.0
      %2981 = vmatpush1.msra.mxu0 %v2931
      %2982 = vmatprep.subr.mxu0 0.0
      %2983 = vmatpush1.msra.mxu0 %v2932
      %2984 = vmatprep.subr.mxu0 0.0
      %2985 = vmatpush1.msra.mxu0 %v2933
      %2986 = vmatprep.subr.mxu0 0.0
      %2987 = vmatpush1.msra.mxu0 %v2934
      %2988 = vmatprep.subr.mxu0 0.0
      %2989 = vmatpush1.msra.mxu0 %v2935
      %2990 = vmatprep.subr.mxu0 0.0
      %2991 = vmatpush1.msra.mxu0 %v2936
      %2992 = vmatprep.subr.mxu0 0.0
      %2993 = vmatpush1.msra.mxu0 %v2937
      %2994 = vmatprep.subr.mxu0 0.0
      %2995 = vmatpush1.msra.mxu0 %v2938
      %2996 = vmatprep.subr.mxu0 0.0
      %2997 = vmatpush1.msra.mxu0 %v2939
      %2998 = vmatprep.subr.mxu0 0.0
      %2999 = vmatpush1.msra.mxu0 %v2940
      %3000 = vmatprep.subr.mxu0 0.0
      %3001 = vmatpush1.msra.mxu0 %v2941
      %3002 = vmatprep.subr.mxu0 0.0
      %3003 = vmatpush1.msra.mxu0 %v2942
      %3004 = vmatprep.subr.mxu0 0.0
      %3005 = vmatpush1.msra.mxu0 %v2943
      %3006 = vmatprep.subr.mxu0 0.0
      %3007 = vmatpush1.msra.mxu0 %v2944
      %3008 = vmatprep.subr.mxu0 0.0
      %3009 = vmatpush1.msra.mxu0 %v2945
      %3010 = vmatprep.subr.mxu0 0.0
      %3011 = vmatpush1.msra.mxu0 %v2946
      %3012 = vmatprep.subr.mxu0 0.0
      %3013 = vmatpush1.msra.mxu0 %v2947
      %3014 = vmatprep.subr.mxu0 0.0
      %3015 = vmatpush1.msra.mxu0 %v2948
      %3016 = vmatprep.subr.mxu0 0.0
      %3017 = vmatpush1.msra.mxu0 %v2949
      %3018 = vmatprep.subr.mxu0 0.0
      %3019 = vmatpush1.msra.mxu0 %v2950
      %3020 = vmatprep.subr.mxu0 0.0
      %3021 = vmatpush1.msra.mxu0 %v2951
      %3022 = vmatprep.subr.mxu0 0.0
      %3023 = vmatpush1.msra.mxu0 %v2952
      %3024 = vmatprep.subr.mxu0 0.0
      %3025 = vmatpush1.msra.mxu0 %v2953
      %3026 = vmatprep.subr.mxu0 0.0
      %3027 = vmatpush1.msra.mxu0 %v2954
      %3028 = vmatprep.subr.mxu0 0.0
      %3029 = vmatpush1.msra.mxu0 %v2955
      %3030 = vmatprep.subr.mxu0 0.0
      %3031 = vmatpush1.msra.mxu0 %v2956
      %3032 = vmatprep.subr.mxu0 0.0
      %3033 = vmatpush1.msra.mxu0 %v2957
      %3034 = vmatprep.subr.mxu0 0.0
      %3035 = vmatpush1.msra.mxu0 %v2958
      %3036 = vmatprep.subr.mxu0 0.0
      %3037 = vmatpush1.msra.mxu0 %v2959
      %3038 = vmatprep.subr.mxu0 0.0
      %3039 = vmatpush1.msra.mxu0 %v2960
      %3040 = vmatprep.subr.mxu0 0.0
      %3041 = vmatpush1.msra.mxu0 %v2961
      %3042 = vmatprep.mubr.f32.mxu0 %v2822
      %3043 = vmatmul.mubr.f32.gmra.mrb[0].mxu0 %v2811
      %v3044 = vpop.f32.mrb[0].mxu0
      %v3045 = vadd.f32 0.0, %v3044
      %v3046 = vpop.f32.mrb[0].mxu0
      %3047 = vdwg.mxu0
      %3048 = vmatprep.subr.mxu0 0.0
      %3049 = vmatpush1.msra.mxu0 %v2962
      %3050 = vmatprep.subr.mxu0 0.0
      %3051 = vmatpush1.msra.mxu0 %v2963
      %3052 = vmatprep.subr.mxu0 0.0
      %3053 = vmatpush1.msra.mxu0 %v2964
      %3054 = vmatprep.subr.mxu0 0.0
      %3055 = vmatpush1.msra.mxu0 %v2965
      %3056 = vmatprep.subr.mxu0 0.0
      %3057 = vmatpush1.msra.mxu0 %v2966
      %3058 = vmatprep.subr.mxu0 0.0
      %3059 = vmatpush1.msra.mxu0 %v2967
      %3060 = vmatprep.subr.mxu0 0.0
      %3061 = vmatpush1.msra.mxu0 %v2968
      %3062 = vmatprep.subr.mxu0 0.0
      %3063 = vmatpush1.msra.mxu0 %v2969
      %3064 = vmatprep.subr.mxu0 0.0
      %3065 = vmatpush1.msra.mxu0 %v2970
      %3066 = vmatprep.subr.mxu0 0.0
      %3067 = vmatpush1.msra.mxu0 %v2971
      %3068 = vmatprep.subr.mxu0 0.0
      %3069 = vmatpush1.msra.mxu0 %v2972
      %3070 = vmatprep.subr.mxu0 0.0
      %3071 = vmatpush1.msra.mxu0 %v2973
      %3072 = vmatprep.subr.mxu0 0.0
      %3073 = vmatpush1.msra.mxu0 %v2974
      %3074 = vmatprep.subr.mxu0 0.0
      %3075 = vmatpush1.msra.mxu0 %v2975
      %3076 = vmatprep.subr.mxu0 0.0
      %3077 = vmatpush1.msra.mxu0 %v2976
      %3078 = vmatprep.subr.mxu0 0.0
      %3079 = vmatpush1.msra.mxu0 %v2977
      %3080 = vmatprep.subr.mxu0 0.0
      %3081 = vmatpush1.msra.mxu0 0.0
      %3082 = vmatprep.subr.mxu0 0.0
      %3083 = vmatpush1.msra.mxu0 0.0
      %3084 = vmatprep.subr.mxu0 0.0
      %3085 = vmatpush1.msra.mxu0 0.0
      %3086 = vmatprep.subr.mxu0 0.0
      %3087 = vmatpush1.msra.mxu0 0.0
      %3088 = vmatprep.subr.mxu0 0.0
      %3089 = vmatpush1.msra.mxu0 0.0
      %3090 = vmatprep.subr.mxu0 0.0
      %3091 = vmatpush1.msra.mxu0 0.0
      %3092 = vmatprep.subr.mxu0 0.0
      %3093 = vmatpush1.msra.mxu0 0.0
      %3094 = vmatprep.subr.mxu0 0.0
      %3095 = vmatpush1.msra.mxu0 0.0
      %3096 = vmatprep.subr.mxu0 0.0
      %3097 = vmatpush1.msra.mxu0 0.0
      %3098 = vmatprep.subr.mxu0 0.0
      %3099 = vmatpush1.msra.mxu0 0.0
      %3100 = vmatprep.subr.mxu0 0.0
      %3101 = vmatpush1.msra.mxu0 0.0
      %3102 = vmatprep.subr.mxu0 0.0
      %3103 = vmatpush1.msra.mxu0 0.0
      %3104 = vmatprep.subr.mxu0 0.0
      %3105 = vmatpush1.msra.mxu0 0.0
      %3106 = vmatprep.subr.mxu0 0.0
      %3107 = vmatpush1.msra.mxu0 0.0
      %3108 = vmatprep.subr.mxu0 0.0
      %3109 = vmatpush1.msra.mxu0 0.0
      %3110 = vmatprep.subr.mxu0 0.0
      %3111 = vmatpush1.msra.mxu0 0.0
      %3112 = vmatprep.mubr.f32.mxu0 0.0
      %3113 = vmatmul.mubr.f32.gmra.mrb[0].mxu0 %v2833
      %v3114 = vpop.f32.mrb[0].mxu0
      %v3115 = vadd.f32 %v3045, %v3114
      %v3116 = vpop.f32.mrb[0].mxu0
      %3117 = vdwg.mxu0
      %v3118 = vld [vmem:[%s1 + $0x5] sm:$0x1]
      %v3119 = vadd.f32 %v3115, %v3118
      %vm3120 = vcmask 49152
      %v3121 = vsel %vm3120, %v3119, -inf
      %3122 = vmax.xlane.f32.xlu0 %v3121
      %v3123 = vpop.xlane.xlu0 %3122
      %v3124 = vsub.f32 %v3119, %v3123
      %v3125 = vmul.f32 %v3124, 1.442695
      %v3126 = vpow.pop %v3125
      %v3127 = vsel %vm3120, %v3126, 0.0
      %3128 = vadd.xlane.f32.xlu0 %v3127
      %v3129 = vpop.xlane.xlu0 %3128
      %v3130 = vrcp.pop %v3129
      %v3131 = vmul.f32 %v3126, %v3130
      %3133 = vrot.lane.b32.xlu0 %v2523, 7
      %v3134 = vpop.permute.xlu0 %3133
      %vm3136 = vcmask 56320
      %v3137 = vsel %vm3136, %v3131, %v3134
      %vm3138 = vcmask 57344
      %3139 = vst.msk [vmem:[%s195] sm:$0x1] %vm3138, %v3137
      %p3140 = scmp.lt.s32.totalorder %s15, 1
      %s3141 = scalar_select %p3140, %s15, 1
      %s3142 = scalar_lea.vmem %s4, %s3141
      // Predicated region
      $region37: #{outblock_forward.3} parent=35 // pred_check
        %p3143 = pneg %p122
      $region38: #{outblock_forward.3} parent=35 // pred_check_branch
        %3145 = sbr.rel (%p3143) target = $region40
      $region39: #{outblock_forward.3} parent=35 // pred_region
        _
      $region40: #{outblock_forward.3} parent=35 // pred_fallthru
        _
    $region36: #{outblock_forward.3} parent=5 // pred_fallthru
      _
    %p3146 = scmp.le.s32.totalorder 2, %s10
    // Predicated region
    $region41: #{outblock_forward.3} parent=5 // pred_check
      %p3147 = pneg %p3146
    $region42: #{outblock_forward.3} parent=5 // pred_check_branch
      %3149 = sbr.rel (%p3147) target = $region44
    $region43: #{outblock_forward.3} parent=5 // pred_region
      %s3150 = ssub.s32 %s10, 2
      // Predicated region
      $region45: #{outblock_forward.3} parent=43 // pred_check
        %p3151 = pneg %p128
      $region46: #{outblock_forward.3} parent=43 // pred_check_branch
        %3153 = sbr.rel (%p3151) target = $region48
      $region47: #{outblock_forward.3} parent=43 // pred_region
        %p3154 = scmp.lt.s32.totalorder %s16, 1
        %s3155 = scalar_select %p3154, %s16, 1
        %s3156 = scalar_lea.vmem %s4, %s3155
      $region48: #{outblock_forward.3} parent=43 // pred_fallthru
        _
    $region44: #{outblock_forward.3} parent=5 // pred_fallthru
      _
  $region6: #{outblock_forward.3} parent=0 // loop_footer
    %s14 = sadd.s32 1, %s10
  $region7: #{outblock_forward.3} parent=0 // loop_footer_branch
    %9 = sbr.rel target = $region3
  $region8: #{outblock_forward.3} parent=0 // loop_exit
    _

</llo_original>
